<compile_context>
chip_gen: v6e
topology: v6e:2x2x1
jax: 0.10.0
libtpu: 0.0.40
codegen_flags: <defaults>
</compile_context>

<pallas_src>
import functools

import jax
import jax.numpy as jnp
from jax import lax
from jax.experimental import pallas as pl
from jax.experimental.pallas import tpu as pltpu


# ---------------------------------------------------------------------------
# Pallas kernel: fused pointwise MLP (3 x [1x1 conv + folded BN + ReLU]) + max-K
# ---------------------------------------------------------------------------
def _sa_mlp_kernel(*refs, has_feat):
    if has_feat:
        (xf_ref, xc_ref, w1f_ref, w1c_ref, b1_ref,
         w2_ref, b2_ref, w3_ref, b3_ref, o_ref, acc_ref) = refs
    else:
        (xc_ref, w1c_ref, b1_ref,
         w2_ref, b2_ref, w3_ref, b3_ref, o_ref, acc_ref) = refs

    kj = pl.program_id(1)
    tm, k_chunk, cxyz = xc_ref.shape
    h3 = w3_ref.shape[1]
    rows = tm * k_chunk

    # Layer 1: xyz (3-ch) and feature (128/256-ch) contractions accumulate into
    # the same f32 accumulator -- no channel concatenation needed and the big
    # contraction is MXU-native.
    xc = xc_ref[...].reshape(rows, cxyz)
    h = jnp.dot(xc, w1c_ref[...], preferred_element_type=jnp.float32)
    if has_feat:
        cfeat = xf_ref.shape[-1]
        xf = xf_ref[...].reshape(rows, cfeat)
        h = h + jnp.dot(xf, w1f_ref[...], preferred_element_type=jnp.float32)
    h = jnp.maximum(h + b1_ref[...], 0.0).astype(w2_ref.dtype)

    # Layer 2.
    h = jnp.dot(h, w2_ref[...], preferred_element_type=jnp.float32)
    h = jnp.maximum(h + b2_ref[...], 0.0).astype(w3_ref.dtype)

    # Layer 3: bias + ReLU are deferred until after the K-max (b3 is
    # K-invariant and ReLU is monotone, so max_k relu(z+b3) == relu(max_k z + b3)).
    z = jnp.dot(h, w3_ref[...], preferred_element_type=jnp.float32)
    zmax = jnp.max(z.reshape(tm, k_chunk, h3), axis=1)

    @pl.when(kj == 0)
    def _():
        acc_ref[...] = zmax

    @pl.when(kj > 0)
    def _():
        acc_ref[...] = jnp.maximum(acc_ref[...], zmax)

    @pl.when(kj == pl.num_programs(1) - 1)
    def _():
        o_ref[...] = jnp.maximum(acc_ref[...] + b3_ref[...], 0.0).astype(o_ref.dtype)


def _padded_block_bytes(shape, dtype):
    """VMEM footprint of one block after (sublane, lane) tile padding."""
    itemsize = jnp.dtype(dtype).itemsize
    sub = 8 * max(1, 4 // itemsize)          # 8 rows for f32, 16 for bf16
    lead = 1
    for d in shape[:-2]:
        lead *= int(d)
    rows = -(-int(shape[-2]) // sub) * sub
    cols = -(-int(shape[-1]) // 128) * 128
    return lead * rows * cols * itemsize


def sa_mlp_pallas(grouped_xyz, grouped_feat, params, out_dtype=jnp.float32,
                  tm=None):
    """Fused SA-layer MLP + max-over-neighbors.

    grouped_xyz:  [B, S, K, 3]   centered neighborhood coordinates
    grouped_feat: [B, S, K, Cf]  or None
    returns:      [B, S, C_out]  in `out_dtype`
    """
    (w1, b1), (w2, b2), (w3, b3) = params
    B, S, K, cxyz = grouped_xyz.shape
    h1, h2, h3 = w1.shape[1], w2.shape[1], w3.shape[1]
    has_feat = grouped_feat is not None
    cfeat = grouped_feat.shape[-1] if has_feat else 0

    m = B * S
    if tm is None:
        # Large row tile (amortize per-step overhead, big MXU M dim), multiple
        # of 16 for bf16 sublane packing.  No "keep >= 2 steps" shrink: it only
        # pays on v7x megacore and only at toy sizes.
        tm = min(128, pl.cdiv(m, 16) * 16)
    mp = pl.cdiv(m, tm) * tm

    # Neighbor chunk: multiple of 16 (bf16 sublane tile => in-kernel reshape is
    # a no-op view) that divides K and keeps tm*k_chunk around 1-2k MXU rows.
    if K % 16 == 0:
        k_chunk = 16
        target = max(16, 1024 // tm)
        while k_chunk * 2 <= min(K, target) and K % (k_chunk * 2) == 0:
            k_chunk *= 2
    else:
        k_chunk = K

    # bf16 operands for the MXU; biases stay f32 (added to f32 accumulators).
    # Layer-1 weight is split along its input-channel axis into the xyz part
    # (first 3 rows) and the feature part -- exactly equivalent to the
    # concatenated layout.
    xc = grouped_xyz.reshape(m, K, cxyz).astype(jnp.bfloat16)
    if mp != m:
        xc = jnp.pad(xc, ((0, mp - m), (0, 0), (0, 0)))
    w1c = w1[:cxyz].astype(jnp.bfloat16)
    if has_feat:
        xf = grouped_feat.reshape(m, K, cfeat).astype(jnp.bfloat16)
        if mp != m:
            xf = jnp.pad(xf, ((0, mp - m), (0, 0), (0, 0)))
        w1f = w1[cxyz:].astype(jnp.bfloat16)

    inputs, in_specs, blocks = [], [], []

    def add(arr, block_shape, index_map):
        inputs.append(arr)
        in_specs.append(pl.BlockSpec(block_shape, index_map))
        blocks.append((block_shape, arr.dtype))

    if has_feat:
        add(xf, (tm, k_chunk, cfeat), lambda i, j: (i, j, 0))
    add(xc, (tm, k_chunk, cxyz), lambda i, j: (i, j, 0))
    if has_feat:
        add(w1f, (cfeat, h1), lambda i, j: (0, 0))
    add(w1c, (cxyz, h1), lambda i, j: (0, 0))
    add(b1.reshape(1, h1).astype(jnp.float32), (1, h1), lambda i, j: (0, 0))
    add(w2.astype(jnp.bfloat16), (h1, h2), lambda i, j: (0, 0))
    add(b2.reshape(1, h2).astype(jnp.float32), (1, h2), lambda i, j: (0, 0))
    add(w3.astype(jnp.bfloat16), (h2, h3), lambda i, j: (0, 0))
    add(b3.reshape(1, h3).astype(jnp.float32), (1, h3), lambda i, j: (0, 0))

    # VMEM budget from the actual tile-padded block sizes: double-buffered
    # inputs + double-buffered output + the f32 accumulator scratch, 2x headroom.
    est = sum(2 * _padded_block_bytes(s, d) for s, d in blocks)
    est += 2 * _padded_block_bytes((tm, h3), out_dtype)
    est += _padded_block_bytes((tm, h3), jnp.float32)
    vmem_limit = int(min(64 * 1024 * 1024, max(16 * 1024 * 1024, 2 * est)))

    out = pl.pallas_call(
        functools.partial(_sa_mlp_kernel, has_feat=has_feat),
        out_shape=jax.ShapeDtypeStruct((mp, h3), out_dtype),
        grid=(mp // tm, K // k_chunk),
        in_specs=in_specs,
        out_specs=pl.BlockSpec((tm, h3), lambda i, j: (i, 0)),
        scratch_shapes=[pltpu.VMEM((tm, h3), jnp.float32)],
        compiler_params=pltpu.CompilerParams(
            dimension_semantics=("parallel", "arbitrary"),
            vmem_limit_bytes=vmem_limit),
    )(*inputs)
    return out[:m].reshape(B, S, h3)


# ---------------------------------------------------------------------------
# Sampling / grouping glue (data-dependent gathers) in plain JAX
# ---------------------------------------------------------------------------
def square_distance(src, dst):
    # src [B, S, 3], dst [B, N, 3] -> [B, S, N]
    return jnp.sum((src[:, :, None, :] - dst[:, None, :, :]) ** 2, axis=-1)


def index_points(points, idx):
    # points [B, N, C], idx [B, ...] int -> [B, ..., C]
    return jax.vmap(lambda p, i: p[i])(points, idx)


# TODO(synk): farthest_point_sample / query_ball_point (sequential argmax and a
# full sort over N per centroid) stay in plain JAX and will dominate wall clock
# at realistic point counts; a masked top-K / Pallas ball-query kernel is the
# next optimization target.
def farthest_point_sample(xyz, npoint):
    B, N, _ = xyz.shape

    def body(i, carry):
        centroids, distance, farthest = carry
        centroids = centroids.at[:, i].set(farthest)
        centroid = jax.vmap(lambda p, f: p[f])(xyz, farthest)[:, None, :]  # [B,1,3]
        dist = jnp.sum((xyz - centroid) ** 2, axis=-1)                     # [B,N]
        distance = jnp.minimum(distance, dist)
        farthest = jnp.argmax(distance, axis=-1).astype(jnp.int32)
        return centroids, distance, farthest

    centroids = jnp.zeros((B, npoint), dtype=jnp.int32)
    distance = jnp.full((B, N), 1e10, dtype=xyz.dtype)
    farthest = jnp.zeros((B,), dtype=jnp.int32)  # deterministic start index
    centroids, _, _ = lax.fori_loop(0, npoint, body, (centroids, distance, farthest))
    return centroids


def query_ball_point(radius, nsample, xyz, new_xyz):
    B, N, _ = xyz.shape
    S = new_xyz.shape[1]
    K = min(nsample, N)  # matches torch slice semantics when N < nsample
    sqrdists = square_distance(new_xyz, xyz)                               # [B,S,N]
    group_idx = jnp.broadcast_to(jnp.arange(N, dtype=jnp.int32), (B, S, N))
    group_idx = jnp.where(sqrdists > radius ** 2, jnp.int32(N), group_idx)
    group_idx = jnp.sort(group_idx, axis=-1)[:, :, :K]
    group_first = jnp.broadcast_to(group_idx[:, :, :1], group_idx.shape)
    group_idx = jnp.where(group_idx == N, group_first, group_idx)
    return group_idx


def sample_and_group(npoint, radius, nsample, xyz, points):
    # xyz [B, N, 3] channel-last; points [B, N, D] or None.
    # Returns xyz-part and feature-part of the grouped neighborhoods SEPARATELY
    # (no concat: the kernel contracts them into one accumulator).
    fps_idx = farthest_point_sample(xyz, npoint)                 # [B, S]
    new_xyz = index_points(xyz, fps_idx)                         # [B, S, 3]
    idx = query_ball_point(radius, nsample, xyz, new_xyz)        # [B, S, K]
    grouped_xyz = index_points(xyz, idx)                         # [B, S, K, 3]
    grouped_xyz_norm = grouped_xyz - new_xyz[:, :, None, :]
    grouped_points = index_points(points, idx) if points is not None else None
    return new_xyz, grouped_xyz_norm, grouped_points


def set_abstraction(xyz, points, npoint, radius, nsample, params, out_dtype):
    new_xyz, g_xyz, g_feat = sample_and_group(npoint, radius, nsample, xyz, points)
    new_feats = sa_mlp_pallas(g_xyz, g_feat, params, out_dtype=out_dtype)
    return new_xyz, new_feats


# ---------------------------------------------------------------------------
# Parameter construction (Conv2d 1x1 + BatchNorm2d folded, deterministic init)
# ---------------------------------------------------------------------------
def init_sa_params(key, in_channel, mlp):
    params = []
    last = in_channel
    for out_c in mlp:
        key, k1, k2, k3, k4 = jax.random.split(key, 5)
        bound = 1.0 / (last ** 0.5)
        w = jax.random.uniform(k1, (out_c, last), minval=-bound, maxval=bound,
                               dtype=jnp.float32)
        b = jax.random.uniform(k2, (out_c,), minval=-bound, maxval=bound,
                               dtype=jnp.float32)
        gamma = 1.0 + 0.01 * jax.random.normal(k3, (out_c,), dtype=jnp.float32)
        beta = 0.01 * jax.random.normal(k4, (out_c,), dtype=jnp.float32)
        r_mean = jnp.zeros((out_c,), jnp.float32)
        r_var = jnp.ones((out_c,), jnp.float32)
        eps = 1e-5
        scale = gamma / jnp.sqrt(r_var + eps)
        w_folded = (w * scale[:, None]).T            # [last, out_c]; rows = [xyz(3), feat]
        b_folded = (b - r_mean) * scale + beta       # [out_c]
        params.append((w_folded, b_folded))
        last = out_c
    return params, key


# ---------------------------------------------------------------------------
# Backbone forward
# ---------------------------------------------------------------------------
@functools.partial(jax.jit, static_argnums=(4,))
def pointnet2_based_forward(xyz_b3n, p_sa1, p_sa2, p_sa3, npoint):
    # xyz_b3n: [B, 3, N]  (normal_channel=False)
    xyz = jnp.transpose(xyz_b3n, (0, 2, 1))                       # [B, N, 3]
    # SA1/SA2 outputs in bf16 (they feed the next bf16 SA layer); SA3 in f32.
    l1_xyz, l1_points = set_abstraction(xyz, None, npoint, 0.2, 32, p_sa1,
                                        jnp.bfloat16)
    l2_xyz, l2_points = set_abstraction(l1_xyz, l1_points, npoint, 0.4, 64, p_sa2,
                                        jnp.bfloat16)
    _, l3_points = set_abstraction(l2_xyz, l2_points, npoint, 0.4, 64, p_sa3,
                                   jnp.float32)
    return l3_points                                              # [B, npoint, 512]


if __name__ == "__main__":
    key = jax.random.PRNGKey(0)
    B, N, NPOINT = 2, 128, 8

    key, k_in = jax.random.split(key)
    xyz = jax.random.uniform(k_in, (B, 3, N), minval=-1.0, maxval=1.0,
                             dtype=jnp.float32)

    p_sa1, key = init_sa_params(key, 3, [64, 64, 128])
    p_sa2, key = init_sa_params(key, 128 + 3, [128, 128, 256])
    p_sa3, key = init_sa_params(key, 256 + 3, [256, 256, 512])

    out = pointnet2_based_forward(xyz, p_sa1, p_sa2, p_sa3, NPOINT)
    out = jax.block_until_ready(out)

    assert out.shape == (B, NPOINT, 512), out.shape
    assert jnp.all(jnp.isfinite(out))
    print("KERNEL_OK")
</pallas_src>

<mosaic_0001>
module attributes {stable_mosaic.version = 11 : i64} {
  func.func @_sa_mlp_kernel(%arg0: i32, %arg1: i32, %arg2: memref<16x32x3xbf16, #tpu.memory_space<vmem>>, %arg3: memref<3x64xbf16, #tpu.memory_space<vmem>>, %arg4: memref<1x64xf32, #tpu.memory_space<vmem>>, %arg5: memref<64x64xbf16, #tpu.memory_space<vmem>>, %arg6: memref<1x64xf32, #tpu.memory_space<vmem>>, %arg7: memref<64x128xbf16, #tpu.memory_space<vmem>>, %arg8: memref<1x128xf32, #tpu.memory_space<vmem>>, %arg9: memref<16x128xbf16, #tpu.memory_space<vmem>>, %arg10: memref<16x128xf32, #tpu.memory_space<vmem>>) attributes {dimension_semantics = [#tpu.dimension_semantics<parallel>, #tpu.dimension_semantics<arbitrary>], iteration_bounds = array<i64: 1, 1>, scalar_prefetch = 0 : i64, scratch_operands = 1 : i64, tpu.core_type = #tpu.core_type<tc>, window_params = [{transform_indices = @transform_0, window_bounds = array<i64: 16, 32, 3>}, {pipeline_mode = #tpu.pipeline_mode<synchronous>, transform_indices = @transform_1, window_bounds = array<i64: 3, 64>}, {pipeline_mode = #tpu.pipeline_mode<synchronous>, transform_indices = @transform_2, window_bounds = array<i64: 1, 64>}, {pipeline_mode = #tpu.pipeline_mode<synchronous>, transform_indices = @transform_3, window_bounds = array<i64: 64, 64>}, {pipeline_mode = #tpu.pipeline_mode<synchronous>, transform_indices = @transform_4, window_bounds = array<i64: 1, 64>}, {pipeline_mode = #tpu.pipeline_mode<synchronous>, transform_indices = @transform_5, window_bounds = array<i64: 64, 128>}, {pipeline_mode = #tpu.pipeline_mode<synchronous>, transform_indices = @transform_6, window_bounds = array<i64: 1, 128>}, {transform_indices = @transform_7, window_bounds = array<i64: 16, 128>}]} {
    %c0 = arith.constant 0 : index
    %c0_0 = arith.constant 0 : index
    %c0_1 = arith.constant 0 : index
    %0 = vector.load %arg2[%c0, %c0_0, %c0_1] : memref<16x32x3xbf16, #tpu.memory_space<vmem>>, vector<16x32x3xbf16>
    %1 = vector.shape_cast %0 : vector<16x32x3xbf16> to vector<512x3xbf16>
    %c0_2 = arith.constant 0 : index
    %c0_3 = arith.constant 0 : index
    %2 = vector.load %arg3[%c0_2, %c0_3] : memref<3x64xbf16, #tpu.memory_space<vmem>>, vector<3x64xbf16>
    %cst = arith.constant dense<0.000000e+00> : vector<512x64xf32>
    %3 = tpu.matmul %1, %2, %cst {dimension_numbers = #tpu.dot_dimension_numbers<[1], [0], [0], [1], [0, 0, 1, 1], [], []>} : vector<512x3xbf16>, vector<3x64xbf16>, vector<512x64xf32> -> vector<512x64xf32>
    %c0_4 = arith.constant 0 : index
    %c0_5 = arith.constant 0 : index
    %4 = vector.load %arg4[%c0_4, %c0_5] : memref<1x64xf32, #tpu.memory_space<vmem>>, vector<1x64xf32>
    %5 = vector.broadcast %4 : vector<1x64xf32> to vector<512x64xf32>
    %6 = arith.addf %3, %5 : vector<512x64xf32>
    %cst_6 = arith.constant 0.000000e+00 : f32
    %7 = vector.broadcast %cst_6 : f32 to vector<512x64xf32>
    %8 = arith.maximumf %6, %7 : vector<512x64xf32>
    %9 = arith.truncf %8 : vector<512x64xf32> to vector<512x64xbf16>
    %c0_7 = arith.constant 0 : index
    %c0_8 = arith.constant 0 : index
    %10 = vector.load %arg5[%c0_7, %c0_8] : memref<64x64xbf16, #tpu.memory_space<vmem>>, vector<64x64xbf16>
    %cst_9 = arith.constant dense<0.000000e+00> : vector<512x64xf32>
    %11 = tpu.matmul %9, %10, %cst_9 {dimension_numbers = #tpu.dot_dimension_numbers<[1], [0], [0], [1], [0, 0, 1, 1], [], []>} : vector<512x64xbf16>, vector<64x64xbf16>, vector<512x64xf32> -> vector<512x64xf32>
    %c0_10 = arith.constant 0 : index
    %c0_11 = arith.constant 0 : index
    %12 = vector.load %arg6[%c0_10, %c0_11] : memref<1x64xf32, #tpu.memory_space<vmem>>, vector<1x64xf32>
    %13 = vector.broadcast %12 : vector<1x64xf32> to vector<512x64xf32>
    %14 = arith.addf %11, %13 : vector<512x64xf32>
    %cst_12 = arith.constant 0.000000e+00 : f32
    %15 = vector.broadcast %cst_12 : f32 to vector<512x64xf32>
    %16 = arith.maximumf %14, %15 : vector<512x64xf32>
    %17 = arith.truncf %16 : vector<512x64xf32> to vector<512x64xbf16>
    %c0_13 = arith.constant 0 : index
    %c0_14 = arith.constant 0 : index
    %18 = vector.load %arg7[%c0_13, %c0_14] : memref<64x128xbf16, #tpu.memory_space<vmem>>, vector<64x128xbf16>
    %cst_15 = arith.constant dense<0.000000e+00> : vector<512x128xf32>
    %19 = tpu.matmul %17, %18, %cst_15 {dimension_numbers = #tpu.dot_dimension_numbers<[1], [0], [0], [1], [0, 0, 1, 1], [], []>} : vector<512x64xbf16>, vector<64x128xbf16>, vector<512x128xf32> -> vector<512x128xf32>
    %20 = vector.shape_cast %19 : vector<512x128xf32> to vector<16x32x128xf32>
    %cst_16 = arith.constant dense<0xFF800000> : vector<16x128xf32>
    %21 = vector.multi_reduction <maximumf>, %20, %cst_16 [1] : vector<16x32x128xf32> to vector<16x128xf32>
    %c0_i32 = arith.constant 0 : i32
    %22 = arith.cmpi eq, %arg1, %c0_i32 : i32
    %23 = arith.extui %22 : i1 to i32
    %c0_i32_17 = arith.constant 0 : i32
    %24 = arith.cmpi ne, %23, %c0_i32_17 : i32
    scf.if %24 {
      %c0_22 = arith.constant 0 : index
      %c0_23 = arith.constant 0 : index
      %31 = vector.load %arg10[%c0_22, %c0_23] : memref<16x128xf32, #tpu.memory_space<vmem>>, vector<16x128xf32>
      tpu.vector_store %arg10[%c0_22, %c0_23], %21 {strides = array<i32>} : memref<16x128xf32, #tpu.memory_space<vmem>>, vector<16x128xf32>,
    } else {
    }
    %c0_i32_18 = arith.constant 0 : i32
    %25 = arith.cmpi sgt, %arg1, %c0_i32_18 : i32
    %26 = arith.extui %25 : i1 to i32
    %c0_i32_19 = arith.constant 0 : i32
    %27 = arith.cmpi ne, %26, %c0_i32_19 : i32
    scf.if %27 {
      %c0_22 = arith.constant 0 : index
      %c0_23 = arith.constant 0 : index
      %31 = vector.load %arg10[%c0_22, %c0_23] : memref<16x128xf32, #tpu.memory_space<vmem>>, vector<16x128xf32>
      %32 = arith.maximumf %31, %21 : vector<16x128xf32>
      %c0_24 = arith.constant 0 : index
      %c0_25 = arith.constant 0 : index
      %33 = vector.load %arg10[%c0_24, %c0_25] : memref<16x128xf32, #tpu.memory_space<vmem>>, vector<16x128xf32>
      tpu.vector_store %arg10[%c0_24, %c0_25], %32 {strides = array<i32>} : memref<16x128xf32, #tpu.memory_space<vmem>>, vector<16x128xf32>,
    } else {
    }
    %c0_i32_20 = arith.constant 0 : i32
    %28 = arith.cmpi eq, %arg1, %c0_i32_20 : i32
    %29 = arith.extui %28 : i1 to i32
    %c0_i32_21 = arith.constant 0 : i32
    %30 = arith.cmpi ne, %29, %c0_i32_21 : i32
    scf.if %30 {
      %c0_22 = arith.constant 0 : index
      %c0_23 = arith.constant 0 : index
      %31 = vector.load %arg10[%c0_22, %c0_23] : memref<16x128xf32, #tpu.memory_space<vmem>>, vector<16x128xf32>
      %c0_24 = arith.constant 0 : index
      %c0_25 = arith.constant 0 : index
      %32 = vector.load %arg8[%c0_24, %c0_25] : memref<1x128xf32, #tpu.memory_space<vmem>>, vector<1x128xf32>
      %33 = vector.broadcast %32 : vector<1x128xf32> to vector<16x128xf32>
      %34 = arith.addf %31, %33 : vector<16x128xf32>
      %cst_26 = arith.constant 0.000000e+00 : f32
      %35 = vector.broadcast %cst_26 : f32 to vector<16x128xf32>
      %36 = arith.maximumf %34, %35 : vector<16x128xf32>
      %37 = arith.truncf %36 : vector<16x128xf32> to vector<16x128xbf16>
      %c0_27 = arith.constant 0 : index
      %c0_28 = arith.constant 0 : index
      %38 = vector.load %arg9[%c0_27, %c0_28] : memref<16x128xbf16, #tpu.memory_space<vmem>>, vector<16x128xbf16>
      tpu.vector_store %arg9[%c0_27, %c0_28], %37 {strides = array<i32>} : memref<16x128xbf16, #tpu.memory_space<vmem>>, vector<16x128xbf16>,
    } else {
    }
    return
  }
  func.func @transform_0(%arg0: i32, %arg1: i32) -> (i32, i32, i32) {
    %c0_i32 = arith.constant 0 : i32
    %c0_i32_0 = arith.constant 0 : i32
    return %arg0, %arg1, %c0_i32 : i32, i32, i32
  }
  func.func @transform_1(%arg0: i32, %arg1: i32) -> (i32, i32) {
    %c0_i32 = arith.constant 0 : i32
    %c0_i32_0 = arith.constant 0 : i32
    %c0_i32_1 = arith.constant 0 : i32
    return %c0_i32, %c0_i32_0 : i32, i32
  }
  func.func @transform_2(%arg0: i32, %arg1: i32) -> (i32, i32) {
    %c0_i32 = arith.constant 0 : i32
    %c0_i32_0 = arith.constant 0 : i32
    %c0_i32_1 = arith.constant 0 : i32
    return %c0_i32, %c0_i32_0 : i32, i32
  }
  func.func @transform_3(%arg0: i32, %arg1: i32) -> (i32, i32) {
    %c0_i32 = arith.constant 0 : i32
    %c0_i32_0 = arith.constant 0 : i32
    %c0_i32_1 = arith.constant 0 : i32
    return %c0_i32, %c0_i32_0 : i32, i32
  }
  func.func @transform_4(%arg0: i32, %arg1: i32) -> (i32, i32) {
    %c0_i32 = arith.constant 0 : i32
    %c0_i32_0 = arith.constant 0 : i32
    %c0_i32_1 = arith.constant 0 : i32
    return %c0_i32, %c0_i32_0 : i32, i32
  }
  func.func @transform_5(%arg0: i32, %arg1: i32) -> (i32, i32) {
    %c0_i32 = arith.constant 0 : i32
    %c0_i32_0 = arith.constant 0 : i32
    %c0_i32_1 = arith.constant 0 : i32
    return %c0_i32, %c0_i32_0 : i32, i32
  }
  func.func @transform_6(%arg0: i32, %arg1: i32) -> (i32, i32) {
    %c0_i32 = arith.constant 0 : i32
    %c0_i32_0 = arith.constant 0 : i32
    %c0_i32_1 = arith.constant 0 : i32
    return %c0_i32, %c0_i32_0 : i32, i32
  }
  func.func @transform_7(%arg0: i32, %arg1: i32) -> (i32, i32) {
    %c0_i32 = arith.constant 0 : i32
    %c0_i32_0 = arith.constant 0 : i32
    return %arg0, %c0_i32 : i32, i32
  }
}

module attributes {stable_mosaic.version = 11 : i64} {
  func.func @_sa_mlp_kernel(%arg0: i32, %arg1: i32, %arg2: memref<16x8x128xbf16, #tpu.memory_space<vmem>>, %arg3: memref<16x8x3xbf16, #tpu.memory_space<vmem>>, %arg4: memref<128x128xbf16, #tpu.memory_space<vmem>>, %arg5: memref<3x128xbf16, #tpu.memory_space<vmem>>, %arg6: memref<1x128xf32, #tpu.memory_space<vmem>>, %arg7: memref<128x128xbf16, #tpu.memory_space<vmem>>, %arg8: memref<1x128xf32, #tpu.memory_space<vmem>>, %arg9: memref<128x256xbf16, #tpu.memory_space<vmem>>, %arg10: memref<1x256xf32, #tpu.memory_space<vmem>>, %arg11: memref<16x256xbf16, #tpu.memory_space<vmem>>, %arg12: memref<16x256xf32, #tpu.memory_space<vmem>>) attributes {dimension_semantics = [#tpu.dimension_semantics<parallel>, #tpu.dimension_semantics<arbitrary>], iteration_bounds = array<i64: 1, 1>, scalar_prefetch = 0 : i64, scratch_operands = 1 : i64, tpu.core_type = #tpu.core_type<tc>, window_params = [{transform_indices = @transform_0, window_bounds = array<i64: 16, 8, 128>}, {transform_indices = @transform_1, window_bounds = array<i64: 16, 8, 3>}, {pipeline_mode = #tpu.pipeline_mode<synchronous>, transform_indices = @transform_2, window_bounds = array<i64: 128, 128>}, {pipeline_mode = #tpu.pipeline_mode<synchronous>, transform_indices = @transform_3, window_bounds = array<i64: 3, 128>}, {pipeline_mode = #tpu.pipeline_mode<synchronous>, transform_indices = @transform_4, window_bounds = array<i64: 1, 128>}, {pipeline_mode = #tpu.pipeline_mode<synchronous>, transform_indices = @transform_5, window_bounds = array<i64: 128, 128>}, {pipeline_mode = #tpu.pipeline_mode<synchronous>, transform_indices = @transform_6, window_bounds = array<i64: 1, 128>}, {pipeline_mode = #tpu.pipeline_mode<synchronous>, transform_indices = @transform_7, window_bounds = array<i64: 128, 256>}, {pipeline_mode = #tpu.pipeline_mode<synchronous>, transform_indices = @transform_8, window_bounds = array<i64: 1, 256>}, {transform_indices = @transform_9, window_bounds = array<i64: 16, 256>}]} {
    %c0 = arith.constant 0 : index
    %c0_0 = arith.constant 0 : index
    %c0_1 = arith.constant 0 : index
    %0 = vector.load %arg3[%c0, %c0_0, %c0_1] : memref<16x8x3xbf16, #tpu.memory_space<vmem>>, vector<16x8x3xbf16>
    %1 = vector.shape_cast %0 : vector<16x8x3xbf16> to vector<128x3xbf16>
    %c0_2 = arith.constant 0 : index
    %c0_3 = arith.constant 0 : index
    %2 = vector.load %arg5[%c0_2, %c0_3] : memref<3x128xbf16, #tpu.memory_space<vmem>>, vector<3x128xbf16>
    %cst = arith.constant dense<0.000000e+00> : vector<128x128xf32>
    %3 = tpu.matmul %1, %2, %cst {dimension_numbers = #tpu.dot_dimension_numbers<[1], [0], [0], [1], [0, 0, 1, 1], [], []>} : vector<128x3xbf16>, vector<3x128xbf16>, vector<128x128xf32> -> vector<128x128xf32>
    %c0_4 = arith.constant 0 : index
    %c0_5 = arith.constant 0 : index
    %c0_6 = arith.constant 0 : index
    %4 = vector.load %arg2[%c0_4, %c0_5, %c0_6] : memref<16x8x128xbf16, #tpu.memory_space<vmem>>, vector<16x8x128xbf16>
    %5 = vector.shape_cast %4 : vector<16x8x128xbf16> to vector<128x128xbf16>
    %c0_7 = arith.constant 0 : index
    %c0_8 = arith.constant 0 : index
    %6 = vector.load %arg4[%c0_7, %c0_8] : memref<128x128xbf16, #tpu.memory_space<vmem>>, vector<128x128xbf16>
    %cst_9 = arith.constant dense<0.000000e+00> : vector<128x128xf32>
    %7 = tpu.matmul %5, %6, %cst_9 {dimension_numbers = #tpu.dot_dimension_numbers<[1], [0], [0], [1], [0, 0, 1, 1], [], []>} : vector<128x128xbf16>, vector<128x128xbf16>, vector<128x128xf32> -> vector<128x128xf32>
    %8 = arith.addf %3, %7 : vector<128x128xf32>
    %c0_10 = arith.constant 0 : index
    %c0_11 = arith.constant 0 : index
    %9 = vector.load %arg6[%c0_10, %c0_11] : memref<1x128xf32, #tpu.memory_space<vmem>>, vector<1x128xf32>
    %10 = vector.broadcast %9 : vector<1x128xf32> to vector<128x128xf32>
    %11 = arith.addf %8, %10 : vector<128x128xf32>
    %cst_12 = arith.constant 0.000000e+00 : f32
    %12 = vector.broadcast %cst_12 : f32 to vector<128x128xf32>
    %13 = arith.maximumf %11, %12 : vector<128x128xf32>
    %14 = arith.truncf %13 : vector<128x128xf32> to vector<128x128xbf16>
    %c0_13 = arith.constant 0 : index
    %c0_14 = arith.constant 0 : index
    %15 = vector.load %arg7[%c0_13, %c0_14] : memref<128x128xbf16, #tpu.memory_space<vmem>>, vector<128x128xbf16>
    %cst_15 = arith.constant dense<0.000000e+00> : vector<128x128xf32>
    %16 = tpu.matmul %14, %15, %cst_15 {dimension_numbers = #tpu.dot_dimension_numbers<[1], [0], [0], [1], [0, 0, 1, 1], [], []>} : vector<128x128xbf16>, vector<128x128xbf16>, vector<128x128xf32> -> vector<128x128xf32>
    %c0_16 = arith.constant 0 : index
    %c0_17 = arith.constant 0 : index
    %17 = vector.load %arg8[%c0_16, %c0_17] : memref<1x128xf32, #tpu.memory_space<vmem>>, vector<1x128xf32>
    %18 = vector.broadcast %17 : vector<1x128xf32> to vector<128x128xf32>
    %19 = arith.addf %16, %18 : vector<128x128xf32>
    %cst_18 = arith.constant 0.000000e+00 : f32
    %20 = vector.broadcast %cst_18 : f32 to vector<128x128xf32>
    %21 = arith.maximumf %19, %20 : vector<128x128xf32>
    %22 = arith.truncf %21 : vector<128x128xf32> to vector<128x128xbf16>
    %c0_19 = arith.constant 0 : index
    %c0_20 = arith.constant 0 : index
    %23 = vector.load %arg9[%c0_19, %c0_20] : memref<128x256xbf16, #tpu.memory_space<vmem>>, vector<128x256xbf16>
    %cst_21 = arith.constant dense<0.000000e+00> : vector<128x256xf32>
    %24 = tpu.matmul %22, %23, %cst_21 {dimension_numbers = #tpu.dot_dimension_numbers<[1], [0], [0], [1], [0, 0, 1, 1], [], []>} : vector<128x128xbf16>, vector<128x256xbf16>, vector<128x256xf32> -> vector<128x256xf32>
    %25 = vector.shape_cast %24 : vector<128x256xf32> to vector<16x8x256xf32>
    %cst_22 = arith.constant dense<0xFF800000> : vector<16x256xf32>
    %26 = vector.multi_reduction <maximumf>, %25, %cst_22 [1] : vector<16x8x256xf32> to vector<16x256xf32>
    %c0_i32 = arith.constant 0 : i32
    %27 = arith.cmpi eq, %arg1, %c0_i32 : i32
    %28 = arith.extui %27 : i1 to i32
    %c0_i32_23 = arith.constant 0 : i32
    %29 = arith.cmpi ne, %28, %c0_i32_23 : i32
    scf.if %29 {
      %c0_28 = arith.constant 0 : index
      %c0_29 = arith.constant 0 : index
      %36 = vector.load %arg12[%c0_28, %c0_29] : memref<16x256xf32, #tpu.memory_space<vmem>>, vector<16x256xf32>
      tpu.vector_store %arg12[%c0_28, %c0_29], %26 {strides = array<i32>} : memref<16x256xf32, #tpu.memory_space<vmem>>, vector<16x256xf32>,
    } else {
    }
    %c0_i32_24 = arith.constant 0 : i32
    %30 = arith.cmpi sgt, %arg1, %c0_i32_24 : i32
    %31 = arith.extui %30 : i1 to i32
    %c0_i32_25 = arith.constant 0 : i32
    %32 = arith.cmpi ne, %31, %c0_i32_25 : i32
    scf.if %32 {
      %c0_28 = arith.constant 0 : index
      %c0_29 = arith.constant 0 : index
      %36 = vector.load %arg12[%c0_28, %c0_29] : memref<16x256xf32, #tpu.memory_space<vmem>>, vector<16x256xf32>
      %37 = arith.maximumf %36, %26 : vector<16x256xf32>
      %c0_30 = arith.constant 0 : index
      %c0_31 = arith.constant 0 : index
      %38 = vector.load %arg12[%c0_30, %c0_31] : memref<16x256xf32, #tpu.memory_space<vmem>>, vector<16x256xf32>
      tpu.vector_store %arg12[%c0_30, %c0_31], %37 {strides = array<i32>} : memref<16x256xf32, #tpu.memory_space<vmem>>, vector<16x256xf32>,
    } else {
    }
    %c0_i32_26 = arith.constant 0 : i32
    %33 = arith.cmpi eq, %arg1, %c0_i32_26 : i32
    %34 = arith.extui %33 : i1 to i32
    %c0_i32_27 = arith.constant 0 : i32
    %35 = arith.cmpi ne, %34, %c0_i32_27 : i32
    scf.if %35 {
      %c0_28 = arith.constant 0 : index
      %c0_29 = arith.constant 0 : index
      %36 = vector.load %arg12[%c0_28, %c0_29] : memref<16x256xf32, #tpu.memory_space<vmem>>, vector<16x256xf32>
      %c0_30 = arith.constant 0 : index
      %c0_31 = arith.constant 0 : index
      %37 = vector.load %arg10[%c0_30, %c0_31] : memref<1x256xf32, #tpu.memory_space<vmem>>, vector<1x256xf32>
      %38 = vector.broadcast %37 : vector<1x256xf32> to vector<16x256xf32>
      %39 = arith.addf %36, %38 : vector<16x256xf32>
      %cst_32 = arith.constant 0.000000e+00 : f32
      %40 = vector.broadcast %cst_32 : f32 to vector<16x256xf32>
      %41 = arith.maximumf %39, %40 : vector<16x256xf32>
      %42 = arith.truncf %41 : vector<16x256xf32> to vector<16x256xbf16>
      %c0_33 = arith.constant 0 : index
      %c0_34 = arith.constant 0 : index
      %43 = vector.load %arg11[%c0_33, %c0_34] : memref<16x256xbf16, #tpu.memory_space<vmem>>, vector<16x256xbf16>
      tpu.vector_store %arg11[%c0_33, %c0_34], %42 {strides = array<i32>} : memref<16x256xbf16, #tpu.memory_space<vmem>>, vector<16x256xbf16>,
    } else {
    }
    return
  }
  func.func @transform_0(%arg0: i32, %arg1: i32) -> (i32, i32, i32) {
    %c0_i32 = arith.constant 0 : i32
    %c0_i32_0 = arith.constant 0 : i32
    return %arg0, %arg1, %c0_i32 : i32, i32, i32
  }
  func.func @transform_1(%arg0: i32, %arg1: i32) -> (i32, i32, i32) {
    %c0_i32 = arith.constant 0 : i32
    %c0_i32_0 = arith.constant 0 : i32
    return %arg0, %arg1, %c0_i32 : i32, i32, i32
  }
  func.func @transform_2(%arg0: i32, %arg1: i32) -> (i32, i32) {
    %c0_i32 = arith.constant 0 : i32
    %c0_i32_0 = arith.constant 0 : i32
    %c0_i32_1 = arith.constant 0 : i32
    return %c0_i32, %c0_i32_0 : i32, i32
  }
  func.func @transform_3(%arg0: i32, %arg1: i32) -> (i32, i32) {
    %c0_i32 = arith.constant 0 : i32
    %c0_i32_0 = arith.constant 0 : i32
    %c0_i32_1 = arith.constant 0 : i32
    return %c0_i32, %c0_i32_0 : i32, i32
  }
  func.func @transform_4(%arg0: i32, %arg1: i32) -> (i32, i32) {
    %c0_i32 = arith.constant 0 : i32
    %c0_i32_0 = arith.constant 0 : i32
    %c0_i32_1 = arith.constant 0 : i32
    return %c0_i32, %c0_i32_0 : i32, i32
  }
  func.func @transform_5(%arg0: i32, %arg1: i32) -> (i32, i32) {
    %c0_i32 = arith.constant 0 : i32
    %c0_i32_0 = arith.constant 0 : i32
    %c0_i32_1 = arith.constant 0 : i32
    return %c0_i32, %c0_i32_0 : i32, i32
  }
  func.func @transform_6(%arg0: i32, %arg1: i32) -> (i32, i32) {
    %c0_i32 = arith.constant 0 : i32
    %c0_i32_0 = arith.constant 0 : i32
    %c0_i32_1 = arith.constant 0 : i32
    return %c0_i32, %c0_i32_0 : i32, i32
  }
  func.func @transform_7(%arg0: i32, %arg1: i32) -> (i32, i32) {
    %c0_i32 = arith.constant 0 : i32
    %c0_i32_0 = arith.constant 0 : i32
    %c0_i32_1 = arith.constant 0 : i32
    return %c0_i32, %c0_i32_0 : i32, i32
  }
  func.func @transform_8(%arg0: i32, %arg1: i32) -> (i32, i32) {
    %c0_i32 = arith.constant 0 : i32
    %c0_i32_0 = arith.constant 0 : i32
    %c0_i32_1 = arith.constant 0 : i32
    return %c0_i32, %c0_i32_0 : i32, i32
  }
  func.func @transform_9(%arg0: i32, %arg1: i32) -> (i32, i32) {
    %c0_i32 = arith.constant 0 : i32
    %c0_i32_0 = arith.constant 0 : i32
    return %arg0, %c0_i32 : i32, i32
  }
}

module attributes {stable_mosaic.version = 11 : i64} {
  func.func @_sa_mlp_kernel(%arg0: i32, %arg1: i32, %arg2: memref<16x8x256xbf16, #tpu.memory_space<vmem>>, %arg3: memref<16x8x3xbf16, #tpu.memory_space<vmem>>, %arg4: memref<256x256xbf16, #tpu.memory_space<vmem>>, %arg5: memref<3x256xbf16, #tpu.memory_space<vmem>>, %arg6: memref<1x256xf32, #tpu.memory_space<vmem>>, %arg7: memref<256x256xbf16, #tpu.memory_space<vmem>>, %arg8: memref<1x256xf32, #tpu.memory_space<vmem>>, %arg9: memref<256x512xbf16, #tpu.memory_space<vmem>>, %arg10: memref<1x512xf32, #tpu.memory_space<vmem>>, %arg11: memref<16x512xf32, #tpu.memory_space<vmem>>, %arg12: memref<16x512xf32, #tpu.memory_space<vmem>>) attributes {dimension_semantics = [#tpu.dimension_semantics<parallel>, #tpu.dimension_semantics<arbitrary>], iteration_bounds = array<i64: 1, 1>, scalar_prefetch = 0 : i64, scratch_operands = 1 : i64, tpu.core_type = #tpu.core_type<tc>, window_params = [{transform_indices = @transform_0, window_bounds = array<i64: 16, 8, 256>}, {transform_indices = @transform_1, window_bounds = array<i64: 16, 8, 3>}, {pipeline_mode = #tpu.pipeline_mode<synchronous>, transform_indices = @transform_2, window_bounds = array<i64: 256, 256>}, {pipeline_mode = #tpu.pipeline_mode<synchronous>, transform_indices = @transform_3, window_bounds = array<i64: 3, 256>}, {pipeline_mode = #tpu.pipeline_mode<synchronous>, transform_indices = @transform_4, window_bounds = array<i64: 1, 256>}, {pipeline_mode = #tpu.pipeline_mode<synchronous>, transform_indices = @transform_5, window_bounds = array<i64: 256, 256>}, {pipeline_mode = #tpu.pipeline_mode<synchronous>, transform_indices = @transform_6, window_bounds = array<i64: 1, 256>}, {pipeline_mode = #tpu.pipeline_mode<synchronous>, transform_indices = @transform_7, window_bounds = array<i64: 256, 512>}, {pipeline_mode = #tpu.pipeline_mode<synchronous>, transform_indices = @transform_8, window_bounds = array<i64: 1, 512>}, {transform_indices = @transform_9, window_bounds = array<i64: 16, 512>}]} {
    %c0 = arith.constant 0 : index
    %c0_0 = arith.constant 0 : index
    %c0_1 = arith.constant 0 : index
    %0 = vector.load %arg3[%c0, %c0_0, %c0_1] : memref<16x8x3xbf16, #tpu.memory_space<vmem>>, vector<16x8x3xbf16>
    %1 = vector.shape_cast %0 : vector<16x8x3xbf16> to vector<128x3xbf16>
    %c0_2 = arith.constant 0 : index
    %c0_3 = arith.constant 0 : index
    %2 = vector.load %arg5[%c0_2, %c0_3] : memref<3x256xbf16, #tpu.memory_space<vmem>>, vector<3x256xbf16>
    %cst = arith.constant dense<0.000000e+00> : vector<128x256xf32>
    %3 = tpu.matmul %1, %2, %cst {dimension_numbers = #tpu.dot_dimension_numbers<[1], [0], [0], [1], [0, 0, 1, 1], [], []>} : vector<128x3xbf16>, vector<3x256xbf16>, vector<128x256xf32> -> vector<128x256xf32>
    %c0_4 = arith.constant 0 : index
    %c0_5 = arith.constant 0 : index
    %c0_6 = arith.constant 0 : index
    %4 = vector.load %arg2[%c0_4, %c0_5, %c0_6] : memref<16x8x256xbf16, #tpu.memory_space<vmem>>, vector<16x8x256xbf16>
    %5 = vector.shape_cast %4 : vector<16x8x256xbf16> to vector<128x256xbf16>
    %c0_7 = arith.constant 0 : index
    %c0_8 = arith.constant 0 : index
    %6 = vector.load %arg4[%c0_7, %c0_8] : memref<256x256xbf16, #tpu.memory_space<vmem>>, vector<256x256xbf16>
    %cst_9 = arith.constant dense<0.000000e+00> : vector<128x256xf32>
    %7 = tpu.matmul %5, %6, %cst_9 {dimension_numbers = #tpu.dot_dimension_numbers<[1], [0], [0], [1], [0, 0, 1, 1], [], []>} : vector<128x256xbf16>, vector<256x256xbf16>, vector<128x256xf32> -> vector<128x256xf32>
    %8 = arith.addf %3, %7 : vector<128x256xf32>
    %c0_10 = arith.constant 0 : index
    %c0_11 = arith.constant 0 : index
    %9 = vector.load %arg6[%c0_10, %c0_11] : memref<1x256xf32, #tpu.memory_space<vmem>>, vector<1x256xf32>
    %10 = vector.broadcast %9 : vector<1x256xf32> to vector<128x256xf32>
    %11 = arith.addf %8, %10 : vector<128x256xf32>
    %cst_12 = arith.constant 0.000000e+00 : f32
    %12 = vector.broadcast %cst_12 : f32 to vector<128x256xf32>
    %13 = arith.maximumf %11, %12 : vector<128x256xf32>
    %14 = arith.truncf %13 : vector<128x256xf32> to vector<128x256xbf16>
    %c0_13 = arith.constant 0 : index
    %c0_14 = arith.constant 0 : index
    %15 = vector.load %arg7[%c0_13, %c0_14] : memref<256x256xbf16, #tpu.memory_space<vmem>>, vector<256x256xbf16>
    %cst_15 = arith.constant dense<0.000000e+00> : vector<128x256xf32>
    %16 = tpu.matmul %14, %15, %cst_15 {dimension_numbers = #tpu.dot_dimension_numbers<[1], [0], [0], [1], [0, 0, 1, 1], [], []>} : vector<128x256xbf16>, vector<256x256xbf16>, vector<128x256xf32> -> vector<128x256xf32>
    %c0_16 = arith.constant 0 : index
    %c0_17 = arith.constant 0 : index
    %17 = vector.load %arg8[%c0_16, %c0_17] : memref<1x256xf32, #tpu.memory_space<vmem>>, vector<1x256xf32>
    %18 = vector.broadcast %17 : vector<1x256xf32> to vector<128x256xf32>
    %19 = arith.addf %16, %18 : vector<128x256xf32>
    %cst_18 = arith.constant 0.000000e+00 : f32
    %20 = vector.broadcast %cst_18 : f32 to vector<128x256xf32>
    %21 = arith.maximumf %19, %20 : vector<128x256xf32>
    %22 = arith.truncf %21 : vector<128x256xf32> to vector<128x256xbf16>
    %c0_19 = arith.constant 0 : index
    %c0_20 = arith.constant 0 : index
    %23 = vector.load %arg9[%c0_19, %c0_20] : memref<256x512xbf16, #tpu.memory_space<vmem>>, vector<256x512xbf16>
    %cst_21 = arith.constant dense<0.000000e+00> : vector<128x512xf32>
    %24 = tpu.matmul %22, %23, %cst_21 {dimension_numbers = #tpu.dot_dimension_numbers<[1], [0], [0], [1], [0, 0, 1, 1], [], []>} : vector<128x256xbf16>, vector<256x512xbf16>, vector<128x512xf32> -> vector<128x512xf32>
    %25 = vector.shape_cast %24 : vector<128x512xf32> to vector<16x8x512xf32>
    %cst_22 = arith.constant dense<0xFF800000> : vector<16x512xf32>
    %26 = vector.multi_reduction <maximumf>, %25, %cst_22 [1] : vector<16x8x512xf32> to vector<16x512xf32>
    %c0_i32 = arith.constant 0 : i32
    %27 = arith.cmpi eq, %arg1, %c0_i32 : i32
    %28 = arith.extui %27 : i1 to i32
    %c0_i32_23 = arith.constant 0 : i32
    %29 = arith.cmpi ne, %28, %c0_i32_23 : i32
    scf.if %29 {
      %c0_28 = arith.constant 0 : index
      %c0_29 = arith.constant 0 : index
      %36 = vector.load %arg12[%c0_28, %c0_29] : memref<16x512xf32, #tpu.memory_space<vmem>>, vector<16x512xf32>
      tpu.vector_store %arg12[%c0_28, %c0_29], %26 {strides = array<i32>} : memref<16x512xf32, #tpu.memory_space<vmem>>, vector<16x512xf32>,
    } else {
    }
    %c0_i32_24 = arith.constant 0 : i32
    %30 = arith.cmpi sgt, %arg1, %c0_i32_24 : i32
    %31 = arith.extui %30 : i1 to i32
    %c0_i32_25 = arith.constant 0 : i32
    %32 = arith.cmpi ne, %31, %c0_i32_25 : i32
    scf.if %32 {
      %c0_28 = arith.constant 0 : index
      %c0_29 = arith.constant 0 : index
      %36 = vector.load %arg12[%c0_28, %c0_29] : memref<16x512xf32, #tpu.memory_space<vmem>>, vector<16x512xf32>
      %37 = arith.maximumf %36, %26 : vector<16x512xf32>
      %c0_30 = arith.constant 0 : index
      %c0_31 = arith.constant 0 : index
      %38 = vector.load %arg12[%c0_30, %c0_31] : memref<16x512xf32, #tpu.memory_space<vmem>>, vector<16x512xf32>
      tpu.vector_store %arg12[%c0_30, %c0_31], %37 {strides = array<i32>} : memref<16x512xf32, #tpu.memory_space<vmem>>, vector<16x512xf32>,
    } else {
    }
    %c0_i32_26 = arith.constant 0 : i32
    %33 = arith.cmpi eq, %arg1, %c0_i32_26 : i32
    %34 = arith.extui %33 : i1 to i32
    %c0_i32_27 = arith.constant 0 : i32
    %35 = arith.cmpi ne, %34, %c0_i32_27 : i32
    scf.if %35 {
      %c0_28 = arith.constant 0 : index
      %c0_29 = arith.constant 0 : index
      %36 = vector.load %arg12[%c0_28, %c0_29] : memref<16x512xf32, #tpu.memory_space<vmem>>, vector<16x512xf32>
      %c0_30 = arith.constant 0 : index
      %c0_31 = arith.constant 0 : index
      %37 = vector.load %arg10[%c0_30, %c0_31] : memref<1x512xf32, #tpu.memory_space<vmem>>, vector<1x512xf32>
      %38 = vector.broadcast %37 : vector<1x512xf32> to vector<16x512xf32>
      %39 = arith.addf %36, %38 : vector<16x512xf32>
      %cst_32 = arith.constant 0.000000e+00 : f32
      %40 = vector.broadcast %cst_32 : f32 to vector<16x512xf32>
      %41 = arith.maximumf %39, %40 : vector<16x512xf32>
      %c0_33 = arith.constant 0 : index
      %c0_34 = arith.constant 0 : index
      %42 = vector.load %arg11[%c0_33, %c0_34] : memref<16x512xf32, #tpu.memory_space<vmem>>, vector<16x512xf32>
      tpu.vector_store %arg11[%c0_33, %c0_34], %41 {strides = array<i32>} : memref<16x512xf32, #tpu.memory_space<vmem>>, vector<16x512xf32>,
    } else {
    }
    return
  }
  func.func @transform_0(%arg0: i32, %arg1: i32) -> (i32, i32, i32) {
    %c0_i32 = arith.constant 0 : i32
    %c0_i32_0 = arith.constant 0 : i32
    return %arg0, %arg1, %c0_i32 : i32, i32, i32
  }
  func.func @transform_1(%arg0: i32, %arg1: i32) -> (i32, i32, i32) {
    %c0_i32 = arith.constant 0 : i32
    %c0_i32_0 = arith.constant 0 : i32
    return %arg0, %arg1, %c0_i32 : i32, i32, i32
  }
  func.func @transform_2(%arg0: i32, %arg1: i32) -> (i32, i32) {
    %c0_i32 = arith.constant 0 : i32
    %c0_i32_0 = arith.constant 0 : i32
    %c0_i32_1 = arith.constant 0 : i32
    return %c0_i32, %c0_i32_0 : i32, i32
  }
  func.func @transform_3(%arg0: i32, %arg1: i32) -> (i32, i32) {
    %c0_i32 = arith.constant 0 : i32
    %c0_i32_0 = arith.constant 0 : i32
    %c0_i32_1 = arith.constant 0 : i32
    return %c0_i32, %c0_i32_0 : i32, i32
  }
  func.func @transform_4(%arg0: i32, %arg1: i32) -> (i32, i32) {
    %c0_i32 = arith.constant 0 : i32
    %c0_i32_0 = arith.constant 0 : i32
    %c0_i32_1 = arith.constant 0 : i32
    return %c0_i32, %c0_i32_0 : i32, i32
  }
  func.func @transform_5(%arg0: i32, %arg1: i32) -> (i32, i32) {
    %c0_i32 = arith.constant 0 : i32
    %c0_i32_0 = arith.constant 0 : i32
    %c0_i32_1 = arith.constant 0 : i32
    return %c0_i32, %c0_i32_0 : i32, i32
  }
  func.func @transform_6(%arg0: i32, %arg1: i32) -> (i32, i32) {
    %c0_i32 = arith.constant 0 : i32
    %c0_i32_0 = arith.constant 0 : i32
    %c0_i32_1 = arith.constant 0 : i32
    return %c0_i32, %c0_i32_0 : i32, i32
  }
  func.func @transform_7(%arg0: i32, %arg1: i32) -> (i32, i32) {
    %c0_i32 = arith.constant 0 : i32
    %c0_i32_0 = arith.constant 0 : i32
    %c0_i32_1 = arith.constant 0 : i32
    return %c0_i32, %c0_i32_0 : i32, i32
  }
  func.func @transform_8(%arg0: i32, %arg1: i32) -> (i32, i32) {
    %c0_i32 = arith.constant 0 : i32
    %c0_i32_0 = arith.constant 0 : i32
    %c0_i32_1 = arith.constant 0 : i32
    return %c0_i32, %c0_i32_0 : i32, i32
  }
  func.func @transform_9(%arg0: i32, %arg1: i32) -> (i32, i32) {
    %c0_i32 = arith.constant 0 : i32
    %c0_i32_0 = arith.constant 0 : i32
    return %arg0, %c0_i32 : i32, i32
  }
}

</mosaic_0001>

<llo_original>
// kernel: custom-call.22
$region0: #{custom-call.22}
  %s0 = inlined_call_operand.vmem [shape: f32[2,128], index: 0, kind: output, shape index: {}]

// kernel: custom-call.23
$region0: #{custom-call.23}
  %s0 = inlined_call_operand.vmem [shape: f32[2,8], index: 0, kind: output, shape index: {}]

// kernel: pointnet2_based_forward.3
$region0: #{pointnet2_based_forward.3}
  #allocation0 [shape = 'u32[]', space=smem, size = 0x4, offset = 0x4, fixed_abs, tag = 'smem constant byte address 0x4 - core index']
  #allocation1 [shape = 'u32[144,128]{1,0:T(1,128)}', space=vmem, size = 0x12000, scoped, tag = 'internal scratch']
  #allocation2 [shape = 'f32[16,128]{1,0:T(8,128)}', space=vmem, size = 0x2000, scoped, tag = 'scratch operand']
  %s0 = inlined_call_operand.vmem [shape: bf16[16,32,3], index: 0, kind: input, shape index: {}]
  %s1 = inlined_call_operand.vmem [shape: bf16[3,64], index: 1, kind: input, shape index: {}]
  %s2 = inlined_call_operand.vmem [shape: f32[1,64], index: 2, kind: input, shape index: {}]
  %s3 = inlined_call_operand.vmem [shape: bf16[64,64], index: 3, kind: input, shape index: {}]
  %s4 = inlined_call_operand.vmem [shape: f32[1,64], index: 4, kind: input, shape index: {}]
  %s5 = inlined_call_operand.vmem [shape: bf16[64,128], index: 5, kind: input, shape index: {}]
  %s6 = inlined_call_operand.vmem [shape: f32[1,128], index: 6, kind: input, shape index: {}]
  %s7 = inlined_call_operand.vmem [shape: bf16[16,128], index: 7, kind: output, shape index: {}]
  %s8 = sld [smem:[#allocation0]]
  $region50: #{pointnet2_based_forward.3} parent=0
    _
  %s10 = ssub.s32 1, %s8
  %s11 = scalar_select 0, %s10, %s8
  // Predicated region
  $region2: #{pointnet2_based_forward.3} parent=0 // pred_check
    _
  $region3: #{pointnet2_based_forward.3} parent=0 // pred_check_branch
    %13 = sbr.rel (0) target = $region5
  $region4: #{pointnet2_based_forward.3} parent=0 // pred_region
    _
  $region5: #{pointnet2_based_forward.3} parent=0 // pred_fallthru
    _
  // Predicated region
  $region6: #{pointnet2_based_forward.3} parent=0 // pred_check
    _
  $region7: #{pointnet2_based_forward.3} parent=0 // pred_check_branch
    %15 = sbr.rel (0) target = $region9
  $region8: #{pointnet2_based_forward.3} parent=0 // pred_region
    _
  $region9: #{pointnet2_based_forward.3} parent=0 // pred_fallthru
    _
  // Predicated region
  $region10: #{pointnet2_based_forward.3} parent=0 // pred_check
    _
  $region11: #{pointnet2_based_forward.3} parent=0 // pred_check_branch
    %17 = sbr.rel (0) target = $region13
  $region12: #{pointnet2_based_forward.3} parent=0 // pred_region
    _
  $region13: #{pointnet2_based_forward.3} parent=0 // pred_fallthru
    _
  // Predicated region
  $region14: #{pointnet2_based_forward.3} parent=0 // pred_check
    _
  $region15: #{pointnet2_based_forward.3} parent=0 // pred_check_branch
    %19 = sbr.rel (0) target = $region17
  $region16: #{pointnet2_based_forward.3} parent=0 // pred_region
    _
  $region17: #{pointnet2_based_forward.3} parent=0 // pred_fallthru
    _
  // Predicated region
  $region18: #{pointnet2_based_forward.3} parent=0 // pred_check
    _
  $region19: #{pointnet2_based_forward.3} parent=0 // pred_check_branch
    %21 = sbr.rel (0) target = $region21
  $region20: #{pointnet2_based_forward.3} parent=0 // pred_region
    _
  $region21: #{pointnet2_based_forward.3} parent=0 // pred_fallthru
    _
  // Predicated region
  $region22: #{pointnet2_based_forward.3} parent=0 // pred_check
    _
  $region23: #{pointnet2_based_forward.3} parent=0 // pred_check_branch
    %23 = sbr.rel (0) target = $region25
  $region24: #{pointnet2_based_forward.3} parent=0 // pred_region
    _
  $region25: #{pointnet2_based_forward.3} parent=0 // pred_fallthru
    _
  // Predicated region
  $region26: #{pointnet2_based_forward.3} parent=0 // pred_check
    _
  $region27: #{pointnet2_based_forward.3} parent=0 // pred_check_branch
    %25 = sbr.rel (0) target = $region29
  $region28: #{pointnet2_based_forward.3} parent=0 // pred_region
    _
  $region29: #{pointnet2_based_forward.3} parent=0 // pred_fallthru
    _
  %v27 = vld [vmem:[%s0] sm:$0xf]
  %v28 = vld [vmem:[%s0 + $0x4] sm:$0xf]
  %v29 = vld [vmem:[%s0 + $0x8] sm:$0xf]
  %v30 = vld [vmem:[%s0 + $0xc] sm:$0xf]
  %v31 = vld [vmem:[%s0 + $0x10] sm:$0xf]
  %v32 = vld [vmem:[%s0 + $0x14] sm:$0xf]
  %v33 = vld [vmem:[%s0 + $0x18] sm:$0xf]
  %v34 = vld [vmem:[%s0 + $0x1c] sm:$0xf]
  %v35 = vld [vmem:[%s0 + $0x20] sm:$0xf]
  %v36 = vld [vmem:[%s0 + $0x24] sm:$0xf]
  %v37 = vld [vmem:[%s0 + $0x28] sm:$0xf]
  %v38 = vld [vmem:[%s0 + $0x2c] sm:$0xf]
  %v39 = vld [vmem:[%s0 + $0x30] sm:$0xf]
  %v40 = vld [vmem:[%s0 + $0x34] sm:$0xf]
  %v41 = vld [vmem:[%s0 + $0x38] sm:$0xf]
  %v42 = vld [vmem:[%s0 + $0x3c] sm:$0xf]
  %v43 = vld [vmem:[%s0 + $0x40] sm:$0xf]
  %v44 = vld [vmem:[%s0 + $0x44] sm:$0xf]
  %v45 = vld [vmem:[%s0 + $0x48] sm:$0xf]
  %v46 = vld [vmem:[%s0 + $0x4c] sm:$0xf]
  %v47 = vld [vmem:[%s0 + $0x50] sm:$0xf]
  %v48 = vld [vmem:[%s0 + $0x54] sm:$0xf]
  %v49 = vld [vmem:[%s0 + $0x58] sm:$0xf]
  %v50 = vld [vmem:[%s0 + $0x5c] sm:$0xf]
  %v51 = vld [vmem:[%s0 + $0x60] sm:$0xf]
  %v52 = vld [vmem:[%s0 + $0x64] sm:$0xf]
  %v53 = vld [vmem:[%s0 + $0x68] sm:$0xf]
  %v54 = vld [vmem:[%s0 + $0x6c] sm:$0xf]
  %v55 = vld [vmem:[%s0 + $0x70] sm:$0xf]
  %v56 = vld [vmem:[%s0 + $0x74] sm:$0xf]
  %v57 = vld [vmem:[%s0 + $0x78] sm:$0xf]
  %v58 = vld [vmem:[%s0 + $0x7c] sm:$0xf]
  %v59 = vld [vmem:[%s0 + $0x80] sm:$0xf]
  %v60 = vld [vmem:[%s0 + $0x84] sm:$0xf]
  %v61 = vld [vmem:[%s0 + $0x88] sm:$0xf]
  %v62 = vld [vmem:[%s0 + $0x8c] sm:$0xf]
  %v63 = vld [vmem:[%s0 + $0x90] sm:$0xf]
  %v64 = vld [vmem:[%s0 + $0x94] sm:$0xf]
  %v65 = vld [vmem:[%s0 + $0x98] sm:$0xf]
  %v66 = vld [vmem:[%s0 + $0x9c] sm:$0xf]
  %v67 = vld [vmem:[%s0 + $0xa0] sm:$0xf]
  %v68 = vld [vmem:[%s0 + $0xa4] sm:$0xf]
  %v69 = vld [vmem:[%s0 + $0xa8] sm:$0xf]
  %v70 = vld [vmem:[%s0 + $0xac] sm:$0xf]
  %v71 = vld [vmem:[%s0 + $0xb0] sm:$0xf]
  %v72 = vld [vmem:[%s0 + $0xb4] sm:$0xf]
  %v73 = vld [vmem:[%s0 + $0xb8] sm:$0xf]
  %v74 = vld [vmem:[%s0 + $0xbc] sm:$0xf]
  %v75 = vld [vmem:[%s0 + $0xc0] sm:$0xf]
  %v76 = vld [vmem:[%s0 + $0xc4] sm:$0xf]
  %v77 = vld [vmem:[%s0 + $0xc8] sm:$0xf]
  %v78 = vld [vmem:[%s0 + $0xcc] sm:$0xf]
  %v79 = vld [vmem:[%s0 + $0xd0] sm:$0xf]
  %v80 = vld [vmem:[%s0 + $0xd4] sm:$0xf]
  %v81 = vld [vmem:[%s0 + $0xd8] sm:$0xf]
  %v82 = vld [vmem:[%s0 + $0xdc] sm:$0xf]
  %v83 = vld [vmem:[%s0 + $0xe0] sm:$0xf]
  %v84 = vld [vmem:[%s0 + $0xe4] sm:$0xf]
  %v85 = vld [vmem:[%s0 + $0xe8] sm:$0xf]
  %v86 = vld [vmem:[%s0 + $0xec] sm:$0xf]
  %v87 = vld [vmem:[%s0 + $0xf0] sm:$0xf]
  %v88 = vld [vmem:[%s0 + $0xf4] sm:$0xf]
  %v89 = vld [vmem:[%s0 + $0xf8] sm:$0xf]
  %v90 = vld [vmem:[%s0 + $0xfc] sm:$0xf]
  %v91 = vld [vmem:[%s1] sm:$0x3]
  %v92 = vld [vmem:[%s2] sm:$0x1]
  %v94 = vlaneseq
  %v95 = vshrl.u32 %v94, 7
  %v96 = vsub.s32 0, %v95
  %v97 = vrot.slane %v92, %v96
  %v163 = vunpack.c.l.b16 %v27
  %v164 = vunpack.c.l.b16 %v28
  %v165 = vunpack.c.l.b16 %v29
  %v166 = vunpack.c.l.b16 %v30
  %v167 = vunpack.c.l.b16 %v31
  %v168 = vunpack.c.l.b16 %v32
  %v169 = vunpack.c.l.b16 %v33
  %v170 = vunpack.c.l.b16 %v34
  %v171 = vunpack.c.l.b16 %v35
  %v172 = vunpack.c.l.b16 %v36
  %v173 = vunpack.c.l.b16 %v37
  %v174 = vunpack.c.l.b16 %v38
  %v175 = vunpack.c.l.b16 %v39
  %v176 = vunpack.c.l.b16 %v40
  %v177 = vunpack.c.l.b16 %v41
  %v178 = vunpack.c.l.b16 %v42
  %v179 = vunpack.c.l.b16 %v43
  %v180 = vunpack.c.l.b16 %v44
  %v181 = vunpack.c.l.b16 %v45
  %v182 = vunpack.c.l.b16 %v46
  %v183 = vunpack.c.l.b16 %v47
  %v184 = vunpack.c.l.b16 %v48
  %v185 = vunpack.c.l.b16 %v49
  %v186 = vunpack.c.l.b16 %v50
  %v187 = vunpack.c.l.b16 %v51
  %v188 = vunpack.c.l.b16 %v52
  %v189 = vunpack.c.l.b16 %v53
  %v190 = vunpack.c.l.b16 %v54
  %v191 = vunpack.c.l.b16 %v55
  %v192 = vunpack.c.l.b16 %v56
  %v193 = vunpack.c.l.b16 %v57
  %v194 = vunpack.c.l.b16 %v58
  %v195 = vunpack.c.l.b16 %v59
  %v196 = vunpack.c.l.b16 %v60
  %v197 = vunpack.c.l.b16 %v61
  %v198 = vunpack.c.l.b16 %v62
  %v199 = vunpack.c.l.b16 %v63
  %v200 = vunpack.c.l.b16 %v64
  %v201 = vunpack.c.l.b16 %v65
  %v202 = vunpack.c.l.b16 %v66
  %v203 = vunpack.c.l.b16 %v67
  %v204 = vunpack.c.l.b16 %v68
  %v205 = vunpack.c.l.b16 %v69
  %v206 = vunpack.c.l.b16 %v70
  %v207 = vunpack.c.l.b16 %v71
  %v208 = vunpack.c.l.b16 %v72
  %v209 = vunpack.c.l.b16 %v73
  %v210 = vunpack.c.l.b16 %v74
  %v211 = vunpack.c.l.b16 %v75
  %v212 = vunpack.c.l.b16 %v76
  %v213 = vunpack.c.l.b16 %v77
  %v214 = vunpack.c.l.b16 %v78
  %v215 = vunpack.c.l.b16 %v79
  %v216 = vunpack.c.l.b16 %v80
  %v217 = vunpack.c.l.b16 %v81
  %v218 = vunpack.c.l.b16 %v82
  %v219 = vunpack.c.l.b16 %v83
  %v220 = vunpack.c.l.b16 %v84
  %v221 = vunpack.c.l.b16 %v85
  %v222 = vunpack.c.l.b16 %v86
  %v223 = vunpack.c.l.b16 %v87
  %v224 = vunpack.c.l.b16 %v88
  %v225 = vunpack.c.l.b16 %v89
  %v226 = vunpack.c.l.b16 %v90
  %v227 = vpack.c.b16 %v164, %v163
  %v228 = vpack.c.b16 %v166, %v165
  %v229 = vpack.c.b16 %v168, %v167
  %v230 = vpack.c.b16 %v170, %v169
  %v231 = vpack.c.b16 %v172, %v171
  %v232 = vpack.c.b16 %v174, %v173
  %v233 = vpack.c.b16 %v176, %v175
  %v234 = vpack.c.b16 %v178, %v177
  %v235 = vpack.c.b16 %v180, %v179
  %v236 = vpack.c.b16 %v182, %v181
  %v237 = vpack.c.b16 %v184, %v183
  %v238 = vpack.c.b16 %v186, %v185
  %v239 = vpack.c.b16 %v188, %v187
  %v240 = vpack.c.b16 %v190, %v189
  %v241 = vpack.c.b16 %v192, %v191
  %v242 = vpack.c.b16 %v194, %v193
  %v243 = vpack.c.b16 %v196, %v195
  %v244 = vpack.c.b16 %v198, %v197
  %v245 = vpack.c.b16 %v200, %v199
  %v246 = vpack.c.b16 %v202, %v201
  %v247 = vpack.c.b16 %v204, %v203
  %v248 = vpack.c.b16 %v206, %v205
  %v249 = vpack.c.b16 %v208, %v207
  %v250 = vpack.c.b16 %v210, %v209
  %v251 = vpack.c.b16 %v212, %v211
  %v252 = vpack.c.b16 %v214, %v213
  %v253 = vpack.c.b16 %v216, %v215
  %v254 = vpack.c.b16 %v218, %v217
  %v255 = vpack.c.b16 %v220, %v219
  %v256 = vpack.c.b16 %v222, %v221
  %v257 = vpack.c.b16 %v224, %v223
  %v258 = vpack.c.b16 %v226, %v225
  %vm259 = vcmask 23552
  %v261 = vsel %vm259, %v227, 0
  %v264 = vsel %vm259, %v228, 0
  %v267 = vsel %vm259, %v229, 0
  %v270 = vsel %vm259, %v230, 0
  %v273 = vsel %vm259, %v231, 0
  %v276 = vsel %vm259, %v232, 0
  %v279 = vsel %vm259, %v233, 0
  %v282 = vsel %vm259, %v234, 0
  %v285 = vsel %vm259, %v235, 0
  %v288 = vsel %vm259, %v236, 0
  %v291 = vsel %vm259, %v237, 0
  %v294 = vsel %vm259, %v238, 0
  %v297 = vsel %vm259, %v239, 0
  %v300 = vsel %vm259, %v240, 0
  %v303 = vsel %vm259, %v241, 0
  %v306 = vsel %vm259, %v242, 0
  %v309 = vsel %vm259, %v243, 0
  %v312 = vsel %vm259, %v244, 0
  %v315 = vsel %vm259, %v245, 0
  %v318 = vsel %vm259, %v246, 0
  %v321 = vsel %vm259, %v247, 0
  %v324 = vsel %vm259, %v248, 0
  %v327 = vsel %vm259, %v249, 0
  %v330 = vsel %vm259, %v250, 0
  %v333 = vsel %vm259, %v251, 0
  %v336 = vsel %vm259, %v252, 0
  %v339 = vsel %vm259, %v253, 0
  %v342 = vsel %vm259, %v254, 0
  %v345 = vsel %vm259, %v255, 0
  %v348 = vsel %vm259, %v256, 0
  %v351 = vsel %vm259, %v257, 0
  %v354 = vsel %vm259, %v258, 0
  %vm356 = vcmask 1040384
  %vm357 = vcmask 1041408
  %v358 = vsel %vm356, 4294967295, 65535
  %v359 = vsel %vm357, %v358, 0
  %v361 = vand.u32 %v91, %v359
  %363 = vmatprep.subr.bf16.mxu0 0
  %364 = vmatpush1.bf16.msra.mxu0 0
  %365 = vmatprep.subr.bf16.mxu0 0
  %366 = vmatpush1.bf16.msra.mxu0 0
  %367 = vmatprep.subr.bf16.mxu0 0
  %368 = vmatpush1.bf16.msra.mxu0 0
  %369 = vmatprep.subr.bf16.mxu0 0
  %370 = vmatpush1.bf16.msra.mxu0 0
  %371 = vmatprep.subr.bf16.mxu0 0
  %372 = vmatpush1.bf16.msra.mxu0 0
  %373 = vmatprep.subr.bf16.mxu0 0
  %374 = vmatpush1.bf16.msra.mxu0 0
  %375 = vmatprep.subr.bf16.mxu0 0
  %376 = vmatpush1.bf16.msra.mxu0 0
  %377 = vmatprep.subr.bf16.mxu0 0
  %378 = vmatpush1.bf16.msra.mxu0 %v361
  %379 = vmatprep.subr.bf16.mxu0 0
  %380 = vmatpush2.bf16.msra.mxu0 0
  %381 = vmatprep.subr.bf16.mxu0 0
  %382 = vmatpush2.bf16.msra.mxu0 0
  %383 = vmatprep.subr.bf16.mxu0 0
  %384 = vmatpush2.bf16.msra.mxu0 0
  %385 = vmatprep.subr.bf16.mxu0 0
  %386 = vmatpush2.bf16.msra.mxu0 0
  %387 = vmatprep.subr.bf16.mxu0 0
  %388 = vmatpush2.bf16.msra.mxu0 0
  %389 = vmatprep.subr.bf16.mxu0 0
  %390 = vmatpush2.bf16.msra.mxu0 0
  %391 = vmatprep.subr.bf16.mxu0 0
  %392 = vmatpush2.bf16.msra.mxu0 0
  %393 = vmatprep.subr.bf16.mxu0 0
  %394 = vmatpush2.bf16.msra.mxu0 0
  %395 = vmatprep.mubr.bf16.mxu0 0
  %396 = vmatmul.mubr.bf16.gmra.mxu0 %v261
  %v397 = vpop.f32.mrf.mxu0
  %v398 = vadd.f32 %v97, %v397
  %v399 = vpop.f32.mrf.mxu0
  %v400 = vpop.f32.mrf.mxu0
  %v401 = vadd.f32 %v97, %v400
  %v402 = vpop.f32.mrf.mxu0
  %403 = vmatprep.mubr.bf16.mxu0 0
  %404 = vmatmul.mubr.bf16.gmra.mxu0 %v264
  %v405 = vpop.f32.mrf.mxu0
  %v406 = vadd.f32 %v97, %v405
  %v407 = vpop.f32.mrf.mxu0
  %v408 = vpop.f32.mrf.mxu0
  %v409 = vadd.f32 %v97, %v408
  %v410 = vpop.f32.mrf.mxu0
  %411 = vmatprep.mubr.bf16.mxu0 0
  %412 = vmatmul.mubr.bf16.gmra.mxu0 %v267
  %v413 = vpop.f32.mrf.mxu0
  %v414 = vadd.f32 %v97, %v413
  %v415 = vpop.f32.mrf.mxu0
  %v416 = vpop.f32.mrf.mxu0
  %v417 = vadd.f32 %v97, %v416
  %v418 = vpop.f32.mrf.mxu0
  %419 = vmatprep.mubr.bf16.mxu0 0
  %420 = vmatmul.mubr.bf16.gmra.mxu0 %v270
  %v421 = vpop.f32.mrf.mxu0
  %v422 = vadd.f32 %v97, %v421
  %v423 = vpop.f32.mrf.mxu0
  %v424 = vpop.f32.mrf.mxu0
  %v425 = vadd.f32 %v97, %v424
  %v426 = vpop.f32.mrf.mxu0
  %427 = vmatprep.mubr.bf16.mxu0 0
  %428 = vmatmul.mubr.bf16.gmra.mxu0 %v273
  %v429 = vpop.f32.mrf.mxu0
  %v430 = vadd.f32 %v97, %v429
  %v431 = vpop.f32.mrf.mxu0
  %v432 = vpop.f32.mrf.mxu0
  %v433 = vadd.f32 %v97, %v432
  %v434 = vpop.f32.mrf.mxu0
  %435 = vmatprep.mubr.bf16.mxu0 0
  %436 = vmatmul.mubr.bf16.gmra.mxu0 %v276
  %v437 = vpop.f32.mrf.mxu0
  %v438 = vadd.f32 %v97, %v437
  %v439 = vpop.f32.mrf.mxu0
  %v440 = vpop.f32.mrf.mxu0
  %v441 = vadd.f32 %v97, %v440
  %v442 = vpop.f32.mrf.mxu0
  %443 = vmatprep.mubr.bf16.mxu0 0
  %444 = vmatmul.mubr.bf16.gmra.mxu0 %v279
  %v445 = vpop.f32.mrf.mxu0
  %v446 = vadd.f32 %v97, %v445
  %v447 = vpop.f32.mrf.mxu0
  %v448 = vpop.f32.mrf.mxu0
  %v449 = vadd.f32 %v97, %v448
  %v450 = vpop.f32.mrf.mxu0
  %451 = vmatprep.mubr.bf16.mxu0 0
  %452 = vmatmul.mubr.bf16.gmra.mxu0 %v282
  %v453 = vpop.f32.mrf.mxu0
  %v454 = vadd.f32 %v97, %v453
  %v455 = vpop.f32.mrf.mxu0
  %v456 = vpop.f32.mrf.mxu0
  %v457 = vadd.f32 %v97, %v456
  %v458 = vpop.f32.mrf.mxu0
  %459 = vmatprep.mubr.bf16.mxu0 0
  %460 = vmatmul.mubr.bf16.gmra.mxu0 %v285
  %v461 = vpop.f32.mrf.mxu0
  %v462 = vadd.f32 %v97, %v461
  %v463 = vpop.f32.mrf.mxu0
  %v464 = vpop.f32.mrf.mxu0
  %v465 = vadd.f32 %v97, %v464
  %v466 = vpop.f32.mrf.mxu0
  %467 = vmatprep.mubr.bf16.mxu0 0
  %468 = vmatmul.mubr.bf16.gmra.mxu0 %v288
  %v469 = vpop.f32.mrf.mxu0
  %v470 = vadd.f32 %v97, %v469
  %v471 = vpop.f32.mrf.mxu0
  %v472 = vpop.f32.mrf.mxu0
  %v473 = vadd.f32 %v97, %v472
  %v474 = vpop.f32.mrf.mxu0
  %475 = vmatprep.mubr.bf16.mxu0 0
  %476 = vmatmul.mubr.bf16.gmra.mxu0 %v291
  %v477 = vpop.f32.mrf.mxu0
  %v478 = vadd.f32 %v97, %v477
  %v479 = vpop.f32.mrf.mxu0
  %v480 = vpop.f32.mrf.mxu0
  %v481 = vadd.f32 %v97, %v480
  %v482 = vpop.f32.mrf.mxu0
  %483 = vmatprep.mubr.bf16.mxu0 0
  %484 = vmatmul.mubr.bf16.gmra.mxu0 %v294
  %v485 = vpop.f32.mrf.mxu0
  %v486 = vadd.f32 %v97, %v485
  %v487 = vpop.f32.mrf.mxu0
  %v488 = vpop.f32.mrf.mxu0
  %v489 = vadd.f32 %v97, %v488
  %v490 = vpop.f32.mrf.mxu0
  %491 = vmatprep.mubr.bf16.mxu0 0
  %492 = vmatmul.mubr.bf16.gmra.mxu0 %v297
  %v493 = vpop.f32.mrf.mxu0
  %v494 = vadd.f32 %v97, %v493
  %v495 = vpop.f32.mrf.mxu0
  %v496 = vpop.f32.mrf.mxu0
  %v497 = vadd.f32 %v97, %v496
  %v498 = vpop.f32.mrf.mxu0
  %499 = vmatprep.mubr.bf16.mxu0 0
  %500 = vmatmul.mubr.bf16.gmra.mxu0 %v300
  %v501 = vpop.f32.mrf.mxu0
  %v502 = vadd.f32 %v97, %v501
  %v503 = vpop.f32.mrf.mxu0
  %v504 = vpop.f32.mrf.mxu0
  %v505 = vadd.f32 %v97, %v504
  %v506 = vpop.f32.mrf.mxu0
  %507 = vmatprep.mubr.bf16.mxu0 0
  %508 = vmatmul.mubr.bf16.gmra.mxu0 %v303
  %v509 = vpop.f32.mrf.mxu0
  %v510 = vadd.f32 %v97, %v509
  %v511 = vpop.f32.mrf.mxu0
  %v512 = vpop.f32.mrf.mxu0
  %v513 = vadd.f32 %v97, %v512
  %v514 = vpop.f32.mrf.mxu0
  %515 = vmatprep.mubr.bf16.mxu0 0
  %516 = vmatmul.mubr.bf16.gmra.mxu0 %v306
  %v517 = vpop.f32.mrf.mxu0
  %v518 = vadd.f32 %v97, %v517
  %v519 = vpop.f32.mrf.mxu0
  %v520 = vpop.f32.mrf.mxu0
  %v521 = vadd.f32 %v97, %v520
  %v522 = vpop.f32.mrf.mxu0
  %523 = vmatprep.mubr.bf16.mxu0 0
  %524 = vmatmul.mubr.bf16.gmra.mxu0 %v309
  %v525 = vpop.f32.mrf.mxu0
  %v526 = vadd.f32 %v97, %v525
  %v527 = vpop.f32.mrf.mxu0
  %v528 = vpop.f32.mrf.mxu0
  %v529 = vadd.f32 %v97, %v528
  %v530 = vpop.f32.mrf.mxu0
  %531 = vmatprep.mubr.bf16.mxu0 0
  %532 = vmatmul.mubr.bf16.gmra.mxu0 %v312
  %v533 = vpop.f32.mrf.mxu0
  %v534 = vadd.f32 %v97, %v533
  %v535 = vpop.f32.mrf.mxu0
  %v536 = vpop.f32.mrf.mxu0
  %v537 = vadd.f32 %v97, %v536
  %v538 = vpop.f32.mrf.mxu0
  %539 = vmatprep.mubr.bf16.mxu0 0
  %540 = vmatmul.mubr.bf16.gmra.mxu0 %v315
  %v541 = vpop.f32.mrf.mxu0
  %v542 = vadd.f32 %v97, %v541
  %v543 = vpop.f32.mrf.mxu0
  %v544 = vpop.f32.mrf.mxu0
  %v545 = vadd.f32 %v97, %v544
  %v546 = vpop.f32.mrf.mxu0
  %547 = vmatprep.mubr.bf16.mxu0 0
  %548 = vmatmul.mubr.bf16.gmra.mxu0 %v318
  %v549 = vpop.f32.mrf.mxu0
  %v550 = vadd.f32 %v97, %v549
  %v551 = vpop.f32.mrf.mxu0
  %v552 = vpop.f32.mrf.mxu0
  %v553 = vadd.f32 %v97, %v552
  %v554 = vpop.f32.mrf.mxu0
  %555 = vmatprep.mubr.bf16.mxu0 0
  %556 = vmatmul.mubr.bf16.gmra.mxu0 %v321
  %v557 = vpop.f32.mrf.mxu0
  %v558 = vadd.f32 %v97, %v557
  %v559 = vpop.f32.mrf.mxu0
  %v560 = vpop.f32.mrf.mxu0
  %v561 = vadd.f32 %v97, %v560
  %v562 = vpop.f32.mrf.mxu0
  %563 = vmatprep.mubr.bf16.mxu0 0
  %564 = vmatmul.mubr.bf16.gmra.mxu0 %v324
  %v565 = vpop.f32.mrf.mxu0
  %v566 = vadd.f32 %v97, %v565
  %v567 = vpop.f32.mrf.mxu0
  %v568 = vpop.f32.mrf.mxu0
  %v569 = vadd.f32 %v97, %v568
  %v570 = vpop.f32.mrf.mxu0
  %571 = vmatprep.mubr.bf16.mxu0 0
  %572 = vmatmul.mubr.bf16.gmra.mxu0 %v327
  %v573 = vpop.f32.mrf.mxu0
  %v574 = vadd.f32 %v97, %v573
  %v575 = vpop.f32.mrf.mxu0
  %v576 = vpop.f32.mrf.mxu0
  %v577 = vadd.f32 %v97, %v576
  %v578 = vpop.f32.mrf.mxu0
  %579 = vmatprep.mubr.bf16.mxu0 0
  %580 = vmatmul.mubr.bf16.gmra.mxu0 %v330
  %v581 = vpop.f32.mrf.mxu0
  %v582 = vadd.f32 %v97, %v581
  %v583 = vpop.f32.mrf.mxu0
  %v584 = vpop.f32.mrf.mxu0
  %v585 = vadd.f32 %v97, %v584
  %v586 = vpop.f32.mrf.mxu0
  %587 = vmatprep.mubr.bf16.mxu0 0
  %588 = vmatmul.mubr.bf16.gmra.mxu0 %v333
  %v589 = vpop.f32.mrf.mxu0
  %v590 = vadd.f32 %v97, %v589
  %v591 = vpop.f32.mrf.mxu0
  %v592 = vpop.f32.mrf.mxu0
  %v593 = vadd.f32 %v97, %v592
  %v594 = vpop.f32.mrf.mxu0
  %595 = vmatprep.mubr.bf16.mxu0 0
  %596 = vmatmul.mubr.bf16.gmra.mxu0 %v336
  %v597 = vpop.f32.mrf.mxu0
  %v598 = vadd.f32 %v97, %v597
  %v599 = vpop.f32.mrf.mxu0
  %v600 = vpop.f32.mrf.mxu0
  %v601 = vadd.f32 %v97, %v600
  %v602 = vpop.f32.mrf.mxu0
  %603 = vmatprep.mubr.bf16.mxu0 0
  %604 = vmatmul.mubr.bf16.gmra.mxu0 %v339
  %v605 = vpop.f32.mrf.mxu0
  %v606 = vadd.f32 %v97, %v605
  %v607 = vpop.f32.mrf.mxu0
  %v608 = vpop.f32.mrf.mxu0
  %v609 = vadd.f32 %v97, %v608
  %v610 = vpop.f32.mrf.mxu0
  %611 = vmatprep.mubr.bf16.mxu0 0
  %612 = vmatmul.mubr.bf16.gmra.mxu0 %v342
  %v613 = vpop.f32.mrf.mxu0
  %v614 = vadd.f32 %v97, %v613
  %v615 = vpop.f32.mrf.mxu0
  %v616 = vpop.f32.mrf.mxu0
  %v617 = vadd.f32 %v97, %v616
  %v618 = vpop.f32.mrf.mxu0
  %619 = vmatprep.mubr.bf16.mxu0 0
  %620 = vmatmul.mubr.bf16.gmra.mxu0 %v345
  %v621 = vpop.f32.mrf.mxu0
  %v622 = vadd.f32 %v97, %v621
  %v623 = vpop.f32.mrf.mxu0
  %v624 = vpop.f32.mrf.mxu0
  %v625 = vadd.f32 %v97, %v624
  %v626 = vpop.f32.mrf.mxu0
  %627 = vmatprep.mubr.bf16.mxu0 0
  %628 = vmatmul.mubr.bf16.gmra.mxu0 %v348
  %v629 = vpop.f32.mrf.mxu0
  %v630 = vadd.f32 %v97, %v629
  %v631 = vpop.f32.mrf.mxu0
  %v632 = vpop.f32.mrf.mxu0
  %v633 = vadd.f32 %v97, %v632
  %v634 = vpop.f32.mrf.mxu0
  %635 = vmatprep.mubr.bf16.mxu0 0
  %636 = vmatmul.mubr.bf16.gmra.mxu0 %v351
  %v637 = vpop.f32.mrf.mxu0
  %v638 = vadd.f32 %v97, %v637
  %v639 = vpop.f32.mrf.mxu0
  %v640 = vpop.f32.mrf.mxu0
  %v641 = vadd.f32 %v97, %v640
  %v642 = vpop.f32.mrf.mxu0
  %643 = vmatprep.mubr.bf16.mxu0 0
  %644 = vmatmul.mubr.bf16.gmra.mxu0 %v354
  %v645 = vpop.f32.mrf.mxu0
  %v646 = vadd.f32 %v97, %v645
  %v647 = vpop.f32.mrf.mxu0
  %v648 = vpop.f32.mrf.mxu0
  %v649 = vadd.f32 %v97, %v648
  %v650 = vpop.f32.mrf.mxu0
  %651 = vdwg.mxu0
  %v652 = vmax.f32 %v398, 0.0
  %v653 = vmax.f32 %v401, 0.0
  %v654 = vmax.f32 %v406, 0.0
  %v655 = vmax.f32 %v409, 0.0
  %v656 = vmax.f32 %v414, 0.0
  %v657 = vmax.f32 %v417, 0.0
  %v658 = vmax.f32 %v422, 0.0
  %v659 = vmax.f32 %v425, 0.0
  %v660 = vmax.f32 %v430, 0.0
  %v661 = vmax.f32 %v433, 0.0
  %v662 = vmax.f32 %v438, 0.0
  %v663 = vmax.f32 %v441, 0.0
  %v664 = vmax.f32 %v446, 0.0
  %v665 = vmax.f32 %v449, 0.0
  %v666 = vmax.f32 %v454, 0.0
  %v667 = vmax.f32 %v457, 0.0
  %v668 = vmax.f32 %v462, 0.0
  %v669 = vmax.f32 %v465, 0.0
  %v670 = vmax.f32 %v470, 0.0
  %v671 = vmax.f32 %v473, 0.0
  %v672 = vmax.f32 %v478, 0.0
  %v673 = vmax.f32 %v481, 0.0
  %v674 = vmax.f32 %v486, 0.0
  %v675 = vmax.f32 %v489, 0.0
  %v676 = vmax.f32 %v494, 0.0
  %v677 = vmax.f32 %v497, 0.0
  %v678 = vmax.f32 %v502, 0.0
  %v679 = vmax.f32 %v505, 0.0
  %v680 = vmax.f32 %v510, 0.0
  %v681 = vmax.f32 %v513, 0.0
  %v682 = vmax.f32 %v518, 0.0
  %v683 = vmax.f32 %v521, 0.0
  %v684 = vmax.f32 %v526, 0.0
  %v685 = vmax.f32 %v529, 0.0
  %v686 = vmax.f32 %v534, 0.0
  %v687 = vmax.f32 %v537, 0.0
  %v688 = vmax.f32 %v542, 0.0
  %v689 = vmax.f32 %v545, 0.0
  %v690 = vmax.f32 %v550, 0.0
  %v691 = vmax.f32 %v553, 0.0
  %v692 = vmax.f32 %v558, 0.0
  %v693 = vmax.f32 %v561, 0.0
  %v694 = vmax.f32 %v566, 0.0
  %v695 = vmax.f32 %v569, 0.0
  %v696 = vmax.f32 %v574, 0.0
  %v697 = vmax.f32 %v577, 0.0
  %v698 = vmax.f32 %v582, 0.0
  %v699 = vmax.f32 %v585, 0.0
  %v700 = vmax.f32 %v590, 0.0
  %v701 = vmax.f32 %v593, 0.0
  %v702 = vmax.f32 %v598, 0.0
  %v703 = vmax.f32 %v601, 0.0
  %v704 = vmax.f32 %v606, 0.0
  %v705 = vmax.f32 %v609, 0.0
  %v706 = vmax.f32 %v614, 0.0
  %v707 = vmax.f32 %v617, 0.0
  %v708 = vmax.f32 %v622, 0.0
  %v709 = vmax.f32 %v625, 0.0
  %v710 = vmax.f32 %v630, 0.0
  %v711 = vmax.f32 %v633, 0.0
  %v712 = vmax.f32 %v638, 0.0
  %v713 = vmax.f32 %v641, 0.0
  %v714 = vmax.f32 %v646, 0.0
  %v715 = vmax.f32 %v649, 0.0
  %v716 = vpack.c.bf16 %v653, %v652
  %v717 = vpack.c.bf16 %v655, %v654
  %v718 = vpack.c.bf16 %v657, %v656
  %v719 = vpack.c.bf16 %v659, %v658
  %v720 = vpack.c.bf16 %v661, %v660
  %v721 = vpack.c.bf16 %v663, %v662
  %v722 = vpack.c.bf16 %v665, %v664
  %v723 = vpack.c.bf16 %v667, %v666
  %v724 = vpack.c.bf16 %v669, %v668
  %v725 = vpack.c.bf16 %v671, %v670
  %v726 = vpack.c.bf16 %v673, %v672
  %v727 = vpack.c.bf16 %v675, %v674
  %v728 = vpack.c.bf16 %v677, %v676
  %v729 = vpack.c.bf16 %v679, %v678
  %v730 = vpack.c.bf16 %v681, %v680
  %v731 = vpack.c.bf16 %v683, %v682
  %v732 = vpack.c.bf16 %v685, %v684
  %v733 = vpack.c.bf16 %v687, %v686
  %v734 = vpack.c.bf16 %v689, %v688
  %v735 = vpack.c.bf16 %v691, %v690
  %v736 = vpack.c.bf16 %v693, %v692
  %v737 = vpack.c.bf16 %v695, %v694
  %v738 = vpack.c.bf16 %v697, %v696
  %v739 = vpack.c.bf16 %v699, %v698
  %v740 = vpack.c.bf16 %v701, %v700
  %v741 = vpack.c.bf16 %v703, %v702
  %v742 = vpack.c.bf16 %v705, %v704
  %v743 = vpack.c.bf16 %v707, %v706
  %v744 = vpack.c.bf16 %v709, %v708
  %v745 = vpack.c.bf16 %v711, %v710
  %v746 = vpack.c.bf16 %v713, %v712
  %v747 = vpack.c.bf16 %v715, %v714
  %v748 = vld [vmem:[%s3] sm:$0xf]
  %v749 = vld [vmem:[%s3 + $0x4] sm:$0xf]
  %v750 = vld [vmem:[%s3 + $0x8] sm:$0xf]
  %v751 = vld [vmem:[%s3 + $0xc] sm:$0xf]
  %v752 = vld [vmem:[%s3 + $0x10] sm:$0xf]
  %v753 = vld [vmem:[%s3 + $0x14] sm:$0xf]
  %v754 = vld [vmem:[%s3 + $0x18] sm:$0xf]
  %v755 = vld [vmem:[%s3 + $0x1c] sm:$0xf]
  %v756 = vld [vmem:[%s4] sm:$0x1]
  %v758 = vlaneseq
  %v759 = vshrl.u32 %v758, 7
  %v760 = vsub.s32 0, %v759
  %v761 = vrot.slane %v756, %v760
  %v771 = vunpack.c.l.b16 %v748
  %v772 = vunpack.c.l.b16 %v749
  %v773 = vunpack.c.l.b16 %v750
  %v774 = vunpack.c.l.b16 %v751
  %v775 = vunpack.c.l.b16 %v752
  %v776 = vunpack.c.l.b16 %v753
  %v777 = vunpack.c.l.b16 %v754
  %v778 = vunpack.c.l.b16 %v755
  %v779 = vpack.c.b16 %v772, %v771
  %v780 = vpack.c.b16 %v774, %v773
  %v781 = vpack.c.b16 %v776, %v775
  %v782 = vpack.c.b16 %v778, %v777
  %vm787 = vcmask 523264
  %v789 = vsel %vm787, %v716, 0
  %v792 = vsel %vm787, %v717, 0
  %v795 = vsel %vm787, %v718, 0
  %v798 = vsel %vm787, %v719, 0
  %v801 = vsel %vm787, %v720, 0
  %v804 = vsel %vm787, %v721, 0
  %v807 = vsel %vm787, %v722, 0
  %v810 = vsel %vm787, %v723, 0
  %v813 = vsel %vm787, %v724, 0
  %v816 = vsel %vm787, %v725, 0
  %v819 = vsel %vm787, %v726, 0
  %v822 = vsel %vm787, %v727, 0
  %v825 = vsel %vm787, %v728, 0
  %v828 = vsel %vm787, %v729, 0
  %v831 = vsel %vm787, %v730, 0
  %v834 = vsel %vm787, %v731, 0
  %v837 = vsel %vm787, %v732, 0
  %v840 = vsel %vm787, %v733, 0
  %v843 = vsel %vm787, %v734, 0
  %v846 = vsel %vm787, %v735, 0
  %v849 = vsel %vm787, %v736, 0
  %v852 = vsel %vm787, %v737, 0
  %v855 = vsel %vm787, %v738, 0
  %v858 = vsel %vm787, %v739, 0
  %v861 = vsel %vm787, %v740, 0
  %v864 = vsel %vm787, %v741, 0
  %v867 = vsel %vm787, %v742, 0
  %v870 = vsel %vm787, %v743, 0
  %v873 = vsel %vm787, %v744, 0
  %v876 = vsel %vm787, %v745, 0
  %v879 = vsel %vm787, %v746, 0
  %v882 = vsel %vm787, %v747, 0
  %884 = vmatprep.subr.bf16.mxu0 0
  %885 = vmatpush1.bf16.msra.mxu0 0
  %886 = vmatprep.subr.bf16.mxu0 0
  %887 = vmatpush1.bf16.msra.mxu0 0
  %888 = vmatprep.subr.bf16.mxu0 0
  %889 = vmatpush1.bf16.msra.mxu0 0
  %890 = vmatprep.subr.bf16.mxu0 0
  %891 = vmatpush1.bf16.msra.mxu0 0
  %892 = vmatprep.subr.bf16.mxu0 0
  %893 = vmatpush1.bf16.msra.mxu0 %v782
  %894 = vmatprep.subr.bf16.mxu0 0
  %895 = vmatpush1.bf16.msra.mxu0 %v781
  %896 = vmatprep.subr.bf16.mxu0 0
  %897 = vmatpush1.bf16.msra.mxu0 %v780
  %898 = vmatprep.subr.bf16.mxu0 0
  %899 = vmatpush1.bf16.msra.mxu0 %v779
  %900 = vmatprep.subr.bf16.mxu0 0
  %901 = vmatpush2.bf16.msra.mxu0 0
  %902 = vmatprep.subr.bf16.mxu0 0
  %903 = vmatpush2.bf16.msra.mxu0 0
  %904 = vmatprep.subr.bf16.mxu0 0
  %905 = vmatpush2.bf16.msra.mxu0 0
  %906 = vmatprep.subr.bf16.mxu0 0
  %907 = vmatpush2.bf16.msra.mxu0 0
  %908 = vmatprep.subr.bf16.mxu0 0
  %909 = vmatpush2.bf16.msra.mxu0 0
  %910 = vmatprep.subr.bf16.mxu0 0
  %911 = vmatpush2.bf16.msra.mxu0 0
  %912 = vmatprep.subr.bf16.mxu0 0
  %913 = vmatpush2.bf16.msra.mxu0 0
  %914 = vmatprep.subr.bf16.mxu0 0
  %915 = vmatpush2.bf16.msra.mxu0 0
  %916 = vmatprep.mubr.bf16.mxu0 0
  %917 = vmatmul.mubr.bf16.gmra.mxu0 %v789
  %v918 = vpop.f32.mrf.mxu0
  %v919 = vadd.f32 %v761, %v918
  %v920 = vpop.f32.mrf.mxu0
  %v921 = vpop.f32.mrf.mxu0
  %v922 = vadd.f32 %v761, %v921
  %v923 = vpop.f32.mrf.mxu0
  %924 = vmatprep.mubr.bf16.mxu0 0
  %925 = vmatmul.mubr.bf16.gmra.mxu0 %v792
  %v926 = vpop.f32.mrf.mxu0
  %v927 = vadd.f32 %v761, %v926
  %v928 = vpop.f32.mrf.mxu0
  %v929 = vpop.f32.mrf.mxu0
  %v930 = vadd.f32 %v761, %v929
  %v931 = vpop.f32.mrf.mxu0
  %932 = vmatprep.mubr.bf16.mxu0 0
  %933 = vmatmul.mubr.bf16.gmra.mxu0 %v795
  %v934 = vpop.f32.mrf.mxu0
  %v935 = vadd.f32 %v761, %v934
  %v936 = vpop.f32.mrf.mxu0
  %v937 = vpop.f32.mrf.mxu0
  %v938 = vadd.f32 %v761, %v937
  %v939 = vpop.f32.mrf.mxu0
  %940 = vmatprep.mubr.bf16.mxu0 0
  %941 = vmatmul.mubr.bf16.gmra.mxu0 %v798
  %v942 = vpop.f32.mrf.mxu0
  %v943 = vadd.f32 %v761, %v942
  %v944 = vpop.f32.mrf.mxu0
  %v945 = vpop.f32.mrf.mxu0
  %v946 = vadd.f32 %v761, %v945
  %v947 = vpop.f32.mrf.mxu0
  %948 = vmatprep.mubr.bf16.mxu0 0
  %949 = vmatmul.mubr.bf16.gmra.mxu0 %v801
  %v950 = vpop.f32.mrf.mxu0
  %v951 = vadd.f32 %v761, %v950
  %v952 = vpop.f32.mrf.mxu0
  %v953 = vpop.f32.mrf.mxu0
  %v954 = vadd.f32 %v761, %v953
  %v955 = vpop.f32.mrf.mxu0
  %956 = vmatprep.mubr.bf16.mxu0 0
  %957 = vmatmul.mubr.bf16.gmra.mxu0 %v804
  %v958 = vpop.f32.mrf.mxu0
  %v959 = vadd.f32 %v761, %v958
  %v960 = vpop.f32.mrf.mxu0
  %v961 = vpop.f32.mrf.mxu0
  %v962 = vadd.f32 %v761, %v961
  %v963 = vpop.f32.mrf.mxu0
  %964 = vmatprep.mubr.bf16.mxu0 0
  %965 = vmatmul.mubr.bf16.gmra.mxu0 %v807
  %v966 = vpop.f32.mrf.mxu0
  %v967 = vadd.f32 %v761, %v966
  %v968 = vpop.f32.mrf.mxu0
  %v969 = vpop.f32.mrf.mxu0
  %v970 = vadd.f32 %v761, %v969
  %v971 = vpop.f32.mrf.mxu0
  %972 = vmatprep.mubr.bf16.mxu0 0
  %973 = vmatmul.mubr.bf16.gmra.mxu0 %v810
  %v974 = vpop.f32.mrf.mxu0
  %v975 = vadd.f32 %v761, %v974
  %v976 = vpop.f32.mrf.mxu0
  %v977 = vpop.f32.mrf.mxu0
  %v978 = vadd.f32 %v761, %v977
  %v979 = vpop.f32.mrf.mxu0
  %980 = vmatprep.mubr.bf16.mxu0 0
  %981 = vmatmul.mubr.bf16.gmra.mxu0 %v813
  %v982 = vpop.f32.mrf.mxu0
  %v983 = vadd.f32 %v761, %v982
  %v984 = vpop.f32.mrf.mxu0
  %v985 = vpop.f32.mrf.mxu0
  %v986 = vadd.f32 %v761, %v985
  %v987 = vpop.f32.mrf.mxu0
  %988 = vmatprep.mubr.bf16.mxu0 0
  %989 = vmatmul.mubr.bf16.gmra.mxu0 %v816
  %v990 = vpop.f32.mrf.mxu0
  %v991 = vadd.f32 %v761, %v990
  %v992 = vpop.f32.mrf.mxu0
  %v993 = vpop.f32.mrf.mxu0
  %v994 = vadd.f32 %v761, %v993
  %v995 = vpop.f32.mrf.mxu0
  %996 = vmatprep.mubr.bf16.mxu0 0
  %997 = vmatmul.mubr.bf16.gmra.mxu0 %v819
  %v998 = vpop.f32.mrf.mxu0
  %v999 = vadd.f32 %v761, %v998
  %v1000 = vpop.f32.mrf.mxu0
  %v1001 = vpop.f32.mrf.mxu0
  %v1002 = vadd.f32 %v761, %v1001
  %v1003 = vpop.f32.mrf.mxu0
  %1004 = vmatprep.mubr.bf16.mxu0 0
  %1005 = vmatmul.mubr.bf16.gmra.mxu0 %v822
  %v1006 = vpop.f32.mrf.mxu0
  %v1007 = vadd.f32 %v761, %v1006
  %v1008 = vpop.f32.mrf.mxu0
  %v1009 = vpop.f32.mrf.mxu0
  %v1010 = vadd.f32 %v761, %v1009
  %v1011 = vpop.f32.mrf.mxu0
  %1012 = vmatprep.mubr.bf16.mxu0 0
  %1013 = vmatmul.mubr.bf16.gmra.mxu0 %v825
  %v1014 = vpop.f32.mrf.mxu0
  %v1015 = vadd.f32 %v761, %v1014
  %v1016 = vpop.f32.mrf.mxu0
  %v1017 = vpop.f32.mrf.mxu0
  %v1018 = vadd.f32 %v761, %v1017
  %v1019 = vpop.f32.mrf.mxu0
  %1020 = vmatprep.mubr.bf16.mxu0 0
  %1021 = vmatmul.mubr.bf16.gmra.mxu0 %v828
  %v1022 = vpop.f32.mrf.mxu0
  %v1023 = vadd.f32 %v761, %v1022
  %v1024 = vpop.f32.mrf.mxu0
  %v1025 = vpop.f32.mrf.mxu0
  %v1026 = vadd.f32 %v761, %v1025
  %v1027 = vpop.f32.mrf.mxu0
  %1028 = vmatprep.mubr.bf16.mxu0 0
  %1029 = vmatmul.mubr.bf16.gmra.mxu0 %v831
  %v1030 = vpop.f32.mrf.mxu0
  %v1031 = vadd.f32 %v761, %v1030
  %v1032 = vpop.f32.mrf.mxu0
  %v1033 = vpop.f32.mrf.mxu0
  %v1034 = vadd.f32 %v761, %v1033
  %v1035 = vpop.f32.mrf.mxu0
  %1036 = vmatprep.mubr.bf16.mxu0 0
  %1037 = vmatmul.mubr.bf16.gmra.mxu0 %v834
  %v1038 = vpop.f32.mrf.mxu0
  %v1039 = vadd.f32 %v761, %v1038
  %v1040 = vpop.f32.mrf.mxu0
  %v1041 = vpop.f32.mrf.mxu0
  %v1042 = vadd.f32 %v761, %v1041
  %v1043 = vpop.f32.mrf.mxu0
  %1044 = vmatprep.mubr.bf16.mxu0 0
  %1045 = vmatmul.mubr.bf16.gmra.mxu0 %v837
  %v1046 = vpop.f32.mrf.mxu0
  %v1047 = vadd.f32 %v761, %v1046
  %v1048 = vpop.f32.mrf.mxu0
  %v1049 = vpop.f32.mrf.mxu0
  %v1050 = vadd.f32 %v761, %v1049
  %v1051 = vpop.f32.mrf.mxu0
  %1052 = vmatprep.mubr.bf16.mxu0 0
  %1053 = vmatmul.mubr.bf16.gmra.mxu0 %v840
  %v1054 = vpop.f32.mrf.mxu0
  %v1055 = vadd.f32 %v761, %v1054
  %v1056 = vpop.f32.mrf.mxu0
  %v1057 = vpop.f32.mrf.mxu0
  %v1058 = vadd.f32 %v761, %v1057
  %v1059 = vpop.f32.mrf.mxu0
  %1060 = vmatprep.mubr.bf16.mxu0 0
  %1061 = vmatmul.mubr.bf16.gmra.mxu0 %v843
  %v1062 = vpop.f32.mrf.mxu0
  %v1063 = vadd.f32 %v761, %v1062
  %v1064 = vpop.f32.mrf.mxu0
  %v1065 = vpop.f32.mrf.mxu0
  %v1066 = vadd.f32 %v761, %v1065
  %v1067 = vpop.f32.mrf.mxu0
  %1068 = vmatprep.mubr.bf16.mxu0 0
  %1069 = vmatmul.mubr.bf16.gmra.mxu0 %v846
  %v1070 = vpop.f32.mrf.mxu0
  %v1071 = vadd.f32 %v761, %v1070
  %v1072 = vpop.f32.mrf.mxu0
  %v1073 = vpop.f32.mrf.mxu0
  %v1074 = vadd.f32 %v761, %v1073
  %v1075 = vpop.f32.mrf.mxu0
  %1076 = vmatprep.mubr.bf16.mxu0 0
  %1077 = vmatmul.mubr.bf16.gmra.mxu0 %v849
  %v1078 = vpop.f32.mrf.mxu0
  %v1079 = vadd.f32 %v761, %v1078
  %v1080 = vpop.f32.mrf.mxu0
  %v1081 = vpop.f32.mrf.mxu0
  %v1082 = vadd.f32 %v761, %v1081
  %v1083 = vpop.f32.mrf.mxu0
  %1084 = vmatprep.mubr.bf16.mxu0 0
  %1085 = vmatmul.mubr.bf16.gmra.mxu0 %v852
  %v1086 = vpop.f32.mrf.mxu0
  %v1087 = vadd.f32 %v761, %v1086
  %v1088 = vpop.f32.mrf.mxu0
  %v1089 = vpop.f32.mrf.mxu0
  %v1090 = vadd.f32 %v761, %v1089
  %v1091 = vpop.f32.mrf.mxu0
  %1092 = vmatprep.mubr.bf16.mxu0 0
  %1093 = vmatmul.mubr.bf16.gmra.mxu0 %v855
  %v1094 = vpop.f32.mrf.mxu0
  %v1095 = vadd.f32 %v761, %v1094
  %v1096 = vpop.f32.mrf.mxu0
  %v1097 = vpop.f32.mrf.mxu0
  %v1098 = vadd.f32 %v761, %v1097
  %v1099 = vpop.f32.mrf.mxu0
  %1100 = vmatprep.mubr.bf16.mxu0 0
  %1101 = vmatmul.mubr.bf16.gmra.mxu0 %v858
  %v1102 = vpop.f32.mrf.mxu0
  %v1103 = vadd.f32 %v761, %v1102
  %v1104 = vpop.f32.mrf.mxu0
  %v1105 = vpop.f32.mrf.mxu0
  %v1106 = vadd.f32 %v761, %v1105
  %v1107 = vpop.f32.mrf.mxu0
  %1108 = vmatprep.mubr.bf16.mxu0 0
  %1109 = vmatmul.mubr.bf16.gmra.mxu0 %v861
  %v1110 = vpop.f32.mrf.mxu0
  %v1111 = vadd.f32 %v761, %v1110
  %v1112 = vpop.f32.mrf.mxu0
  %v1113 = vpop.f32.mrf.mxu0
  %v1114 = vadd.f32 %v761, %v1113
  %v1115 = vpop.f32.mrf.mxu0
  %1116 = vmatprep.mubr.bf16.mxu0 0
  %1117 = vmatmul.mubr.bf16.gmra.mxu0 %v864
  %v1118 = vpop.f32.mrf.mxu0
  %v1119 = vadd.f32 %v761, %v1118
  %v1120 = vpop.f32.mrf.mxu0
  %v1121 = vpop.f32.mrf.mxu0
  %v1122 = vadd.f32 %v761, %v1121
  %v1123 = vpop.f32.mrf.mxu0
  %1124 = vmatprep.mubr.bf16.mxu0 0
  %1125 = vmatmul.mubr.bf16.gmra.mxu0 %v867
  %v1126 = vpop.f32.mrf.mxu0
  %v1127 = vadd.f32 %v761, %v1126
  %v1128 = vpop.f32.mrf.mxu0
  %v1129 = vpop.f32.mrf.mxu0
  %v1130 = vadd.f32 %v761, %v1129
  %v1131 = vpop.f32.mrf.mxu0
  %1132 = vmatprep.mubr.bf16.mxu0 0
  %1133 = vmatmul.mubr.bf16.gmra.mxu0 %v870
  %v1134 = vpop.f32.mrf.mxu0
  %v1135 = vadd.f32 %v761, %v1134
  %v1136 = vpop.f32.mrf.mxu0
  %v1137 = vpop.f32.mrf.mxu0
  %v1138 = vadd.f32 %v761, %v1137
  %v1139 = vpop.f32.mrf.mxu0
  %1140 = vmatprep.mubr.bf16.mxu0 0
  %1141 = vmatmul.mubr.bf16.gmra.mxu0 %v873
  %v1142 = vpop.f32.mrf.mxu0
  %v1143 = vadd.f32 %v761, %v1142
  %v1144 = vpop.f32.mrf.mxu0
  %v1145 = vpop.f32.mrf.mxu0
  %v1146 = vadd.f32 %v761, %v1145
  %v1147 = vpop.f32.mrf.mxu0
  %1148 = vmatprep.mubr.bf16.mxu0 0
  %1149 = vmatmul.mubr.bf16.gmra.mxu0 %v876
  %v1150 = vpop.f32.mrf.mxu0
  %v1151 = vadd.f32 %v761, %v1150
  %v1152 = vpop.f32.mrf.mxu0
  %v1153 = vpop.f32.mrf.mxu0
  %v1154 = vadd.f32 %v761, %v1153
  %v1155 = vpop.f32.mrf.mxu0
  %1156 = vmatprep.mubr.bf16.mxu0 0
  %1157 = vmatmul.mubr.bf16.gmra.mxu0 %v879
  %v1158 = vpop.f32.mrf.mxu0
  %v1159 = vadd.f32 %v761, %v1158
  %v1160 = vpop.f32.mrf.mxu0
  %v1161 = vpop.f32.mrf.mxu0
  %v1162 = vadd.f32 %v761, %v1161
  %v1163 = vpop.f32.mrf.mxu0
  %1164 = vmatprep.mubr.bf16.mxu0 0
  %1165 = vmatmul.mubr.bf16.gmra.mxu0 %v882
  %v1166 = vpop.f32.mrf.mxu0
  %v1167 = vadd.f32 %v761, %v1166
  %v1168 = vpop.f32.mrf.mxu0
  %v1169 = vpop.f32.mrf.mxu0
  %v1170 = vadd.f32 %v761, %v1169
  %v1171 = vpop.f32.mrf.mxu0
  %1172 = vdwg.mxu0
  %v1173 = vmax.f32 %v919, 0.0
  %v1174 = vmax.f32 %v922, 0.0
  %v1175 = vmax.f32 %v927, 0.0
  %v1176 = vmax.f32 %v930, 0.0
  %v1177 = vmax.f32 %v935, 0.0
  %v1178 = vmax.f32 %v938, 0.0
  %v1179 = vmax.f32 %v943, 0.0
  %v1180 = vmax.f32 %v946, 0.0
  %v1181 = vmax.f32 %v951, 0.0
  %v1182 = vmax.f32 %v954, 0.0
  %v1183 = vmax.f32 %v959, 0.0
  %v1184 = vmax.f32 %v962, 0.0
  %v1185 = vmax.f32 %v967, 0.0
  %v1186 = vmax.f32 %v970, 0.0
  %v1187 = vmax.f32 %v975, 0.0
  %v1188 = vmax.f32 %v978, 0.0
  %v1189 = vmax.f32 %v983, 0.0
  %v1190 = vmax.f32 %v986, 0.0
  %v1191 = vmax.f32 %v991, 0.0
  %v1192 = vmax.f32 %v994, 0.0
  %v1193 = vmax.f32 %v999, 0.0
  %v1194 = vmax.f32 %v1002, 0.0
  %v1195 = vmax.f32 %v1007, 0.0
  %v1196 = vmax.f32 %v1010, 0.0
  %v1197 = vmax.f32 %v1015, 0.0
  %v1198 = vmax.f32 %v1018, 0.0
  %v1199 = vmax.f32 %v1023, 0.0
  %v1200 = vmax.f32 %v1026, 0.0
  %v1201 = vmax.f32 %v1031, 0.0
  %v1202 = vmax.f32 %v1034, 0.0
  %v1203 = vmax.f32 %v1039, 0.0
  %v1204 = vmax.f32 %v1042, 0.0
  %v1205 = vmax.f32 %v1047, 0.0
  %v1206 = vmax.f32 %v1050, 0.0
  %v1207 = vmax.f32 %v1055, 0.0
  %v1208 = vmax.f32 %v1058, 0.0
  %v1209 = vmax.f32 %v1063, 0.0
  %v1210 = vmax.f32 %v1066, 0.0
  %v1211 = vmax.f32 %v1071, 0.0
  %v1212 = vmax.f32 %v1074, 0.0
  %v1213 = vmax.f32 %v1079, 0.0
  %v1214 = vmax.f32 %v1082, 0.0
  %v1215 = vmax.f32 %v1087, 0.0
  %v1216 = vmax.f32 %v1090, 0.0
  %v1217 = vmax.f32 %v1095, 0.0
  %v1218 = vmax.f32 %v1098, 0.0
  %v1219 = vmax.f32 %v1103, 0.0
  %v1220 = vmax.f32 %v1106, 0.0
  %v1221 = vmax.f32 %v1111, 0.0
  %v1222 = vmax.f32 %v1114, 0.0
  %v1223 = vmax.f32 %v1119, 0.0
  %v1224 = vmax.f32 %v1122, 0.0
  %v1225 = vmax.f32 %v1127, 0.0
  %v1226 = vmax.f32 %v1130, 0.0
  %v1227 = vmax.f32 %v1135, 0.0
  %v1228 = vmax.f32 %v1138, 0.0
  %v1229 = vmax.f32 %v1143, 0.0
  %v1230 = vmax.f32 %v1146, 0.0
  %v1231 = vmax.f32 %v1151, 0.0
  %v1232 = vmax.f32 %v1154, 0.0
  %v1233 = vmax.f32 %v1159, 0.0
  %v1234 = vmax.f32 %v1162, 0.0
  %v1235 = vmax.f32 %v1167, 0.0
  %v1236 = vmax.f32 %v1170, 0.0
  %v1237 = vpack.c.bf16 %v1174, %v1173
  %v1238 = vpack.c.bf16 %v1176, %v1175
  %v1239 = vpack.c.bf16 %v1178, %v1177
  %v1240 = vpack.c.bf16 %v1180, %v1179
  %v1241 = vpack.c.bf16 %v1182, %v1181
  %v1242 = vpack.c.bf16 %v1184, %v1183
  %v1243 = vpack.c.bf16 %v1186, %v1185
  %v1244 = vpack.c.bf16 %v1188, %v1187
  %v1245 = vpack.c.bf16 %v1190, %v1189
  %v1246 = vpack.c.bf16 %v1192, %v1191
  %v1247 = vpack.c.bf16 %v1194, %v1193
  %v1248 = vpack.c.bf16 %v1196, %v1195
  %v1249 = vpack.c.bf16 %v1198, %v1197
  %v1250 = vpack.c.bf16 %v1200, %v1199
  %v1251 = vpack.c.bf16 %v1202, %v1201
  %v1252 = vpack.c.bf16 %v1204, %v1203
  %v1253 = vpack.c.bf16 %v1206, %v1205
  %v1254 = vpack.c.bf16 %v1208, %v1207
  %v1255 = vpack.c.bf16 %v1210, %v1209
  %v1256 = vpack.c.bf16 %v1212, %v1211
  %v1257 = vpack.c.bf16 %v1214, %v1213
  %v1258 = vpack.c.bf16 %v1216, %v1215
  %v1259 = vpack.c.bf16 %v1218, %v1217
  %v1260 = vpack.c.bf16 %v1220, %v1219
  %v1261 = vpack.c.bf16 %v1222, %v1221
  %v1262 = vpack.c.bf16 %v1224, %v1223
  %v1263 = vpack.c.bf16 %v1226, %v1225
  %v1264 = vpack.c.bf16 %v1228, %v1227
  %v1265 = vpack.c.bf16 %v1230, %v1229
  %v1266 = vpack.c.bf16 %v1232, %v1231
  %v1267 = vpack.c.bf16 %v1234, %v1233
  %v1268 = vpack.c.bf16 %v1236, %v1235
  %v1269 = vld [vmem:[%s5] sm:$0xf]
  %v1270 = vld [vmem:[%s5 + $0x4] sm:$0xf]
  %v1271 = vld [vmem:[%s5 + $0x8] sm:$0xf]
  %v1272 = vld [vmem:[%s5 + $0xc] sm:$0xf]
  %v1273 = vld [vmem:[%s5 + $0x10] sm:$0xf]
  %v1274 = vld [vmem:[%s5 + $0x14] sm:$0xf]
  %v1275 = vld [vmem:[%s5 + $0x18] sm:$0xf]
  %v1276 = vld [vmem:[%s5 + $0x1c] sm:$0xf]
  %v1285 = vunpack.c.l.b16 %v1269
  %v1286 = vunpack.c.l.b16 %v1270
  %v1287 = vunpack.c.l.b16 %v1271
  %v1288 = vunpack.c.l.b16 %v1272
  %v1289 = vunpack.c.l.b16 %v1273
  %v1290 = vunpack.c.l.b16 %v1274
  %v1291 = vunpack.c.l.b16 %v1275
  %v1292 = vunpack.c.l.b16 %v1276
  %v1293 = vpack.c.b16 %v1286, %v1285
  %v1294 = vpack.c.b16 %v1288, %v1287
  %v1295 = vpack.c.b16 %v1290, %v1289
  %v1296 = vpack.c.b16 %v1292, %v1291
  %v1302 = vsel %vm787, %v1237, 0
  %v1305 = vsel %vm787, %v1238, 0
  %v1308 = vsel %vm787, %v1239, 0
  %v1311 = vsel %vm787, %v1240, 0
  %v1314 = vsel %vm787, %v1241, 0
  %v1317 = vsel %vm787, %v1242, 0
  %v1320 = vsel %vm787, %v1243, 0
  %v1323 = vsel %vm787, %v1244, 0
  %v1326 = vsel %vm787, %v1245, 0
  %v1329 = vsel %vm787, %v1246, 0
  %v1332 = vsel %vm787, %v1247, 0
  %v1335 = vsel %vm787, %v1248, 0
  %v1338 = vsel %vm787, %v1249, 0
  %v1341 = vsel %vm787, %v1250, 0
  %v1344 = vsel %vm787, %v1251, 0
  %v1347 = vsel %vm787, %v1252, 0
  %v1350 = vsel %vm787, %v1253, 0
  %v1353 = vsel %vm787, %v1254, 0
  %v1356 = vsel %vm787, %v1255, 0
  %v1359 = vsel %vm787, %v1256, 0
  %v1362 = vsel %vm787, %v1257, 0
  %v1365 = vsel %vm787, %v1258, 0
  %v1368 = vsel %vm787, %v1259, 0
  %v1371 = vsel %vm787, %v1260, 0
  %v1374 = vsel %vm787, %v1261, 0
  %v1377 = vsel %vm787, %v1262, 0
  %v1380 = vsel %vm787, %v1263, 0
  %v1383 = vsel %vm787, %v1264, 0
  %v1386 = vsel %vm787, %v1265, 0
  %v1389 = vsel %vm787, %v1266, 0
  %v1392 = vsel %vm787, %v1267, 0
  %v1395 = vsel %vm787, %v1268, 0
  %1397 = vmatprep.subr.bf16.mxu0 0
  %1398 = vmatpush1.bf16.msra.mxu0 0
  %1399 = vmatprep.subr.bf16.mxu0 0
  %1400 = vmatpush1.bf16.msra.mxu0 0
  %1401 = vmatprep.subr.bf16.mxu0 0
  %1402 = vmatpush1.bf16.msra.mxu0 0
  %1403 = vmatprep.subr.bf16.mxu0 0
  %1404 = vmatpush1.bf16.msra.mxu0 0
  %1405 = vmatprep.subr.bf16.mxu0 0
  %1406 = vmatpush1.bf16.msra.mxu0 %v1296
  %1407 = vmatprep.subr.bf16.mxu0 0
  %1408 = vmatpush1.bf16.msra.mxu0 %v1295
  %1409 = vmatprep.subr.bf16.mxu0 0
  %1410 = vmatpush1.bf16.msra.mxu0 %v1294
  %1411 = vmatprep.subr.bf16.mxu0 0
  %1412 = vmatpush1.bf16.msra.mxu0 %v1293
  %1413 = vmatprep.subr.bf16.mxu0 0
  %1414 = vmatpush2.bf16.msra.mxu0 0
  %1415 = vmatprep.subr.bf16.mxu0 0
  %1416 = vmatpush2.bf16.msra.mxu0 0
  %1417 = vmatprep.subr.bf16.mxu0 0
  %1418 = vmatpush2.bf16.msra.mxu0 0
  %1419 = vmatprep.subr.bf16.mxu0 0
  %1420 = vmatpush2.bf16.msra.mxu0 0
  %1421 = vmatprep.subr.bf16.mxu0 0
  %1422 = vmatpush2.bf16.msra.mxu0 0
  %1423 = vmatprep.subr.bf16.mxu0 0
  %1424 = vmatpush2.bf16.msra.mxu0 0
  %1425 = vmatprep.subr.bf16.mxu0 0
  %1426 = vmatpush2.bf16.msra.mxu0 0
  %1427 = vmatprep.subr.bf16.mxu0 0
  %1428 = vmatpush2.bf16.msra.mxu0 0
  %1429 = vmatprep.mubr.bf16.mxu0 0
  %1430 = vmatmul.mubr.bf16.gmra.mxu0 %v1302
  %v1431 = vpop.f32.mrf.mxu0
  %v1432 = vadd.f32 0.0, %v1431
  %v1433 = vpop.f32.mrf.mxu0
  %v1434 = vpop.f32.mrf.mxu0
  %v1435 = vadd.f32 0.0, %v1434
  %v1436 = vpop.f32.mrf.mxu0
  %1437 = vmatprep.mubr.bf16.mxu0 0
  %1438 = vmatmul.mubr.bf16.gmra.mxu0 %v1305
  %v1439 = vpop.f32.mrf.mxu0
  %v1440 = vadd.f32 0.0, %v1439
  %v1441 = vpop.f32.mrf.mxu0
  %v1442 = vpop.f32.mrf.mxu0
  %v1443 = vadd.f32 0.0, %v1442
  %v1444 = vpop.f32.mrf.mxu0
  %1445 = vmatprep.mubr.bf16.mxu0 0
  %1446 = vmatmul.mubr.bf16.gmra.mxu0 %v1308
  %v1447 = vpop.f32.mrf.mxu0
  %v1448 = vadd.f32 0.0, %v1447
  %v1449 = vpop.f32.mrf.mxu0
  %v1450 = vpop.f32.mrf.mxu0
  %v1451 = vadd.f32 0.0, %v1450
  %v1452 = vpop.f32.mrf.mxu0
  %1453 = vmatprep.mubr.bf16.mxu0 0
  %1454 = vmatmul.mubr.bf16.gmra.mxu0 %v1311
  %v1455 = vpop.f32.mrf.mxu0
  %v1456 = vadd.f32 0.0, %v1455
  %v1457 = vpop.f32.mrf.mxu0
  %v1458 = vpop.f32.mrf.mxu0
  %v1459 = vadd.f32 0.0, %v1458
  %v1460 = vpop.f32.mrf.mxu0
  %1461 = vmatprep.mubr.bf16.mxu0 0
  %1462 = vmatmul.mubr.bf16.gmra.mxu0 %v1314
  %v1463 = vpop.f32.mrf.mxu0
  %v1464 = vadd.f32 0.0, %v1463
  %v1465 = vpop.f32.mrf.mxu0
  %v1466 = vpop.f32.mrf.mxu0
  %v1467 = vadd.f32 0.0, %v1466
  %v1468 = vpop.f32.mrf.mxu0
  %1469 = vmatprep.mubr.bf16.mxu0 0
  %1470 = vmatmul.mubr.bf16.gmra.mxu0 %v1317
  %v1471 = vpop.f32.mrf.mxu0
  %v1472 = vadd.f32 0.0, %v1471
  %v1473 = vpop.f32.mrf.mxu0
  %v1474 = vpop.f32.mrf.mxu0
  %v1475 = vadd.f32 0.0, %v1474
  %v1476 = vpop.f32.mrf.mxu0
  %1477 = vmatprep.mubr.bf16.mxu0 0
  %1478 = vmatmul.mubr.bf16.gmra.mxu0 %v1320
  %v1479 = vpop.f32.mrf.mxu0
  %v1480 = vadd.f32 0.0, %v1479
  %v1481 = vpop.f32.mrf.mxu0
  %v1482 = vpop.f32.mrf.mxu0
  %v1483 = vadd.f32 0.0, %v1482
  %v1484 = vpop.f32.mrf.mxu0
  %1485 = vmatprep.mubr.bf16.mxu0 0
  %1486 = vmatmul.mubr.bf16.gmra.mxu0 %v1323
  %v1487 = vpop.f32.mrf.mxu0
  %v1488 = vadd.f32 0.0, %v1487
  %v1489 = vpop.f32.mrf.mxu0
  %v1490 = vpop.f32.mrf.mxu0
  %v1491 = vadd.f32 0.0, %v1490
  %v1492 = vpop.f32.mrf.mxu0
  %1493 = vmatprep.mubr.bf16.mxu0 0
  %1494 = vmatmul.mubr.bf16.gmra.mxu0 %v1326
  %v1495 = vpop.f32.mrf.mxu0
  %v1496 = vadd.f32 0.0, %v1495
  %v1497 = vpop.f32.mrf.mxu0
  %v1498 = vpop.f32.mrf.mxu0
  %v1499 = vadd.f32 0.0, %v1498
  %v1500 = vpop.f32.mrf.mxu0
  %1501 = vmatprep.mubr.bf16.mxu0 0
  %1502 = vmatmul.mubr.bf16.gmra.mxu0 %v1329
  %v1503 = vpop.f32.mrf.mxu0
  %v1504 = vadd.f32 0.0, %v1503
  %v1505 = vpop.f32.mrf.mxu0
  %v1506 = vpop.f32.mrf.mxu0
  %v1507 = vadd.f32 0.0, %v1506
  %v1508 = vpop.f32.mrf.mxu0
  %1509 = vmatprep.mubr.bf16.mxu0 0
  %1510 = vmatmul.mubr.bf16.gmra.mxu0 %v1332
  %v1511 = vpop.f32.mrf.mxu0
  %v1512 = vadd.f32 0.0, %v1511
  %v1513 = vpop.f32.mrf.mxu0
  %v1514 = vpop.f32.mrf.mxu0
  %v1515 = vadd.f32 0.0, %v1514
  %v1516 = vpop.f32.mrf.mxu0
  %1517 = vmatprep.mubr.bf16.mxu0 0
  %1518 = vmatmul.mubr.bf16.gmra.mxu0 %v1335
  %v1519 = vpop.f32.mrf.mxu0
  %v1520 = vadd.f32 0.0, %v1519
  %v1521 = vpop.f32.mrf.mxu0
  %v1522 = vpop.f32.mrf.mxu0
  %v1523 = vadd.f32 0.0, %v1522
  %v1524 = vpop.f32.mrf.mxu0
  %1525 = vmatprep.mubr.bf16.mxu0 0
  %1526 = vmatmul.mubr.bf16.gmra.mxu0 %v1338
  %v1527 = vpop.f32.mrf.mxu0
  %v1528 = vadd.f32 0.0, %v1527
  %v1529 = vpop.f32.mrf.mxu0
  %v1530 = vpop.f32.mrf.mxu0
  %v1531 = vadd.f32 0.0, %v1530
  %v1532 = vpop.f32.mrf.mxu0
  %1533 = vmatprep.mubr.bf16.mxu0 0
  %1534 = vmatmul.mubr.bf16.gmra.mxu0 %v1341
  %v1535 = vpop.f32.mrf.mxu0
  %v1536 = vadd.f32 0.0, %v1535
  %v1537 = vpop.f32.mrf.mxu0
  %v1538 = vpop.f32.mrf.mxu0
  %v1539 = vadd.f32 0.0, %v1538
  %v1540 = vpop.f32.mrf.mxu0
  %1541 = vmatprep.mubr.bf16.mxu0 0
  %1542 = vmatmul.mubr.bf16.gmra.mxu0 %v1344
  %v1543 = vpop.f32.mrf.mxu0
  %v1544 = vadd.f32 0.0, %v1543
  %v1545 = vpop.f32.mrf.mxu0
  %v1546 = vpop.f32.mrf.mxu0
  %v1547 = vadd.f32 0.0, %v1546
  %v1548 = vpop.f32.mrf.mxu0
  %1549 = vmatprep.mubr.bf16.mxu0 0
  %1550 = vmatmul.mubr.bf16.gmra.mxu0 %v1347
  %v1551 = vpop.f32.mrf.mxu0
  %v1552 = vadd.f32 0.0, %v1551
  %v1553 = vpop.f32.mrf.mxu0
  %v1554 = vpop.f32.mrf.mxu0
  %v1555 = vadd.f32 0.0, %v1554
  %v1556 = vpop.f32.mrf.mxu0
  %1557 = vmatprep.mubr.bf16.mxu0 0
  %1558 = vmatmul.mubr.bf16.gmra.mxu0 %v1350
  %v1559 = vpop.f32.mrf.mxu0
  %v1560 = vadd.f32 0.0, %v1559
  %v1561 = vpop.f32.mrf.mxu0
  %v1562 = vpop.f32.mrf.mxu0
  %v1563 = vadd.f32 0.0, %v1562
  %v1564 = vpop.f32.mrf.mxu0
  %1565 = vmatprep.mubr.bf16.mxu0 0
  %1566 = vmatmul.mubr.bf16.gmra.mxu0 %v1353
  %v1567 = vpop.f32.mrf.mxu0
  %v1568 = vadd.f32 0.0, %v1567
  %v1569 = vpop.f32.mrf.mxu0
  %v1570 = vpop.f32.mrf.mxu0
  %v1571 = vadd.f32 0.0, %v1570
  %v1572 = vpop.f32.mrf.mxu0
  %1573 = vmatprep.mubr.bf16.mxu0 0
  %1574 = vmatmul.mubr.bf16.gmra.mxu0 %v1356
  %v1575 = vpop.f32.mrf.mxu0
  %v1576 = vadd.f32 0.0, %v1575
  %v1577 = vpop.f32.mrf.mxu0
  %v1578 = vpop.f32.mrf.mxu0
  %v1579 = vadd.f32 0.0, %v1578
  %v1580 = vpop.f32.mrf.mxu0
  %1581 = vmatprep.mubr.bf16.mxu0 0
  %1582 = vmatmul.mubr.bf16.gmra.mxu0 %v1359
  %v1583 = vpop.f32.mrf.mxu0
  %v1584 = vadd.f32 0.0, %v1583
  %v1585 = vpop.f32.mrf.mxu0
  %v1586 = vpop.f32.mrf.mxu0
  %v1587 = vadd.f32 0.0, %v1586
  %v1588 = vpop.f32.mrf.mxu0
  %1589 = vmatprep.mubr.bf16.mxu0 0
  %1590 = vmatmul.mubr.bf16.gmra.mxu0 %v1362
  %v1591 = vpop.f32.mrf.mxu0
  %v1592 = vadd.f32 0.0, %v1591
  %v1593 = vpop.f32.mrf.mxu0
  %v1594 = vpop.f32.mrf.mxu0
  %v1595 = vadd.f32 0.0, %v1594
  %v1596 = vpop.f32.mrf.mxu0
  %1597 = vmatprep.mubr.bf16.mxu0 0
  %1598 = vmatmul.mubr.bf16.gmra.mxu0 %v1365
  %v1599 = vpop.f32.mrf.mxu0
  %v1600 = vadd.f32 0.0, %v1599
  %v1601 = vpop.f32.mrf.mxu0
  %v1602 = vpop.f32.mrf.mxu0
  %v1603 = vadd.f32 0.0, %v1602
  %v1604 = vpop.f32.mrf.mxu0
  %1605 = vmatprep.mubr.bf16.mxu0 0
  %1606 = vmatmul.mubr.bf16.gmra.mxu0 %v1368
  %v1607 = vpop.f32.mrf.mxu0
  %v1608 = vadd.f32 0.0, %v1607
  %v1609 = vpop.f32.mrf.mxu0
  %v1610 = vpop.f32.mrf.mxu0
  %v1611 = vadd.f32 0.0, %v1610
  %v1612 = vpop.f32.mrf.mxu0
  %1613 = vmatprep.mubr.bf16.mxu0 0
  %1614 = vmatmul.mubr.bf16.gmra.mxu0 %v1371
  %v1615 = vpop.f32.mrf.mxu0
  %v1616 = vadd.f32 0.0, %v1615
  %v1617 = vpop.f32.mrf.mxu0
  %v1618 = vpop.f32.mrf.mxu0
  %v1619 = vadd.f32 0.0, %v1618
  %v1620 = vpop.f32.mrf.mxu0
  %1621 = vmatprep.mubr.bf16.mxu0 0
  %1622 = vmatmul.mubr.bf16.gmra.mxu0 %v1374
  %v1623 = vpop.f32.mrf.mxu0
  %v1624 = vadd.f32 0.0, %v1623
  %v1625 = vpop.f32.mrf.mxu0
  %v1626 = vpop.f32.mrf.mxu0
  %v1627 = vadd.f32 0.0, %v1626
  %v1628 = vpop.f32.mrf.mxu0
  %1629 = vmatprep.mubr.bf16.mxu0 0
  %1630 = vmatmul.mubr.bf16.gmra.mxu0 %v1377
  %v1631 = vpop.f32.mrf.mxu0
  %v1632 = vadd.f32 0.0, %v1631
  %v1633 = vpop.f32.mrf.mxu0
  %v1634 = vpop.f32.mrf.mxu0
  %v1635 = vadd.f32 0.0, %v1634
  %v1636 = vpop.f32.mrf.mxu0
  %1637 = vmatprep.mubr.bf16.mxu0 0
  %1638 = vmatmul.mubr.bf16.gmra.mxu0 %v1380
  %v1639 = vpop.f32.mrf.mxu0
  %v1640 = vadd.f32 0.0, %v1639
  %v1641 = vpop.f32.mrf.mxu0
  %v1642 = vpop.f32.mrf.mxu0
  %v1643 = vadd.f32 0.0, %v1642
  %v1644 = vpop.f32.mrf.mxu0
  %1645 = vmatprep.mubr.bf16.mxu0 0
  %1646 = vmatmul.mubr.bf16.gmra.mxu0 %v1383
  %v1647 = vpop.f32.mrf.mxu0
  %v1648 = vadd.f32 0.0, %v1647
  %v1649 = vpop.f32.mrf.mxu0
  %v1650 = vpop.f32.mrf.mxu0
  %v1651 = vadd.f32 0.0, %v1650
  %v1652 = vpop.f32.mrf.mxu0
  %1653 = vmatprep.mubr.bf16.mxu0 0
  %1654 = vmatmul.mubr.bf16.gmra.mxu0 %v1386
  %v1655 = vpop.f32.mrf.mxu0
  %v1656 = vadd.f32 0.0, %v1655
  %v1657 = vpop.f32.mrf.mxu0
  %v1658 = vpop.f32.mrf.mxu0
  %v1659 = vadd.f32 0.0, %v1658
  %v1660 = vpop.f32.mrf.mxu0
  %1661 = vmatprep.mubr.bf16.mxu0 0
  %1662 = vmatmul.mubr.bf16.gmra.mxu0 %v1389
  %v1663 = vpop.f32.mrf.mxu0
  %v1664 = vadd.f32 0.0, %v1663
  %v1665 = vpop.f32.mrf.mxu0
  %v1666 = vpop.f32.mrf.mxu0
  %v1667 = vadd.f32 0.0, %v1666
  %v1668 = vpop.f32.mrf.mxu0
  %1669 = vmatprep.mubr.bf16.mxu0 0
  %1670 = vmatmul.mubr.bf16.gmra.mxu0 %v1392
  %v1671 = vpop.f32.mrf.mxu0
  %v1672 = vadd.f32 0.0, %v1671
  %v1673 = vpop.f32.mrf.mxu0
  %v1674 = vpop.f32.mrf.mxu0
  %v1675 = vadd.f32 0.0, %v1674
  %v1676 = vpop.f32.mrf.mxu0
  %1677 = vmatprep.mubr.bf16.mxu0 0
  %1678 = vmatmul.mubr.bf16.gmra.mxu0 %v1395
  %v1679 = vpop.f32.mrf.mxu0
  %v1680 = vadd.f32 0.0, %v1679
  %v1681 = vpop.f32.mrf.mxu0
  %v1682 = vpop.f32.mrf.mxu0
  %v1683 = vadd.f32 0.0, %v1682
  %v1684 = vpop.f32.mrf.mxu0
  %1685 = vdwg.mxu0
  %v1686 = vmax.f32 %v1432, %v1435
  %v1687 = vmax.f32 %v1686, %v1440
  %v1688 = vmax.f32 %v1687, %v1443
  %v1689 = vrot.slane %v1688, 4
  %v1690 = vmax.f32 %v1688, %v1689
  %v1691 = vrot.slane %v1690, 2
  %v1692 = vmax.f32 %v1690, %v1691
  %v1693 = vrot.slane %v1692, 1
  %v1694 = vmax.f32 %v1692, %v1693
  %v1695 = vmax.f32 %v1448, %v1451
  %v1696 = vmax.f32 %v1695, %v1456
  %v1697 = vmax.f32 %v1696, %v1459
  %v1698 = vrot.slane %v1697, 4
  %v1699 = vmax.f32 %v1697, %v1698
  %v1700 = vrot.slane %v1699, 2
  %v1701 = vmax.f32 %v1699, %v1700
  %v1702 = vrot.slane %v1701, 1
  %v1703 = vmax.f32 %v1701, %v1702
  %v1704 = vmax.f32 %v1464, %v1467
  %v1705 = vmax.f32 %v1704, %v1472
  %v1706 = vmax.f32 %v1705, %v1475
  %v1707 = vrot.slane %v1706, 4
  %v1708 = vmax.f32 %v1706, %v1707
  %v1709 = vrot.slane %v1708, 2
  %v1710 = vmax.f32 %v1708, %v1709
  %v1711 = vrot.slane %v1710, 1
  %v1712 = vmax.f32 %v1710, %v1711
  %v1713 = vmax.f32 %v1480, %v1483
  %v1714 = vmax.f32 %v1713, %v1488
  %v1715 = vmax.f32 %v1714, %v1491
  %v1716 = vrot.slane %v1715, 4
  %v1717 = vmax.f32 %v1715, %v1716
  %v1718 = vrot.slane %v1717, 2
  %v1719 = vmax.f32 %v1717, %v1718
  %v1720 = vrot.slane %v1719, 1
  %v1721 = vmax.f32 %v1719, %v1720
  %v1722 = vmax.f32 %v1496, %v1499
  %v1723 = vmax.f32 %v1722, %v1504
  %v1724 = vmax.f32 %v1723, %v1507
  %v1725 = vrot.slane %v1724, 4
  %v1726 = vmax.f32 %v1724, %v1725
  %v1727 = vrot.slane %v1726, 2
  %v1728 = vmax.f32 %v1726, %v1727
  %v1729 = vrot.slane %v1728, 1
  %v1730 = vmax.f32 %v1728, %v1729
  %v1731 = vmax.f32 %v1512, %v1515
  %v1732 = vmax.f32 %v1731, %v1520
  %v1733 = vmax.f32 %v1732, %v1523
  %v1734 = vrot.slane %v1733, 4
  %v1735 = vmax.f32 %v1733, %v1734
  %v1736 = vrot.slane %v1735, 2
  %v1737 = vmax.f32 %v1735, %v1736
  %v1738 = vrot.slane %v1737, 1
  %v1739 = vmax.f32 %v1737, %v1738
  %v1740 = vmax.f32 %v1528, %v1531
  %v1741 = vmax.f32 %v1740, %v1536
  %v1742 = vmax.f32 %v1741, %v1539
  %v1743 = vrot.slane %v1742, 4
  %v1744 = vmax.f32 %v1742, %v1743
  %v1745 = vrot.slane %v1744, 2
  %v1746 = vmax.f32 %v1744, %v1745
  %v1747 = vrot.slane %v1746, 1
  %v1748 = vmax.f32 %v1746, %v1747
  %v1749 = vmax.f32 %v1544, %v1547
  %v1750 = vmax.f32 %v1749, %v1552
  %v1751 = vmax.f32 %v1750, %v1555
  %v1752 = vrot.slane %v1751, 4
  %v1753 = vmax.f32 %v1751, %v1752
  %v1754 = vrot.slane %v1753, 2
  %v1755 = vmax.f32 %v1753, %v1754
  %v1756 = vrot.slane %v1755, 1
  %v1757 = vmax.f32 %v1755, %v1756
  %v1758 = vmax.f32 %v1560, %v1563
  %v1759 = vmax.f32 %v1758, %v1568
  %v1760 = vmax.f32 %v1759, %v1571
  %v1761 = vrot.slane %v1760, 4
  %v1762 = vmax.f32 %v1760, %v1761
  %v1763 = vrot.slane %v1762, 2
  %v1764 = vmax.f32 %v1762, %v1763
  %v1765 = vrot.slane %v1764, 1
  %v1766 = vmax.f32 %v1764, %v1765
  %v1767 = vmax.f32 %v1576, %v1579
  %v1768 = vmax.f32 %v1767, %v1584
  %v1769 = vmax.f32 %v1768, %v1587
  %v1770 = vrot.slane %v1769, 4
  %v1771 = vmax.f32 %v1769, %v1770
  %v1772 = vrot.slane %v1771, 2
  %v1773 = vmax.f32 %v1771, %v1772
  %v1774 = vrot.slane %v1773, 1
  %v1775 = vmax.f32 %v1773, %v1774
  %v1776 = vmax.f32 %v1592, %v1595
  %v1777 = vmax.f32 %v1776, %v1600
  %v1778 = vmax.f32 %v1777, %v1603
  %v1779 = vrot.slane %v1778, 4
  %v1780 = vmax.f32 %v1778, %v1779
  %v1781 = vrot.slane %v1780, 2
  %v1782 = vmax.f32 %v1780, %v1781
  %v1783 = vrot.slane %v1782, 1
  %v1784 = vmax.f32 %v1782, %v1783
  %v1785 = vmax.f32 %v1608, %v1611
  %v1786 = vmax.f32 %v1785, %v1616
  %v1787 = vmax.f32 %v1786, %v1619
  %v1788 = vrot.slane %v1787, 4
  %v1789 = vmax.f32 %v1787, %v1788
  %v1790 = vrot.slane %v1789, 2
  %v1791 = vmax.f32 %v1789, %v1790
  %v1792 = vrot.slane %v1791, 1
  %v1793 = vmax.f32 %v1791, %v1792
  %v1794 = vmax.f32 %v1624, %v1627
  %v1795 = vmax.f32 %v1794, %v1632
  %v1796 = vmax.f32 %v1795, %v1635
  %v1797 = vrot.slane %v1796, 4
  %v1798 = vmax.f32 %v1796, %v1797
  %v1799 = vrot.slane %v1798, 2
  %v1800 = vmax.f32 %v1798, %v1799
  %v1801 = vrot.slane %v1800, 1
  %v1802 = vmax.f32 %v1800, %v1801
  %v1803 = vmax.f32 %v1640, %v1643
  %v1804 = vmax.f32 %v1803, %v1648
  %v1805 = vmax.f32 %v1804, %v1651
  %v1806 = vrot.slane %v1805, 4
  %v1807 = vmax.f32 %v1805, %v1806
  %v1808 = vrot.slane %v1807, 2
  %v1809 = vmax.f32 %v1807, %v1808
  %v1810 = vrot.slane %v1809, 1
  %v1811 = vmax.f32 %v1809, %v1810
  %v1812 = vmax.f32 %v1656, %v1659
  %v1813 = vmax.f32 %v1812, %v1664
  %v1814 = vmax.f32 %v1813, %v1667
  %v1815 = vrot.slane %v1814, 4
  %v1816 = vmax.f32 %v1814, %v1815
  %v1817 = vrot.slane %v1816, 2
  %v1818 = vmax.f32 %v1816, %v1817
  %v1819 = vrot.slane %v1818, 1
  %v1820 = vmax.f32 %v1818, %v1819
  %v1821 = vmax.f32 %v1672, %v1675
  %v1822 = vmax.f32 %v1821, %v1680
  %v1823 = vmax.f32 %v1822, %v1683
  %v1824 = vrot.slane %v1823, 4
  %v1825 = vmax.f32 %v1823, %v1824
  %v1826 = vrot.slane %v1825, 2
  %v1827 = vmax.f32 %v1825, %v1826
  %v1828 = vrot.slane %v1827, 1
  %v1829 = vmax.f32 %v1827, %v1828
  %p1830 = scmp.eq.s32.totalorder 0, 0
  // Predicated region
  $region30: #{pointnet2_based_forward.3} parent=0 // pred_check
    %p1831 = pneg %p1830
  $region31: #{pointnet2_based_forward.3} parent=0 // pred_check_branch
    %1833 = sbr.rel (%p1831) target = $region33
  $region32: #{pointnet2_based_forward.3} parent=0 // pred_region
    %vm1850 = vcmask 1041409
    %v1851 = vsel %vm1850, %v1703, %v1694
    %vm1852 = vcmask 1042434
    %v1853 = vsel %vm1852, %v1712, %v1851
    %vm1854 = vcmask 1043459
    %v1855 = vsel %vm1854, %v1721, %v1853
    %vm1856 = vcmask 1044484
    %v1857 = vsel %vm1856, %v1730, %v1855
    %vm1858 = vcmask 1045509
    %v1859 = vsel %vm1858, %v1739, %v1857
    %vm1860 = vcmask 1046534
    %v1861 = vsel %vm1860, %v1748, %v1859
    %vm1862 = vcmask 1047559
    %v1863 = vsel %vm1862, %v1757, %v1861
    %v1864 = vsel %vm1850, %v1775, %v1766
    %v1865 = vsel %vm1852, %v1784, %v1864
    %v1866 = vsel %vm1854, %v1793, %v1865
    %v1867 = vsel %vm1856, %v1802, %v1866
    %v1868 = vsel %vm1858, %v1811, %v1867
    %v1869 = vsel %vm1860, %v1820, %v1868
    %v1870 = vsel %vm1862, %v1829, %v1869
    %1873 = vst [vmem:[#allocation2] sm:$0xff] %v1863
    %1874 = vst [vmem:[#allocation2 + $0x8] sm:$0xff] %v1870
  $region33: #{pointnet2_based_forward.3} parent=0 // pred_fallthru
    _
  %p1875 = scmp.gt.s32.totalorder 0, 0
  // Predicated region
  $region34: #{pointnet2_based_forward.3} parent=0 // pred_check
    %p1876 = pneg %p1875
  $region35: #{pointnet2_based_forward.3} parent=0 // pred_check_branch
    %1878 = sbr.rel (%p1876) target = $region37
  $region36: #{pointnet2_based_forward.3} parent=0 // pred_region
    %v1879 = vld [vmem:[#allocation2] sm:$0xff]
    %v1880 = vld [vmem:[#allocation2 + $0x8] sm:$0xff]
    %vm1897 = vcmask 1041409
    %v1898 = vsel %vm1897, %v1703, %v1694
    %vm1899 = vcmask 1042434
    %v1900 = vsel %vm1899, %v1712, %v1898
    %vm1901 = vcmask 1043459
    %v1902 = vsel %vm1901, %v1721, %v1900
    %vm1903 = vcmask 1044484
    %v1904 = vsel %vm1903, %v1730, %v1902
    %vm1905 = vcmask 1045509
    %v1906 = vsel %vm1905, %v1739, %v1904
    %vm1907 = vcmask 1046534
    %v1908 = vsel %vm1907, %v1748, %v1906
    %vm1909 = vcmask 1047559
    %v1910 = vsel %vm1909, %v1757, %v1908
    %v1911 = vsel %vm1897, %v1775, %v1766
    %v1912 = vsel %vm1899, %v1784, %v1911
    %v1913 = vsel %vm1901, %v1793, %v1912
    %v1914 = vsel %vm1903, %v1802, %v1913
    %v1915 = vsel %vm1905, %v1811, %v1914
    %v1916 = vsel %vm1907, %v1820, %v1915
    %v1917 = vsel %vm1909, %v1829, %v1916
    %v1920 = vmax.f32 %v1879, %v1910
    %v1921 = vmax.f32 %v1880, %v1917
    %1922 = vst [vmem:[#allocation2] sm:$0xff] %v1920
    %1923 = vst [vmem:[#allocation2 + $0x8] sm:$0xff] %v1921
  $region37: #{pointnet2_based_forward.3} parent=0 // pred_fallthru
    _
  // Predicated region
  $region38: #{pointnet2_based_forward.3} parent=0 // pred_check
    %p1924 = pneg %p1830
  $region39: #{pointnet2_based_forward.3} parent=0 // pred_check_branch
    %1926 = sbr.rel (%p1924) target = $region41
  $region40: #{pointnet2_based_forward.3} parent=0 // pred_region
    %v1927 = vld [vmem:[#allocation2] sm:$0xff]
    %v1928 = vld [vmem:[#allocation2 + $0x8] sm:$0xff]
    %v1929 = vld [vmem:[%s6] sm:$0x1]
    %v1931 = vlaneseq
    %v1932 = vshrl.u32 %v1931, 7
    %v1933 = vsub.s32 0, %v1932
    %v1934 = vrot.slane %v1929, %v1933
    %v1936 = vadd.f32 %v1927, %v1934
    %v1937 = vadd.f32 %v1928, %v1934
    %v1938 = vmax.f32 %v1936, 0.0
    %v1939 = vmax.f32 %v1937, 0.0
    %v1940 = vpack.c.bf16 %v1939, %v1938
    %v1942 = vunpack.c.l.b16 %v1940
    %v1943 = vunpack.c.h.b16 %v1940
    %v1944 = vpack.c.b16 %v1942, %v1942
    %v1945 = vpack.c.b16 %v1943, %v1943
    %1948 = vst [vmem:[%s7] sm:$0xf] %v1944
    %1949 = vst [vmem:[%s7 + $0x4] sm:$0xf] %v1945
  $region41: #{pointnet2_based_forward.3} parent=0 // pred_fallthru
    _
  // Predicated region
  $region42: #{pointnet2_based_forward.3} parent=0 // pred_check
    _
  $region43: #{pointnet2_based_forward.3} parent=0 // pred_check_branch
    %1951 = sbr.rel (0) target = $region45
  $region44: #{pointnet2_based_forward.3} parent=0 // pred_region
    _
  $region45: #{pointnet2_based_forward.3} parent=0 // pred_fallthru
    _
  // Predicated region
  $region46: #{pointnet2_based_forward.3} parent=0 // pred_check
    _
  $region47: #{pointnet2_based_forward.3} parent=0 // pred_check_branch
    %1953 = sbr.rel (0) target = $region49
  $region48: #{pointnet2_based_forward.3} parent=0 // pred_region
    _
  $region49: #{pointnet2_based_forward.3} parent=0 // pred_fallthru
    _

// kernel: pointnet2_based_forward.4
$region0: #{pointnet2_based_forward.4}
  #allocation0 [shape = 'u32[]', space=smem, size = 0x4, offset = 0x4, fixed_abs, tag = 'smem constant byte address 0x4 - core index']
  #allocation1 [shape = 'u32[144,128]{1,0:T(1,128)}', space=vmem, size = 0x12000, scoped, tag = 'internal scratch']
  #allocation2 [shape = 'f32[16,256]{1,0:T(8,128)}', space=vmem, size = 0x4000, scoped, tag = 'scratch operand']
  %s0 = inlined_call_operand.vmem [shape: bf16[16,8,128], index: 0, kind: input, shape index: {}]
  %s1 = inlined_call_operand.vmem [shape: bf16[16,8,3], index: 1, kind: input, shape index: {}]
  %s2 = inlined_call_operand.vmem [shape: bf16[128,128], index: 2, kind: input, shape index: {}]
  %s3 = inlined_call_operand.vmem [shape: bf16[3,128], index: 3, kind: input, shape index: {}]
  %s4 = inlined_call_operand.vmem [shape: f32[1,128], index: 4, kind: input, shape index: {}]
  %s5 = inlined_call_operand.vmem [shape: bf16[128,128], index: 5, kind: input, shape index: {}]
  %s6 = inlined_call_operand.vmem [shape: f32[1,128], index: 6, kind: input, shape index: {}]
  %s7 = inlined_call_operand.vmem [shape: bf16[128,256], index: 7, kind: input, shape index: {}]
  %s8 = inlined_call_operand.vmem [shape: f32[1,256], index: 8, kind: input, shape index: {}]
  %s9 = inlined_call_operand.vmem [shape: bf16[16,256], index: 9, kind: output, shape index: {}]
  %s10 = sld [smem:[#allocation0]]
  $region58: #{pointnet2_based_forward.4} parent=0
    _
  %s12 = ssub.s32 1, %s10
  %s13 = scalar_select 0, %s12, %s10
  // Predicated region
  $region2: #{pointnet2_based_forward.4} parent=0 // pred_check
    _
  $region3: #{pointnet2_based_forward.4} parent=0 // pred_check_branch
    %15 = sbr.rel (0) target = $region5
  $region4: #{pointnet2_based_forward.4} parent=0 // pred_region
    _
  $region5: #{pointnet2_based_forward.4} parent=0 // pred_fallthru
    _
  // Predicated region
  $region6: #{pointnet2_based_forward.4} parent=0 // pred_check
    _
  $region7: #{pointnet2_based_forward.4} parent=0 // pred_check_branch
    %17 = sbr.rel (0) target = $region9
  $region8: #{pointnet2_based_forward.4} parent=0 // pred_region
    _
  $region9: #{pointnet2_based_forward.4} parent=0 // pred_fallthru
    _
  // Predicated region
  $region10: #{pointnet2_based_forward.4} parent=0 // pred_check
    _
  $region11: #{pointnet2_based_forward.4} parent=0 // pred_check_branch
    %19 = sbr.rel (0) target = $region13
  $region12: #{pointnet2_based_forward.4} parent=0 // pred_region
    _
  $region13: #{pointnet2_based_forward.4} parent=0 // pred_fallthru
    _
  // Predicated region
  $region14: #{pointnet2_based_forward.4} parent=0 // pred_check
    _
  $region15: #{pointnet2_based_forward.4} parent=0 // pred_check_branch
    %21 = sbr.rel (0) target = $region17
  $region16: #{pointnet2_based_forward.4} parent=0 // pred_region
    _
  $region17: #{pointnet2_based_forward.4} parent=0 // pred_fallthru
    _
  // Predicated region
  $region18: #{pointnet2_based_forward.4} parent=0 // pred_check
    _
  $region19: #{pointnet2_based_forward.4} parent=0 // pred_check_branch
    %23 = sbr.rel (0) target = $region21
  $region20: #{pointnet2_based_forward.4} parent=0 // pred_region
    _
  $region21: #{pointnet2_based_forward.4} parent=0 // pred_fallthru
    _
  // Predicated region
  $region22: #{pointnet2_based_forward.4} parent=0 // pred_check
    _
  $region23: #{pointnet2_based_forward.4} parent=0 // pred_check_branch
    %25 = sbr.rel (0) target = $region25
  $region24: #{pointnet2_based_forward.4} parent=0 // pred_region
    _
  $region25: #{pointnet2_based_forward.4} parent=0 // pred_fallthru
    _
  // Predicated region
  $region26: #{pointnet2_based_forward.4} parent=0 // pred_check
    _
  $region27: #{pointnet2_based_forward.4} parent=0 // pred_check_branch
    %27 = sbr.rel (0) target = $region29
  $region28: #{pointnet2_based_forward.4} parent=0 // pred_region
    _
  $region29: #{pointnet2_based_forward.4} parent=0 // pred_fallthru
    _
  // Predicated region
  $region30: #{pointnet2_based_forward.4} parent=0 // pred_check
    _
  $region31: #{pointnet2_based_forward.4} parent=0 // pred_check_branch
    %29 = sbr.rel (0) target = $region33
  $region32: #{pointnet2_based_forward.4} parent=0 // pred_region
    _
  $region33: #{pointnet2_based_forward.4} parent=0 // pred_fallthru
    _
  // Predicated region
  $region34: #{pointnet2_based_forward.4} parent=0 // pred_check
    _
  $region35: #{pointnet2_based_forward.4} parent=0 // pred_check_branch
    %31 = sbr.rel (0) target = $region37
  $region36: #{pointnet2_based_forward.4} parent=0 // pred_region
    _
  $region37: #{pointnet2_based_forward.4} parent=0 // pred_fallthru
    _
  %v33 = vld [vmem:[%s1] sm:$0xf]
  %v34 = vld [vmem:[%s1 + $0x4] sm:$0xf]
  %v35 = vld [vmem:[%s1 + $0x8] sm:$0xf]
  %v36 = vld [vmem:[%s1 + $0xc] sm:$0xf]
  %v37 = vld [vmem:[%s1 + $0x10] sm:$0xf]
  %v38 = vld [vmem:[%s1 + $0x14] sm:$0xf]
  %v39 = vld [vmem:[%s1 + $0x18] sm:$0xf]
  %v40 = vld [vmem:[%s1 + $0x1c] sm:$0xf]
  %v41 = vld [vmem:[%s1 + $0x20] sm:$0xf]
  %v42 = vld [vmem:[%s1 + $0x24] sm:$0xf]
  %v43 = vld [vmem:[%s1 + $0x28] sm:$0xf]
  %v44 = vld [vmem:[%s1 + $0x2c] sm:$0xf]
  %v45 = vld [vmem:[%s1 + $0x30] sm:$0xf]
  %v46 = vld [vmem:[%s1 + $0x34] sm:$0xf]
  %v47 = vld [vmem:[%s1 + $0x38] sm:$0xf]
  %v48 = vld [vmem:[%s1 + $0x3c] sm:$0xf]
  %v49 = vld [vmem:[%s3] sm:$0x3]
  %v50 = vld [vmem:[%s0] sm:$0xf]
  %v51 = vld [vmem:[%s0 + $0x4] sm:$0xf]
  %v52 = vld [vmem:[%s0 + $0x8] sm:$0xf]
  %v53 = vld [vmem:[%s0 + $0xc] sm:$0xf]
  %v54 = vld [vmem:[%s0 + $0x10] sm:$0xf]
  %v55 = vld [vmem:[%s0 + $0x14] sm:$0xf]
  %v56 = vld [vmem:[%s0 + $0x18] sm:$0xf]
  %v57 = vld [vmem:[%s0 + $0x1c] sm:$0xf]
  %v58 = vld [vmem:[%s0 + $0x20] sm:$0xf]
  %v59 = vld [vmem:[%s0 + $0x24] sm:$0xf]
  %v60 = vld [vmem:[%s0 + $0x28] sm:$0xf]
  %v61 = vld [vmem:[%s0 + $0x2c] sm:$0xf]
  %v62 = vld [vmem:[%s0 + $0x30] sm:$0xf]
  %v63 = vld [vmem:[%s0 + $0x34] sm:$0xf]
  %v64 = vld [vmem:[%s0 + $0x38] sm:$0xf]
  %v65 = vld [vmem:[%s0 + $0x3c] sm:$0xf]
  %v66 = vld [vmem:[%s2] sm:$0xf]
  %v67 = vld [vmem:[%s2 + $0x4] sm:$0xf]
  %v68 = vld [vmem:[%s2 + $0x8] sm:$0xf]
  %v69 = vld [vmem:[%s2 + $0xc] sm:$0xf]
  %v70 = vld [vmem:[%s2 + $0x10] sm:$0xf]
  %v71 = vld [vmem:[%s2 + $0x14] sm:$0xf]
  %v72 = vld [vmem:[%s2 + $0x18] sm:$0xf]
  %v73 = vld [vmem:[%s2 + $0x1c] sm:$0xf]
  %v74 = vld [vmem:[%s2 + $0x20] sm:$0xf]
  %v75 = vld [vmem:[%s2 + $0x24] sm:$0xf]
  %v76 = vld [vmem:[%s2 + $0x28] sm:$0xf]
  %v77 = vld [vmem:[%s2 + $0x2c] sm:$0xf]
  %v78 = vld [vmem:[%s2 + $0x30] sm:$0xf]
  %v79 = vld [vmem:[%s2 + $0x34] sm:$0xf]
  %v80 = vld [vmem:[%s2 + $0x38] sm:$0xf]
  %v81 = vld [vmem:[%s2 + $0x3c] sm:$0xf]
  %v98 = vunpack.c.l.b16 %v50
  %v99 = vunpack.c.l.b16 %v51
  %v100 = vunpack.c.l.b16 %v52
  %v101 = vunpack.c.l.b16 %v53
  %v102 = vunpack.c.l.b16 %v54
  %v103 = vunpack.c.l.b16 %v55
  %v104 = vunpack.c.l.b16 %v56
  %v105 = vunpack.c.l.b16 %v57
  %v106 = vunpack.c.l.b16 %v58
  %v107 = vunpack.c.l.b16 %v59
  %v108 = vunpack.c.l.b16 %v60
  %v109 = vunpack.c.l.b16 %v61
  %v110 = vunpack.c.l.b16 %v62
  %v111 = vunpack.c.l.b16 %v63
  %v112 = vunpack.c.l.b16 %v64
  %v113 = vunpack.c.l.b16 %v65
  %v114 = vpack.c.b16 %v99, %v98
  %v115 = vpack.c.b16 %v101, %v100
  %v116 = vpack.c.b16 %v103, %v102
  %v117 = vpack.c.b16 %v105, %v104
  %v118 = vpack.c.b16 %v107, %v106
  %v119 = vpack.c.b16 %v109, %v108
  %v120 = vpack.c.b16 %v111, %v110
  %v121 = vpack.c.b16 %v113, %v112
  %v146 = vunpack.c.l.b16 %v66
  %v147 = vunpack.c.l.b16 %v67
  %v148 = vunpack.c.l.b16 %v68
  %v149 = vunpack.c.l.b16 %v69
  %v150 = vunpack.c.l.b16 %v70
  %v151 = vunpack.c.l.b16 %v71
  %v152 = vunpack.c.l.b16 %v72
  %v153 = vunpack.c.l.b16 %v73
  %v154 = vunpack.c.l.b16 %v74
  %v155 = vunpack.c.l.b16 %v75
  %v156 = vunpack.c.l.b16 %v76
  %v157 = vunpack.c.l.b16 %v77
  %v158 = vunpack.c.l.b16 %v78
  %v159 = vunpack.c.l.b16 %v79
  %v160 = vunpack.c.l.b16 %v80
  %v161 = vunpack.c.l.b16 %v81
  %v162 = vpack.c.b16 %v147, %v146
  %v163 = vpack.c.b16 %v149, %v148
  %v164 = vpack.c.b16 %v151, %v150
  %v165 = vpack.c.b16 %v153, %v152
  %v166 = vpack.c.b16 %v155, %v154
  %v167 = vpack.c.b16 %v157, %v156
  %v168 = vpack.c.b16 %v159, %v158
  %v169 = vpack.c.b16 %v161, %v160
  %178 = vmatprep.subr.bf16.mxu0 0
  %179 = vmatpush1.bf16.msra.mxu0 %v169
  %180 = vmatprep.subr.bf16.mxu0 0
  %181 = vmatpush1.bf16.msra.mxu0 %v168
  %182 = vmatprep.subr.bf16.mxu0 0
  %183 = vmatpush1.bf16.msra.mxu0 %v167
  %184 = vmatprep.subr.bf16.mxu0 0
  %185 = vmatpush1.bf16.msra.mxu0 %v166
  %186 = vmatprep.subr.bf16.mxu0 0
  %187 = vmatpush1.bf16.msra.mxu0 %v165
  %188 = vmatprep.subr.bf16.mxu0 0
  %189 = vmatpush1.bf16.msra.mxu0 %v164
  %190 = vmatprep.subr.bf16.mxu0 0
  %191 = vmatpush1.bf16.msra.mxu0 %v163
  %192 = vmatprep.subr.bf16.mxu0 0
  %193 = vmatpush1.bf16.msra.mxu0 %v162
  %194 = vmatprep.subr.bf16.mxu0 0
  %195 = vmatpush2.bf16.msra.mxu0 0
  %196 = vmatprep.subr.bf16.mxu0 0
  %197 = vmatpush2.bf16.msra.mxu0 0
  %198 = vmatprep.subr.bf16.mxu0 0
  %199 = vmatpush2.bf16.msra.mxu0 0
  %200 = vmatprep.subr.bf16.mxu0 0
  %201 = vmatpush2.bf16.msra.mxu0 0
  %202 = vmatprep.subr.bf16.mxu0 0
  %203 = vmatpush2.bf16.msra.mxu0 0
  %204 = vmatprep.subr.bf16.mxu0 0
  %205 = vmatpush2.bf16.msra.mxu0 0
  %206 = vmatprep.subr.bf16.mxu0 0
  %207 = vmatpush2.bf16.msra.mxu0 0
  %208 = vmatprep.subr.bf16.mxu0 0
  %209 = vmatpush2.bf16.msra.mxu0 0
  %210 = vmatprep.mubr.bf16.mxu0 0
  %211 = vmatmul.mubr.bf16.gmra.mxu0 %v114
  %v212 = vpop.f32.mrf.mxu0
  %v213 = vadd.f32 0.0, %v212
  %v214 = vpop.f32.mrf.mxu0
  %v215 = vpop.f32.mrf.mxu0
  %v216 = vadd.f32 0.0, %v215
  %v217 = vpop.f32.mrf.mxu0
  %218 = vmatprep.mubr.bf16.mxu0 0
  %219 = vmatmul.mubr.bf16.gmra.mxu0 %v115
  %v220 = vpop.f32.mrf.mxu0
  %v221 = vadd.f32 0.0, %v220
  %v222 = vpop.f32.mrf.mxu0
  %v223 = vpop.f32.mrf.mxu0
  %v224 = vadd.f32 0.0, %v223
  %v225 = vpop.f32.mrf.mxu0
  %226 = vmatprep.mubr.bf16.mxu0 0
  %227 = vmatmul.mubr.bf16.gmra.mxu0 %v116
  %v228 = vpop.f32.mrf.mxu0
  %v229 = vadd.f32 0.0, %v228
  %v230 = vpop.f32.mrf.mxu0
  %v231 = vpop.f32.mrf.mxu0
  %v232 = vadd.f32 0.0, %v231
  %v233 = vpop.f32.mrf.mxu0
  %234 = vmatprep.mubr.bf16.mxu0 0
  %235 = vmatmul.mubr.bf16.gmra.mxu0 %v117
  %v236 = vpop.f32.mrf.mxu0
  %v237 = vadd.f32 0.0, %v236
  %v238 = vpop.f32.mrf.mxu0
  %v239 = vpop.f32.mrf.mxu0
  %v240 = vadd.f32 0.0, %v239
  %v241 = vpop.f32.mrf.mxu0
  %242 = vmatprep.mubr.bf16.mxu0 0
  %243 = vmatmul.mubr.bf16.gmra.mxu0 %v118
  %v244 = vpop.f32.mrf.mxu0
  %v245 = vadd.f32 0.0, %v244
  %v246 = vpop.f32.mrf.mxu0
  %v247 = vpop.f32.mrf.mxu0
  %v248 = vadd.f32 0.0, %v247
  %v249 = vpop.f32.mrf.mxu0
  %250 = vmatprep.mubr.bf16.mxu0 0
  %251 = vmatmul.mubr.bf16.gmra.mxu0 %v119
  %v252 = vpop.f32.mrf.mxu0
  %v253 = vadd.f32 0.0, %v252
  %v254 = vpop.f32.mrf.mxu0
  %v255 = vpop.f32.mrf.mxu0
  %v256 = vadd.f32 0.0, %v255
  %v257 = vpop.f32.mrf.mxu0
  %258 = vmatprep.mubr.bf16.mxu0 0
  %259 = vmatmul.mubr.bf16.gmra.mxu0 %v120
  %v260 = vpop.f32.mrf.mxu0
  %v261 = vadd.f32 0.0, %v260
  %v262 = vpop.f32.mrf.mxu0
  %v263 = vpop.f32.mrf.mxu0
  %v264 = vadd.f32 0.0, %v263
  %v265 = vpop.f32.mrf.mxu0
  %266 = vmatprep.mubr.bf16.mxu0 0
  %267 = vmatmul.mubr.bf16.gmra.mxu0 %v121
  %v268 = vpop.f32.mrf.mxu0
  %v269 = vadd.f32 0.0, %v268
  %v270 = vpop.f32.mrf.mxu0
  %v271 = vpop.f32.mrf.mxu0
  %v272 = vadd.f32 0.0, %v271
  %v273 = vpop.f32.mrf.mxu0
  %274 = vdwg.mxu0
  %v291 = vunpack.c.l.b16 %v33
  %v292 = vunpack.c.l.b16 %v34
  %v293 = vunpack.c.l.b16 %v35
  %v294 = vunpack.c.l.b16 %v36
  %v295 = vunpack.c.l.b16 %v37
  %v296 = vunpack.c.l.b16 %v38
  %v297 = vunpack.c.l.b16 %v39
  %v298 = vunpack.c.l.b16 %v40
  %v299 = vunpack.c.l.b16 %v41
  %v300 = vunpack.c.l.b16 %v42
  %v301 = vunpack.c.l.b16 %v43
  %v302 = vunpack.c.l.b16 %v44
  %v303 = vunpack.c.l.b16 %v45
  %v304 = vunpack.c.l.b16 %v46
  %v305 = vunpack.c.l.b16 %v47
  %v306 = vunpack.c.l.b16 %v48
  %v307 = vpack.c.b16 %v292, %v291
  %v308 = vpack.c.b16 %v294, %v293
  %v309 = vpack.c.b16 %v296, %v295
  %v310 = vpack.c.b16 %v298, %v297
  %v311 = vpack.c.b16 %v300, %v299
  %v312 = vpack.c.b16 %v302, %v301
  %v313 = vpack.c.b16 %v304, %v303
  %v314 = vpack.c.b16 %v306, %v305
  %vm315 = vcmask 23552
  %v317 = vsel %vm315, %v307, 0
  %v320 = vsel %vm315, %v308, 0
  %v323 = vsel %vm315, %v309, 0
  %v326 = vsel %vm315, %v310, 0
  %v329 = vsel %vm315, %v311, 0
  %v332 = vsel %vm315, %v312, 0
  %v335 = vsel %vm315, %v313, 0
  %v338 = vsel %vm315, %v314, 0
  %vm340 = vcmask 1040384
  %vm341 = vcmask 1041408
  %v342 = vsel %vm340, 4294967295, 65535
  %v343 = vsel %vm341, %v342, 0
  %v345 = vand.u32 %v49, %v343
  %347 = vmatprep.subr.bf16.mxu0 0
  %348 = vmatpush1.bf16.msra.mxu0 0
  %349 = vmatprep.subr.bf16.mxu0 0
  %350 = vmatpush1.bf16.msra.mxu0 0
  %351 = vmatprep.subr.bf16.mxu0 0
  %352 = vmatpush1.bf16.msra.mxu0 0
  %353 = vmatprep.subr.bf16.mxu0 0
  %354 = vmatpush1.bf16.msra.mxu0 0
  %355 = vmatprep.subr.bf16.mxu0 0
  %356 = vmatpush1.bf16.msra.mxu0 0
  %357 = vmatprep.subr.bf16.mxu0 0
  %358 = vmatpush1.bf16.msra.mxu0 0
  %359 = vmatprep.subr.bf16.mxu0 0
  %360 = vmatpush1.bf16.msra.mxu0 0
  %361 = vmatprep.subr.bf16.mxu0 0
  %362 = vmatpush1.bf16.msra.mxu0 %v345
  %363 = vmatprep.subr.bf16.mxu0 0
  %364 = vmatpush2.bf16.msra.mxu0 0
  %365 = vmatprep.subr.bf16.mxu0 0
  %366 = vmatpush2.bf16.msra.mxu0 0
  %367 = vmatprep.subr.bf16.mxu0 0
  %368 = vmatpush2.bf16.msra.mxu0 0
  %369 = vmatprep.subr.bf16.mxu0 0
  %370 = vmatpush2.bf16.msra.mxu0 0
  %371 = vmatprep.subr.bf16.mxu0 0
  %372 = vmatpush2.bf16.msra.mxu0 0
  %373 = vmatprep.subr.bf16.mxu0 0
  %374 = vmatpush2.bf16.msra.mxu0 0
  %375 = vmatprep.subr.bf16.mxu0 0
  %376 = vmatpush2.bf16.msra.mxu0 0
  %377 = vmatprep.subr.bf16.mxu0 0
  %378 = vmatpush2.bf16.msra.mxu0 0
  %379 = vmatprep.mubr.bf16.mxu0 0
  %380 = vmatmul.mubr.bf16.gmra.mxu0 %v317
  %v381 = vpop.f32.mrf.mxu0
  %v382 = vadd.f32 %v213, %v381
  %v383 = vpop.f32.mrf.mxu0
  %v384 = vpop.f32.mrf.mxu0
  %v385 = vadd.f32 %v216, %v384
  %v386 = vpop.f32.mrf.mxu0
  %387 = vmatprep.mubr.bf16.mxu0 0
  %388 = vmatmul.mubr.bf16.gmra.mxu0 %v320
  %v389 = vpop.f32.mrf.mxu0
  %v390 = vadd.f32 %v221, %v389
  %v391 = vpop.f32.mrf.mxu0
  %v392 = vpop.f32.mrf.mxu0
  %v393 = vadd.f32 %v224, %v392
  %v394 = vpop.f32.mrf.mxu0
  %395 = vmatprep.mubr.bf16.mxu0 0
  %396 = vmatmul.mubr.bf16.gmra.mxu0 %v323
  %v397 = vpop.f32.mrf.mxu0
  %v398 = vadd.f32 %v229, %v397
  %v399 = vpop.f32.mrf.mxu0
  %v400 = vpop.f32.mrf.mxu0
  %v401 = vadd.f32 %v232, %v400
  %v402 = vpop.f32.mrf.mxu0
  %403 = vmatprep.mubr.bf16.mxu0 0
  %404 = vmatmul.mubr.bf16.gmra.mxu0 %v326
  %v405 = vpop.f32.mrf.mxu0
  %v406 = vadd.f32 %v237, %v405
  %v407 = vpop.f32.mrf.mxu0
  %v408 = vpop.f32.mrf.mxu0
  %v409 = vadd.f32 %v240, %v408
  %v410 = vpop.f32.mrf.mxu0
  %411 = vmatprep.mubr.bf16.mxu0 0
  %412 = vmatmul.mubr.bf16.gmra.mxu0 %v329
  %v413 = vpop.f32.mrf.mxu0
  %v414 = vadd.f32 %v245, %v413
  %v415 = vpop.f32.mrf.mxu0
  %v416 = vpop.f32.mrf.mxu0
  %v417 = vadd.f32 %v248, %v416
  %v418 = vpop.f32.mrf.mxu0
  %419 = vmatprep.mubr.bf16.mxu0 0
  %420 = vmatmul.mubr.bf16.gmra.mxu0 %v332
  %v421 = vpop.f32.mrf.mxu0
  %v422 = vadd.f32 %v253, %v421
  %v423 = vpop.f32.mrf.mxu0
  %v424 = vpop.f32.mrf.mxu0
  %v425 = vadd.f32 %v256, %v424
  %v426 = vpop.f32.mrf.mxu0
  %427 = vmatprep.mubr.bf16.mxu0 0
  %428 = vmatmul.mubr.bf16.gmra.mxu0 %v335
  %v429 = vpop.f32.mrf.mxu0
  %v430 = vadd.f32 %v261, %v429
  %v431 = vpop.f32.mrf.mxu0
  %v432 = vpop.f32.mrf.mxu0
  %v433 = vadd.f32 %v264, %v432
  %v434 = vpop.f32.mrf.mxu0
  %435 = vmatprep.mubr.bf16.mxu0 0
  %436 = vmatmul.mubr.bf16.gmra.mxu0 %v338
  %v437 = vpop.f32.mrf.mxu0
  %v438 = vadd.f32 %v269, %v437
  %v439 = vpop.f32.mrf.mxu0
  %v440 = vpop.f32.mrf.mxu0
  %v441 = vadd.f32 %v272, %v440
  %v442 = vpop.f32.mrf.mxu0
  %443 = vdwg.mxu0
  %v444 = vld [vmem:[%s4] sm:$0x1]
  %v446 = vlaneseq
  %v447 = vshrl.u32 %v446, 7
  %v448 = vsub.s32 0, %v447
  %v449 = vrot.slane %v444, %v448
  %v451 = vadd.f32 %v382, %v449
  %v452 = vadd.f32 %v385, %v449
  %v453 = vadd.f32 %v390, %v449
  %v454 = vadd.f32 %v393, %v449
  %v455 = vadd.f32 %v398, %v449
  %v456 = vadd.f32 %v401, %v449
  %v457 = vadd.f32 %v406, %v449
  %v458 = vadd.f32 %v409, %v449
  %v459 = vadd.f32 %v414, %v449
  %v460 = vadd.f32 %v417, %v449
  %v461 = vadd.f32 %v422, %v449
  %v462 = vadd.f32 %v425, %v449
  %v463 = vadd.f32 %v430, %v449
  %v464 = vadd.f32 %v433, %v449
  %v465 = vadd.f32 %v438, %v449
  %v466 = vadd.f32 %v441, %v449
  %v467 = vmax.f32 %v451, 0.0
  %v468 = vmax.f32 %v452, 0.0
  %v469 = vmax.f32 %v453, 0.0
  %v470 = vmax.f32 %v454, 0.0
  %v471 = vmax.f32 %v455, 0.0
  %v472 = vmax.f32 %v456, 0.0
  %v473 = vmax.f32 %v457, 0.0
  %v474 = vmax.f32 %v458, 0.0
  %v475 = vmax.f32 %v459, 0.0
  %v476 = vmax.f32 %v460, 0.0
  %v477 = vmax.f32 %v461, 0.0
  %v478 = vmax.f32 %v462, 0.0
  %v479 = vmax.f32 %v463, 0.0
  %v480 = vmax.f32 %v464, 0.0
  %v481 = vmax.f32 %v465, 0.0
  %v482 = vmax.f32 %v466, 0.0
  %v483 = vpack.c.bf16 %v468, %v467
  %v484 = vpack.c.bf16 %v470, %v469
  %v485 = vpack.c.bf16 %v472, %v471
  %v486 = vpack.c.bf16 %v474, %v473
  %v487 = vpack.c.bf16 %v476, %v475
  %v488 = vpack.c.bf16 %v478, %v477
  %v489 = vpack.c.bf16 %v480, %v479
  %v490 = vpack.c.bf16 %v482, %v481
  %v491 = vld [vmem:[%s5] sm:$0xf]
  %v492 = vld [vmem:[%s5 + $0x4] sm:$0xf]
  %v493 = vld [vmem:[%s5 + $0x8] sm:$0xf]
  %v494 = vld [vmem:[%s5 + $0xc] sm:$0xf]
  %v495 = vld [vmem:[%s5 + $0x10] sm:$0xf]
  %v496 = vld [vmem:[%s5 + $0x14] sm:$0xf]
  %v497 = vld [vmem:[%s5 + $0x18] sm:$0xf]
  %v498 = vld [vmem:[%s5 + $0x1c] sm:$0xf]
  %v499 = vld [vmem:[%s5 + $0x20] sm:$0xf]
  %v500 = vld [vmem:[%s5 + $0x24] sm:$0xf]
  %v501 = vld [vmem:[%s5 + $0x28] sm:$0xf]
  %v502 = vld [vmem:[%s5 + $0x2c] sm:$0xf]
  %v503 = vld [vmem:[%s5 + $0x30] sm:$0xf]
  %v504 = vld [vmem:[%s5 + $0x34] sm:$0xf]
  %v505 = vld [vmem:[%s5 + $0x38] sm:$0xf]
  %v506 = vld [vmem:[%s5 + $0x3c] sm:$0xf]
  %v507 = vld [vmem:[%s6] sm:$0x1]
  %v509 = vlaneseq
  %v510 = vshrl.u32 %v509, 7
  %v511 = vsub.s32 0, %v510
  %v512 = vrot.slane %v507, %v511
  %v530 = vunpack.c.l.b16 %v491
  %v531 = vunpack.c.l.b16 %v492
  %v532 = vunpack.c.l.b16 %v493
  %v533 = vunpack.c.l.b16 %v494
  %v534 = vunpack.c.l.b16 %v495
  %v535 = vunpack.c.l.b16 %v496
  %v536 = vunpack.c.l.b16 %v497
  %v537 = vunpack.c.l.b16 %v498
  %v538 = vunpack.c.l.b16 %v499
  %v539 = vunpack.c.l.b16 %v500
  %v540 = vunpack.c.l.b16 %v501
  %v541 = vunpack.c.l.b16 %v502
  %v542 = vunpack.c.l.b16 %v503
  %v543 = vunpack.c.l.b16 %v504
  %v544 = vunpack.c.l.b16 %v505
  %v545 = vunpack.c.l.b16 %v506
  %v546 = vpack.c.b16 %v531, %v530
  %v547 = vpack.c.b16 %v533, %v532
  %v548 = vpack.c.b16 %v535, %v534
  %v549 = vpack.c.b16 %v537, %v536
  %v550 = vpack.c.b16 %v539, %v538
  %v551 = vpack.c.b16 %v541, %v540
  %v552 = vpack.c.b16 %v543, %v542
  %v553 = vpack.c.b16 %v545, %v544
  %562 = vmatprep.subr.bf16.mxu0 0
  %563 = vmatpush1.bf16.msra.mxu0 %v553
  %564 = vmatprep.subr.bf16.mxu0 0
  %565 = vmatpush1.bf16.msra.mxu0 %v552
  %566 = vmatprep.subr.bf16.mxu0 0
  %567 = vmatpush1.bf16.msra.mxu0 %v551
  %568 = vmatprep.subr.bf16.mxu0 0
  %569 = vmatpush1.bf16.msra.mxu0 %v550
  %570 = vmatprep.subr.bf16.mxu0 0
  %571 = vmatpush1.bf16.msra.mxu0 %v549
  %572 = vmatprep.subr.bf16.mxu0 0
  %573 = vmatpush1.bf16.msra.mxu0 %v548
  %574 = vmatprep.subr.bf16.mxu0 0
  %575 = vmatpush1.bf16.msra.mxu0 %v547
  %576 = vmatprep.subr.bf16.mxu0 0
  %577 = vmatpush1.bf16.msra.mxu0 %v546
  %578 = vmatprep.subr.bf16.mxu0 0
  %579 = vmatpush2.bf16.msra.mxu0 0
  %580 = vmatprep.subr.bf16.mxu0 0
  %581 = vmatpush2.bf16.msra.mxu0 0
  %582 = vmatprep.subr.bf16.mxu0 0
  %583 = vmatpush2.bf16.msra.mxu0 0
  %584 = vmatprep.subr.bf16.mxu0 0
  %585 = vmatpush2.bf16.msra.mxu0 0
  %586 = vmatprep.subr.bf16.mxu0 0
  %587 = vmatpush2.bf16.msra.mxu0 0
  %588 = vmatprep.subr.bf16.mxu0 0
  %589 = vmatpush2.bf16.msra.mxu0 0
  %590 = vmatprep.subr.bf16.mxu0 0
  %591 = vmatpush2.bf16.msra.mxu0 0
  %592 = vmatprep.subr.bf16.mxu0 0
  %593 = vmatpush2.bf16.msra.mxu0 0
  %594 = vmatprep.mubr.bf16.mxu0 0
  %595 = vmatmul.mubr.bf16.gmra.mxu0 %v483
  %v596 = vpop.f32.mrf.mxu0
  %v597 = vadd.f32 %v512, %v596
  %v598 = vpop.f32.mrf.mxu0
  %v599 = vpop.f32.mrf.mxu0
  %v600 = vadd.f32 %v512, %v599
  %v601 = vpop.f32.mrf.mxu0
  %602 = vmatprep.mubr.bf16.mxu0 0
  %603 = vmatmul.mubr.bf16.gmra.mxu0 %v484
  %v604 = vpop.f32.mrf.mxu0
  %v605 = vadd.f32 %v512, %v604
  %v606 = vpop.f32.mrf.mxu0
  %v607 = vpop.f32.mrf.mxu0
  %v608 = vadd.f32 %v512, %v607
  %v609 = vpop.f32.mrf.mxu0
  %610 = vmatprep.mubr.bf16.mxu0 0
  %611 = vmatmul.mubr.bf16.gmra.mxu0 %v485
  %v612 = vpop.f32.mrf.mxu0
  %v613 = vadd.f32 %v512, %v612
  %v614 = vpop.f32.mrf.mxu0
  %v615 = vpop.f32.mrf.mxu0
  %v616 = vadd.f32 %v512, %v615
  %v617 = vpop.f32.mrf.mxu0
  %618 = vmatprep.mubr.bf16.mxu0 0
  %619 = vmatmul.mubr.bf16.gmra.mxu0 %v486
  %v620 = vpop.f32.mrf.mxu0
  %v621 = vadd.f32 %v512, %v620
  %v622 = vpop.f32.mrf.mxu0
  %v623 = vpop.f32.mrf.mxu0
  %v624 = vadd.f32 %v512, %v623
  %v625 = vpop.f32.mrf.mxu0
  %626 = vmatprep.mubr.bf16.mxu0 0
  %627 = vmatmul.mubr.bf16.gmra.mxu0 %v487
  %v628 = vpop.f32.mrf.mxu0
  %v629 = vadd.f32 %v512, %v628
  %v630 = vpop.f32.mrf.mxu0
  %v631 = vpop.f32.mrf.mxu0
  %v632 = vadd.f32 %v512, %v631
  %v633 = vpop.f32.mrf.mxu0
  %634 = vmatprep.mubr.bf16.mxu0 0
  %635 = vmatmul.mubr.bf16.gmra.mxu0 %v488
  %v636 = vpop.f32.mrf.mxu0
  %v637 = vadd.f32 %v512, %v636
  %v638 = vpop.f32.mrf.mxu0
  %v639 = vpop.f32.mrf.mxu0
  %v640 = vadd.f32 %v512, %v639
  %v641 = vpop.f32.mrf.mxu0
  %642 = vmatprep.mubr.bf16.mxu0 0
  %643 = vmatmul.mubr.bf16.gmra.mxu0 %v489
  %v644 = vpop.f32.mrf.mxu0
  %v645 = vadd.f32 %v512, %v644
  %v646 = vpop.f32.mrf.mxu0
  %v647 = vpop.f32.mrf.mxu0
  %v648 = vadd.f32 %v512, %v647
  %v649 = vpop.f32.mrf.mxu0
  %650 = vmatprep.mubr.bf16.mxu0 0
  %651 = vmatmul.mubr.bf16.gmra.mxu0 %v490
  %v652 = vpop.f32.mrf.mxu0
  %v653 = vadd.f32 %v512, %v652
  %v654 = vpop.f32.mrf.mxu0
  %v655 = vpop.f32.mrf.mxu0
  %v656 = vadd.f32 %v512, %v655
  %v657 = vpop.f32.mrf.mxu0
  %658 = vdwg.mxu0
  %v659 = vmax.f32 %v597, 0.0
  %v660 = vmax.f32 %v600, 0.0
  %v661 = vmax.f32 %v605, 0.0
  %v662 = vmax.f32 %v608, 0.0
  %v663 = vmax.f32 %v613, 0.0
  %v664 = vmax.f32 %v616, 0.0
  %v665 = vmax.f32 %v621, 0.0
  %v666 = vmax.f32 %v624, 0.0
  %v667 = vmax.f32 %v629, 0.0
  %v668 = vmax.f32 %v632, 0.0
  %v669 = vmax.f32 %v637, 0.0
  %v670 = vmax.f32 %v640, 0.0
  %v671 = vmax.f32 %v645, 0.0
  %v672 = vmax.f32 %v648, 0.0
  %v673 = vmax.f32 %v653, 0.0
  %v674 = vmax.f32 %v656, 0.0
  %v675 = vpack.c.bf16 %v660, %v659
  %v676 = vpack.c.bf16 %v662, %v661
  %v677 = vpack.c.bf16 %v664, %v663
  %v678 = vpack.c.bf16 %v666, %v665
  %v679 = vpack.c.bf16 %v668, %v667
  %v680 = vpack.c.bf16 %v670, %v669
  %v681 = vpack.c.bf16 %v672, %v671
  %v682 = vpack.c.bf16 %v674, %v673
  %v683 = vld [vmem:[%s7] sm:$0xff]
  %v684 = vld [vmem:[%s7 + $0x8] sm:$0xff]
  %v685 = vld [vmem:[%s7 + $0x10] sm:$0xff]
  %v686 = vld [vmem:[%s7 + $0x18] sm:$0xff]
  %v687 = vld [vmem:[%s7 + $0x20] sm:$0xff]
  %v688 = vld [vmem:[%s7 + $0x28] sm:$0xff]
  %v689 = vld [vmem:[%s7 + $0x30] sm:$0xff]
  %v690 = vld [vmem:[%s7 + $0x38] sm:$0xff]
  %v691 = vld [vmem:[%s7 + $0x40] sm:$0xff]
  %v692 = vld [vmem:[%s7 + $0x48] sm:$0xff]
  %v693 = vld [vmem:[%s7 + $0x50] sm:$0xff]
  %v694 = vld [vmem:[%s7 + $0x58] sm:$0xff]
  %v695 = vld [vmem:[%s7 + $0x60] sm:$0xff]
  %v696 = vld [vmem:[%s7 + $0x68] sm:$0xff]
  %v697 = vld [vmem:[%s7 + $0x70] sm:$0xff]
  %v698 = vld [vmem:[%s7 + $0x78] sm:$0xff]
  %v715 = vunpack.c.l.b16 %v683
  %v716 = vunpack.c.h.b16 %v683
  %v717 = vunpack.c.l.b16 %v684
  %v718 = vunpack.c.h.b16 %v684
  %v719 = vunpack.c.l.b16 %v685
  %v720 = vunpack.c.h.b16 %v685
  %v721 = vunpack.c.l.b16 %v686
  %v722 = vunpack.c.h.b16 %v686
  %v723 = vunpack.c.l.b16 %v687
  %v724 = vunpack.c.h.b16 %v687
  %v725 = vunpack.c.l.b16 %v688
  %v726 = vunpack.c.h.b16 %v688
  %v727 = vunpack.c.l.b16 %v689
  %v728 = vunpack.c.h.b16 %v689
  %v729 = vunpack.c.l.b16 %v690
  %v730 = vunpack.c.h.b16 %v690
  %v731 = vunpack.c.l.b16 %v691
  %v732 = vunpack.c.h.b16 %v691
  %v733 = vunpack.c.l.b16 %v692
  %v734 = vunpack.c.h.b16 %v692
  %v735 = vunpack.c.l.b16 %v693
  %v736 = vunpack.c.h.b16 %v693
  %v737 = vunpack.c.l.b16 %v694
  %v738 = vunpack.c.h.b16 %v694
  %v739 = vunpack.c.l.b16 %v695
  %v740 = vunpack.c.h.b16 %v695
  %v741 = vunpack.c.l.b16 %v696
  %v742 = vunpack.c.h.b16 %v696
  %v743 = vunpack.c.l.b16 %v697
  %v744 = vunpack.c.h.b16 %v697
  %v745 = vunpack.c.l.b16 %v698
  %v746 = vunpack.c.h.b16 %v698
  %v747 = vpack.c.b16 %v717, %v715
  %v748 = vpack.c.b16 %v718, %v716
  %v749 = vpack.c.b16 %v721, %v719
  %v750 = vpack.c.b16 %v722, %v720
  %v751 = vpack.c.b16 %v725, %v723
  %v752 = vpack.c.b16 %v726, %v724
  %v753 = vpack.c.b16 %v729, %v727
  %v754 = vpack.c.b16 %v730, %v728
  %v755 = vpack.c.b16 %v733, %v731
  %v756 = vpack.c.b16 %v734, %v732
  %v757 = vpack.c.b16 %v737, %v735
  %v758 = vpack.c.b16 %v738, %v736
  %v759 = vpack.c.b16 %v741, %v739
  %v760 = vpack.c.b16 %v742, %v740
  %v761 = vpack.c.b16 %v745, %v743
  %v762 = vpack.c.b16 %v746, %v744
  %779 = vmatprep.subr.bf16.mxu0 %v762
  %780 = vmatpush1.bf16.msra.mxu0 %v761
  %781 = vmatprep.subr.bf16.mxu0 %v760
  %782 = vmatpush1.bf16.msra.mxu0 %v759
  %783 = vmatprep.subr.bf16.mxu0 %v758
  %784 = vmatpush1.bf16.msra.mxu0 %v757
  %785 = vmatprep.subr.bf16.mxu0 %v756
  %786 = vmatpush1.bf16.msra.mxu0 %v755
  %787 = vmatprep.subr.bf16.mxu0 %v754
  %788 = vmatpush1.bf16.msra.mxu0 %v753
  %789 = vmatprep.subr.bf16.mxu0 %v752
  %790 = vmatpush1.bf16.msra.mxu0 %v751
  %791 = vmatprep.subr.bf16.mxu0 %v750
  %792 = vmatpush1.bf16.msra.mxu0 %v749
  %793 = vmatprep.subr.bf16.mxu0 %v748
  %794 = vmatpush1.bf16.msra.mxu0 %v747
  %795 = vmatprep.subr.bf16.mxu0 0
  %796 = vmatpush2.bf16.msra.mxu0 0
  %797 = vmatprep.subr.bf16.mxu0 0
  %798 = vmatpush2.bf16.msra.mxu0 0
  %799 = vmatprep.subr.bf16.mxu0 0
  %800 = vmatpush2.bf16.msra.mxu0 0
  %801 = vmatprep.subr.bf16.mxu0 0
  %802 = vmatpush2.bf16.msra.mxu0 0
  %803 = vmatprep.subr.bf16.mxu0 0
  %804 = vmatpush2.bf16.msra.mxu0 0
  %805 = vmatprep.subr.bf16.mxu0 0
  %806 = vmatpush2.bf16.msra.mxu0 0
  %807 = vmatprep.subr.bf16.mxu0 0
  %808 = vmatpush2.bf16.msra.mxu0 0
  %809 = vmatprep.subr.bf16.mxu0 0
  %810 = vmatpush2.bf16.msra.mxu0 0
  %811 = vmatprep.mubr.bf16.mxu0 0
  %812 = vmatmul.mubr.bf16.gmra.mxu0 %v675
  %v813 = vpop.f32.mrf.mxu0
  %v814 = vadd.f32 0.0, %v813
  %v815 = vpop.f32.mrf.mxu0
  %v816 = vadd.f32 0.0, %v815
  %v817 = vpop.f32.mrf.mxu0
  %v818 = vadd.f32 0.0, %v817
  %v819 = vpop.f32.mrf.mxu0
  %v820 = vadd.f32 0.0, %v819
  %821 = vmatprep.mubr.bf16.mxu0 0
  %822 = vmatmul.mubr.bf16.gmra.mxu0 %v676
  %v823 = vpop.f32.mrf.mxu0
  %v824 = vadd.f32 0.0, %v823
  %v825 = vpop.f32.mrf.mxu0
  %v826 = vadd.f32 0.0, %v825
  %v827 = vpop.f32.mrf.mxu0
  %v828 = vadd.f32 0.0, %v827
  %v829 = vpop.f32.mrf.mxu0
  %v830 = vadd.f32 0.0, %v829
  %831 = vmatprep.mubr.bf16.mxu0 0
  %832 = vmatmul.mubr.bf16.gmra.mxu0 %v677
  %v833 = vpop.f32.mrf.mxu0
  %v834 = vadd.f32 0.0, %v833
  %v835 = vpop.f32.mrf.mxu0
  %v836 = vadd.f32 0.0, %v835
  %v837 = vpop.f32.mrf.mxu0
  %v838 = vadd.f32 0.0, %v837
  %v839 = vpop.f32.mrf.mxu0
  %v840 = vadd.f32 0.0, %v839
  %841 = vmatprep.mubr.bf16.mxu0 0
  %842 = vmatmul.mubr.bf16.gmra.mxu0 %v678
  %v843 = vpop.f32.mrf.mxu0
  %v844 = vadd.f32 0.0, %v843
  %v845 = vpop.f32.mrf.mxu0
  %v846 = vadd.f32 0.0, %v845
  %v847 = vpop.f32.mrf.mxu0
  %v848 = vadd.f32 0.0, %v847
  %v849 = vpop.f32.mrf.mxu0
  %v850 = vadd.f32 0.0, %v849
  %851 = vmatprep.mubr.bf16.mxu0 0
  %852 = vmatmul.mubr.bf16.gmra.mxu0 %v679
  %v853 = vpop.f32.mrf.mxu0
  %v854 = vadd.f32 0.0, %v853
  %v855 = vpop.f32.mrf.mxu0
  %v856 = vadd.f32 0.0, %v855
  %v857 = vpop.f32.mrf.mxu0
  %v858 = vadd.f32 0.0, %v857
  %v859 = vpop.f32.mrf.mxu0
  %v860 = vadd.f32 0.0, %v859
  %861 = vmatprep.mubr.bf16.mxu0 0
  %862 = vmatmul.mubr.bf16.gmra.mxu0 %v680
  %v863 = vpop.f32.mrf.mxu0
  %v864 = vadd.f32 0.0, %v863
  %v865 = vpop.f32.mrf.mxu0
  %v866 = vadd.f32 0.0, %v865
  %v867 = vpop.f32.mrf.mxu0
  %v868 = vadd.f32 0.0, %v867
  %v869 = vpop.f32.mrf.mxu0
  %v870 = vadd.f32 0.0, %v869
  %871 = vmatprep.mubr.bf16.mxu0 0
  %872 = vmatmul.mubr.bf16.gmra.mxu0 %v681
  %v873 = vpop.f32.mrf.mxu0
  %v874 = vadd.f32 0.0, %v873
  %v875 = vpop.f32.mrf.mxu0
  %v876 = vadd.f32 0.0, %v875
  %v877 = vpop.f32.mrf.mxu0
  %v878 = vadd.f32 0.0, %v877
  %v879 = vpop.f32.mrf.mxu0
  %v880 = vadd.f32 0.0, %v879
  %881 = vmatprep.mubr.bf16.mxu0 0
  %882 = vmatmul.mubr.bf16.gmra.mxu0 %v682
  %v883 = vpop.f32.mrf.mxu0
  %v884 = vadd.f32 0.0, %v883
  %v885 = vpop.f32.mrf.mxu0
  %v886 = vadd.f32 0.0, %v885
  %v887 = vpop.f32.mrf.mxu0
  %v888 = vadd.f32 0.0, %v887
  %v889 = vpop.f32.mrf.mxu0
  %v890 = vadd.f32 0.0, %v889
  %891 = vdwg.mxu0
  %v892 = vrot.slane %v814, 4
  %v893 = vmax.f32 %v814, %v892
  %v894 = vrot.slane %v893, 2
  %v895 = vmax.f32 %v893, %v894
  %v896 = vrot.slane %v895, 1
  %v897 = vmax.f32 %v895, %v896
  %v898 = vrot.slane %v816, 4
  %v899 = vmax.f32 %v816, %v898
  %v900 = vrot.slane %v899, 2
  %v901 = vmax.f32 %v899, %v900
  %v902 = vrot.slane %v901, 1
  %v903 = vmax.f32 %v901, %v902
  %v904 = vrot.slane %v818, 4
  %v905 = vmax.f32 %v818, %v904
  %v906 = vrot.slane %v905, 2
  %v907 = vmax.f32 %v905, %v906
  %v908 = vrot.slane %v907, 1
  %v909 = vmax.f32 %v907, %v908
  %v910 = vrot.slane %v820, 4
  %v911 = vmax.f32 %v820, %v910
  %v912 = vrot.slane %v911, 2
  %v913 = vmax.f32 %v911, %v912
  %v914 = vrot.slane %v913, 1
  %v915 = vmax.f32 %v913, %v914
  %v916 = vrot.slane %v824, 4
  %v917 = vmax.f32 %v824, %v916
  %v918 = vrot.slane %v917, 2
  %v919 = vmax.f32 %v917, %v918
  %v920 = vrot.slane %v919, 1
  %v921 = vmax.f32 %v919, %v920
  %v922 = vrot.slane %v826, 4
  %v923 = vmax.f32 %v826, %v922
  %v924 = vrot.slane %v923, 2
  %v925 = vmax.f32 %v923, %v924
  %v926 = vrot.slane %v925, 1
  %v927 = vmax.f32 %v925, %v926
  %v928 = vrot.slane %v828, 4
  %v929 = vmax.f32 %v828, %v928
  %v930 = vrot.slane %v929, 2
  %v931 = vmax.f32 %v929, %v930
  %v932 = vrot.slane %v931, 1
  %v933 = vmax.f32 %v931, %v932
  %v934 = vrot.slane %v830, 4
  %v935 = vmax.f32 %v830, %v934
  %v936 = vrot.slane %v935, 2
  %v937 = vmax.f32 %v935, %v936
  %v938 = vrot.slane %v937, 1
  %v939 = vmax.f32 %v937, %v938
  %v940 = vrot.slane %v834, 4
  %v941 = vmax.f32 %v834, %v940
  %v942 = vrot.slane %v941, 2
  %v943 = vmax.f32 %v941, %v942
  %v944 = vrot.slane %v943, 1
  %v945 = vmax.f32 %v943, %v944
  %v946 = vrot.slane %v836, 4
  %v947 = vmax.f32 %v836, %v946
  %v948 = vrot.slane %v947, 2
  %v949 = vmax.f32 %v947, %v948
  %v950 = vrot.slane %v949, 1
  %v951 = vmax.f32 %v949, %v950
  %v952 = vrot.slane %v838, 4
  %v953 = vmax.f32 %v838, %v952
  %v954 = vrot.slane %v953, 2
  %v955 = vmax.f32 %v953, %v954
  %v956 = vrot.slane %v955, 1
  %v957 = vmax.f32 %v955, %v956
  %v958 = vrot.slane %v840, 4
  %v959 = vmax.f32 %v840, %v958
  %v960 = vrot.slane %v959, 2
  %v961 = vmax.f32 %v959, %v960
  %v962 = vrot.slane %v961, 1
  %v963 = vmax.f32 %v961, %v962
  %v964 = vrot.slane %v844, 4
  %v965 = vmax.f32 %v844, %v964
  %v966 = vrot.slane %v965, 2
  %v967 = vmax.f32 %v965, %v966
  %v968 = vrot.slane %v967, 1
  %v969 = vmax.f32 %v967, %v968
  %v970 = vrot.slane %v846, 4
  %v971 = vmax.f32 %v846, %v970
  %v972 = vrot.slane %v971, 2
  %v973 = vmax.f32 %v971, %v972
  %v974 = vrot.slane %v973, 1
  %v975 = vmax.f32 %v973, %v974
  %v976 = vrot.slane %v848, 4
  %v977 = vmax.f32 %v848, %v976
  %v978 = vrot.slane %v977, 2
  %v979 = vmax.f32 %v977, %v978
  %v980 = vrot.slane %v979, 1
  %v981 = vmax.f32 %v979, %v980
  %v982 = vrot.slane %v850, 4
  %v983 = vmax.f32 %v850, %v982
  %v984 = vrot.slane %v983, 2
  %v985 = vmax.f32 %v983, %v984
  %v986 = vrot.slane %v985, 1
  %v987 = vmax.f32 %v985, %v986
  %v988 = vrot.slane %v854, 4
  %v989 = vmax.f32 %v854, %v988
  %v990 = vrot.slane %v989, 2
  %v991 = vmax.f32 %v989, %v990
  %v992 = vrot.slane %v991, 1
  %v993 = vmax.f32 %v991, %v992
  %v994 = vrot.slane %v856, 4
  %v995 = vmax.f32 %v856, %v994
  %v996 = vrot.slane %v995, 2
  %v997 = vmax.f32 %v995, %v996
  %v998 = vrot.slane %v997, 1
  %v999 = vmax.f32 %v997, %v998
  %v1000 = vrot.slane %v858, 4
  %v1001 = vmax.f32 %v858, %v1000
  %v1002 = vrot.slane %v1001, 2
  %v1003 = vmax.f32 %v1001, %v1002
  %v1004 = vrot.slane %v1003, 1
  %v1005 = vmax.f32 %v1003, %v1004
  %v1006 = vrot.slane %v860, 4
  %v1007 = vmax.f32 %v860, %v1006
  %v1008 = vrot.slane %v1007, 2
  %v1009 = vmax.f32 %v1007, %v1008
  %v1010 = vrot.slane %v1009, 1
  %v1011 = vmax.f32 %v1009, %v1010
  %v1012 = vrot.slane %v864, 4
  %v1013 = vmax.f32 %v864, %v1012
  %v1014 = vrot.slane %v1013, 2
  %v1015 = vmax.f32 %v1013, %v1014
  %v1016 = vrot.slane %v1015, 1
  %v1017 = vmax.f32 %v1015, %v1016
  %v1018 = vrot.slane %v866, 4
  %v1019 = vmax.f32 %v866, %v1018
  %v1020 = vrot.slane %v1019, 2
  %v1021 = vmax.f32 %v1019, %v1020
  %v1022 = vrot.slane %v1021, 1
  %v1023 = vmax.f32 %v1021, %v1022
  %v1024 = vrot.slane %v868, 4
  %v1025 = vmax.f32 %v868, %v1024
  %v1026 = vrot.slane %v1025, 2
  %v1027 = vmax.f32 %v1025, %v1026
  %v1028 = vrot.slane %v1027, 1
  %v1029 = vmax.f32 %v1027, %v1028
  %v1030 = vrot.slane %v870, 4
  %v1031 = vmax.f32 %v870, %v1030
  %v1032 = vrot.slane %v1031, 2
  %v1033 = vmax.f32 %v1031, %v1032
  %v1034 = vrot.slane %v1033, 1
  %v1035 = vmax.f32 %v1033, %v1034
  %v1036 = vrot.slane %v874, 4
  %v1037 = vmax.f32 %v874, %v1036
  %v1038 = vrot.slane %v1037, 2
  %v1039 = vmax.f32 %v1037, %v1038
  %v1040 = vrot.slane %v1039, 1
  %v1041 = vmax.f32 %v1039, %v1040
  %v1042 = vrot.slane %v876, 4
  %v1043 = vmax.f32 %v876, %v1042
  %v1044 = vrot.slane %v1043, 2
  %v1045 = vmax.f32 %v1043, %v1044
  %v1046 = vrot.slane %v1045, 1
  %v1047 = vmax.f32 %v1045, %v1046
  %v1048 = vrot.slane %v878, 4
  %v1049 = vmax.f32 %v878, %v1048
  %v1050 = vrot.slane %v1049, 2
  %v1051 = vmax.f32 %v1049, %v1050
  %v1052 = vrot.slane %v1051, 1
  %v1053 = vmax.f32 %v1051, %v1052
  %v1054 = vrot.slane %v880, 4
  %v1055 = vmax.f32 %v880, %v1054
  %v1056 = vrot.slane %v1055, 2
  %v1057 = vmax.f32 %v1055, %v1056
  %v1058 = vrot.slane %v1057, 1
  %v1059 = vmax.f32 %v1057, %v1058
  %v1060 = vrot.slane %v884, 4
  %v1061 = vmax.f32 %v884, %v1060
  %v1062 = vrot.slane %v1061, 2
  %v1063 = vmax.f32 %v1061, %v1062
  %v1064 = vrot.slane %v1063, 1
  %v1065 = vmax.f32 %v1063, %v1064
  %v1066 = vrot.slane %v886, 4
  %v1067 = vmax.f32 %v886, %v1066
  %v1068 = vrot.slane %v1067, 2
  %v1069 = vmax.f32 %v1067, %v1068
  %v1070 = vrot.slane %v1069, 1
  %v1071 = vmax.f32 %v1069, %v1070
  %v1072 = vrot.slane %v888, 4
  %v1073 = vmax.f32 %v888, %v1072
  %v1074 = vrot.slane %v1073, 2
  %v1075 = vmax.f32 %v1073, %v1074
  %v1076 = vrot.slane %v1075, 1
  %v1077 = vmax.f32 %v1075, %v1076
  %v1078 = vrot.slane %v890, 4
  %v1079 = vmax.f32 %v890, %v1078
  %v1080 = vrot.slane %v1079, 2
  %v1081 = vmax.f32 %v1079, %v1080
  %v1082 = vrot.slane %v1081, 1
  %v1083 = vmax.f32 %v1081, %v1082
  %p1084 = scmp.eq.s32.totalorder 0, 0
  // Predicated region
  $region38: #{pointnet2_based_forward.4} parent=0 // pred_check
    %p1085 = pneg %p1084
  $region39: #{pointnet2_based_forward.4} parent=0 // pred_check_branch
    %1087 = sbr.rel (%p1085) target = $region41
  $region40: #{pointnet2_based_forward.4} parent=0 // pred_region
    %vm1120 = vcmask 1041409
    %v1121 = vsel %vm1120, %v909, %v897
    %vm1122 = vcmask 1042434
    %v1123 = vsel %vm1122, %v921, %v1121
    %vm1124 = vcmask 1043459
    %v1125 = vsel %vm1124, %v933, %v1123
    %vm1126 = vcmask 1044484
    %v1127 = vsel %vm1126, %v945, %v1125
    %vm1128 = vcmask 1045509
    %v1129 = vsel %vm1128, %v957, %v1127
    %vm1130 = vcmask 1046534
    %v1131 = vsel %vm1130, %v969, %v1129
    %vm1132 = vcmask 1047559
    %v1133 = vsel %vm1132, %v981, %v1131
    %v1134 = vsel %vm1120, %v915, %v903
    %v1135 = vsel %vm1122, %v927, %v1134
    %v1136 = vsel %vm1124, %v939, %v1135
    %v1137 = vsel %vm1126, %v951, %v1136
    %v1138 = vsel %vm1128, %v963, %v1137
    %v1139 = vsel %vm1130, %v975, %v1138
    %v1140 = vsel %vm1132, %v987, %v1139
    %v1141 = vsel %vm1120, %v1005, %v993
    %v1142 = vsel %vm1122, %v1017, %v1141
    %v1143 = vsel %vm1124, %v1029, %v1142
    %v1144 = vsel %vm1126, %v1041, %v1143
    %v1145 = vsel %vm1128, %v1053, %v1144
    %v1146 = vsel %vm1130, %v1065, %v1145
    %v1147 = vsel %vm1132, %v1077, %v1146
    %v1148 = vsel %vm1120, %v1011, %v999
    %v1149 = vsel %vm1122, %v1023, %v1148
    %v1150 = vsel %vm1124, %v1035, %v1149
    %v1151 = vsel %vm1126, %v1047, %v1150
    %v1152 = vsel %vm1128, %v1059, %v1151
    %v1153 = vsel %vm1130, %v1071, %v1152
    %v1154 = vsel %vm1132, %v1083, %v1153
    %1159 = vst [vmem:[#allocation2] sm:$0xff] %v1133
    %1160 = vst [vmem:[#allocation2 + $0x8] sm:$0xff] %v1140
    %1161 = vst [vmem:[#allocation2 + $0x10] sm:$0xff] %v1147
    %1162 = vst [vmem:[#allocation2 + $0x18] sm:$0xff] %v1154
  $region41: #{pointnet2_based_forward.4} parent=0 // pred_fallthru
    _
  %p1163 = scmp.gt.s32.totalorder 0, 0
  // Predicated region
  $region42: #{pointnet2_based_forward.4} parent=0 // pred_check
    %p1164 = pneg %p1163
  $region43: #{pointnet2_based_forward.4} parent=0 // pred_check_branch
    %1166 = sbr.rel (%p1164) target = $region45
  $region44: #{pointnet2_based_forward.4} parent=0 // pred_region
    %v1167 = vld [vmem:[#allocation2] sm:$0xff]
    %v1168 = vld [vmem:[#allocation2 + $0x8] sm:$0xff]
    %v1169 = vld [vmem:[#allocation2 + $0x10] sm:$0xff]
    %v1170 = vld [vmem:[#allocation2 + $0x18] sm:$0xff]
    %vm1203 = vcmask 1041409
    %v1204 = vsel %vm1203, %v909, %v897
    %vm1205 = vcmask 1042434
    %v1206 = vsel %vm1205, %v921, %v1204
    %vm1207 = vcmask 1043459
    %v1208 = vsel %vm1207, %v933, %v1206
    %vm1209 = vcmask 1044484
    %v1210 = vsel %vm1209, %v945, %v1208
    %vm1211 = vcmask 1045509
    %v1212 = vsel %vm1211, %v957, %v1210
    %vm1213 = vcmask 1046534
    %v1214 = vsel %vm1213, %v969, %v1212
    %vm1215 = vcmask 1047559
    %v1216 = vsel %vm1215, %v981, %v1214
    %v1217 = vsel %vm1203, %v915, %v903
    %v1218 = vsel %vm1205, %v927, %v1217
    %v1219 = vsel %vm1207, %v939, %v1218
    %v1220 = vsel %vm1209, %v951, %v1219
    %v1221 = vsel %vm1211, %v963, %v1220
    %v1222 = vsel %vm1213, %v975, %v1221
    %v1223 = vsel %vm1215, %v987, %v1222
    %v1224 = vsel %vm1203, %v1005, %v993
    %v1225 = vsel %vm1205, %v1017, %v1224
    %v1226 = vsel %vm1207, %v1029, %v1225
    %v1227 = vsel %vm1209, %v1041, %v1226
    %v1228 = vsel %vm1211, %v1053, %v1227
    %v1229 = vsel %vm1213, %v1065, %v1228
    %v1230 = vsel %vm1215, %v1077, %v1229
    %v1231 = vsel %vm1203, %v1011, %v999
    %v1232 = vsel %vm1205, %v1023, %v1231
    %v1233 = vsel %vm1207, %v1035, %v1232
    %v1234 = vsel %vm1209, %v1047, %v1233
    %v1235 = vsel %vm1211, %v1059, %v1234
    %v1236 = vsel %vm1213, %v1071, %v1235
    %v1237 = vsel %vm1215, %v1083, %v1236
    %v1242 = vmax.f32 %v1167, %v1216
    %v1243 = vmax.f32 %v1168, %v1223
    %v1244 = vmax.f32 %v1169, %v1230
    %v1245 = vmax.f32 %v1170, %v1237
    %1246 = vst [vmem:[#allocation2] sm:$0xff] %v1242
    %1247 = vst [vmem:[#allocation2 + $0x8] sm:$0xff] %v1243
    %1248 = vst [vmem:[#allocation2 + $0x10] sm:$0xff] %v1244
    %1249 = vst [vmem:[#allocation2 + $0x18] sm:$0xff] %v1245
  $region45: #{pointnet2_based_forward.4} parent=0 // pred_fallthru
    _
  // Predicated region
  $region46: #{pointnet2_based_forward.4} parent=0 // pred_check
    %p1250 = pneg %p1084
  $region47: #{pointnet2_based_forward.4} parent=0 // pred_check_branch
    %1252 = sbr.rel (%p1250) target = $region49
  $region48: #{pointnet2_based_forward.4} parent=0 // pred_region
    %v1253 = vld [vmem:[#allocation2] sm:$0xff]
    %v1254 = vld [vmem:[#allocation2 + $0x8] sm:$0xff]
    %v1255 = vld [vmem:[#allocation2 + $0x10] sm:$0xff]
    %v1256 = vld [vmem:[#allocation2 + $0x18] sm:$0xff]
    %v1257 = vld [vmem:[%s8] sm:$0x3]
    %v1259 = vlaneseq
    %v1260 = vshrl.u32 %v1259, 7
    %v1261 = vsub.s32 0, %v1260
    %v1262 = vrot.slane %v1257, %v1261
    %v1263 = vlaneseq
    %v1264 = vshrl.u32 %v1263, 7
    %v1265 = vsub.s32 1, %v1264
    %v1266 = vrot.slane %v1257, %v1265
    %v1269 = vadd.f32 %v1253, %v1262
    %v1270 = vadd.f32 %v1254, %v1266
    %v1271 = vadd.f32 %v1255, %v1262
    %v1272 = vadd.f32 %v1256, %v1266
    %v1273 = vmax.f32 %v1269, 0.0
    %v1274 = vmax.f32 %v1270, 0.0
    %v1275 = vmax.f32 %v1271, 0.0
    %v1276 = vmax.f32 %v1272, 0.0
    %v1277 = vpack.c.bf16 %v1275, %v1273
    %v1278 = vpack.c.bf16 %v1276, %v1274
    %v1281 = vunpack.c.l.b16 %v1277
    %v1282 = vunpack.c.l.b16 %v1278
    %v1283 = vunpack.c.h.b16 %v1277
    %v1284 = vunpack.c.h.b16 %v1278
    %v1285 = vpack.c.b16 %v1282, %v1281
    %v1286 = vpack.c.b16 %v1284, %v1283
    %1289 = vst [vmem:[%s9] sm:$0xff] %v1285
    %1290 = vst [vmem:[%s9 + $0x8] sm:$0xff] %v1286
  $region49: #{pointnet2_based_forward.4} parent=0 // pred_fallthru
    _
  // Predicated region
  $region50: #{pointnet2_based_forward.4} parent=0 // pred_check
    _
  $region51: #{pointnet2_based_forward.4} parent=0 // pred_check_branch
    %1292 = sbr.rel (0) target = $region53
  $region52: #{pointnet2_based_forward.4} parent=0 // pred_region
    _
  $region53: #{pointnet2_based_forward.4} parent=0 // pred_fallthru
    _
  // Predicated region
  $region54: #{pointnet2_based_forward.4} parent=0 // pred_check
    _
  $region55: #{pointnet2_based_forward.4} parent=0 // pred_check_branch
    %1294 = sbr.rel (0) target = $region57
  $region56: #{pointnet2_based_forward.4} parent=0 // pred_region
    _
  $region57: #{pointnet2_based_forward.4} parent=0 // pred_fallthru
    _

// kernel: pointnet2_based_forward.5
$region0: #{pointnet2_based_forward.5}
  #allocation0 [shape = 'u32[]', space=smem, size = 0x4, offset = 0x4, fixed_abs, tag = 'smem constant byte address 0x4 - core index']
  #allocation1 [shape = 'u32[144,128]{1,0:T(1,128)}', space=vmem, size = 0x12000, scoped, tag = 'internal scratch']
  #allocation2 [shape = 'f32[16,512]{1,0:T(8,128)}', space=vmem, size = 0x8000, scoped, tag = 'scratch operand']
  %s0 = inlined_call_operand.vmem [shape: bf16[16,8,256], index: 0, kind: input, shape index: {}]
  %s1 = inlined_call_operand.vmem [shape: bf16[16,8,3], index: 1, kind: input, shape index: {}]
  %s2 = inlined_call_operand.vmem [shape: bf16[256,256], index: 2, kind: input, shape index: {}]
  %s3 = inlined_call_operand.vmem [shape: bf16[3,256], index: 3, kind: input, shape index: {}]
  %s4 = inlined_call_operand.vmem [shape: f32[1,256], index: 4, kind: input, shape index: {}]
  %s5 = inlined_call_operand.vmem [shape: bf16[256,256], index: 5, kind: input, shape index: {}]
  %s6 = inlined_call_operand.vmem [shape: f32[1,256], index: 6, kind: input, shape index: {}]
  %s7 = inlined_call_operand.vmem [shape: bf16[256,512], index: 7, kind: input, shape index: {}]
  %s8 = inlined_call_operand.vmem [shape: f32[1,512], index: 8, kind: input, shape index: {}]
  %s9 = inlined_call_operand.hbm [shape: f32[16,512], index: 9, kind: output, shape index: {}]
  %s10 = sld [smem:[#allocation0]]
  $region58: #{pointnet2_based_forward.5} parent=0
    _
  %s12 = ssub.s32 1, %s10
  %s13 = scalar_select 0, %s12, %s10
  $region1: #{pointnet2_based_forward.5} parent=0
    #allocation3 [shape = 'u8[32768]{0}', space=vmem, size = 0x8000, scoped, tag = 'output window, operand 0, single buffered']
    #allocation4 [shape = 's32[1]{0}', space=sflag, size = 0x4, scoped, tag = 'scoped memory for pointnet2_based_forward.5']
    %14 = vsyncpa [#allocation4], 0
    // Predicated region
    $region2: #{pointnet2_based_forward.5} parent=1 // pred_check
      _
    $region3: #{pointnet2_based_forward.5} parent=1 // pred_check_branch
      %16 = sbr.rel (0) target = $region5
    $region4: #{pointnet2_based_forward.5} parent=1 // pred_region
      _
    $region5: #{pointnet2_based_forward.5} parent=1 // pred_fallthru
      _
    // Predicated region
    $region6: #{pointnet2_based_forward.5} parent=1 // pred_check
      _
    $region7: #{pointnet2_based_forward.5} parent=1 // pred_check_branch
      %18 = sbr.rel (0) target = $region9
    $region8: #{pointnet2_based_forward.5} parent=1 // pred_region
      _
    $region9: #{pointnet2_based_forward.5} parent=1 // pred_fallthru
      _
    // Predicated region
    $region10: #{pointnet2_based_forward.5} parent=1 // pred_check
      _
    $region11: #{pointnet2_based_forward.5} parent=1 // pred_check_branch
      %20 = sbr.rel (0) target = $region13
    $region12: #{pointnet2_based_forward.5} parent=1 // pred_region
      _
    $region13: #{pointnet2_based_forward.5} parent=1 // pred_fallthru
      _
    // Predicated region
    $region14: #{pointnet2_based_forward.5} parent=1 // pred_check
      _
    $region15: #{pointnet2_based_forward.5} parent=1 // pred_check_branch
      %22 = sbr.rel (0) target = $region17
    $region16: #{pointnet2_based_forward.5} parent=1 // pred_region
      _
    $region17: #{pointnet2_based_forward.5} parent=1 // pred_fallthru
      _
    // Predicated region
    $region18: #{pointnet2_based_forward.5} parent=1 // pred_check
      _
    $region19: #{pointnet2_based_forward.5} parent=1 // pred_check_branch
      %24 = sbr.rel (0) target = $region21
    $region20: #{pointnet2_based_forward.5} parent=1 // pred_region
      _
    $region21: #{pointnet2_based_forward.5} parent=1 // pred_fallthru
      _
    // Predicated region
    $region22: #{pointnet2_based_forward.5} parent=1 // pred_check
      _
    $region23: #{pointnet2_based_forward.5} parent=1 // pred_check_branch
      %26 = sbr.rel (0) target = $region25
    $region24: #{pointnet2_based_forward.5} parent=1 // pred_region
      _
    $region25: #{pointnet2_based_forward.5} parent=1 // pred_fallthru
      _
    // Predicated region
    $region26: #{pointnet2_based_forward.5} parent=1 // pred_check
      _
    $region27: #{pointnet2_based_forward.5} parent=1 // pred_check_branch
      %28 = sbr.rel (0) target = $region29
    $region28: #{pointnet2_based_forward.5} parent=1 // pred_region
      _
    $region29: #{pointnet2_based_forward.5} parent=1 // pred_fallthru
      _
    // Predicated region
    $region30: #{pointnet2_based_forward.5} parent=1 // pred_check
      _
    $region31: #{pointnet2_based_forward.5} parent=1 // pred_check_branch
      %30 = sbr.rel (0) target = $region33
    $region32: #{pointnet2_based_forward.5} parent=1 // pred_region
      _
    $region33: #{pointnet2_based_forward.5} parent=1 // pred_fallthru
      _
    // Predicated region
    $region34: #{pointnet2_based_forward.5} parent=1 // pred_check
      _
    $region35: #{pointnet2_based_forward.5} parent=1 // pred_check_branch
      %32 = sbr.rel (0) target = $region37
    $region36: #{pointnet2_based_forward.5} parent=1 // pred_region
      _
    $region37: #{pointnet2_based_forward.5} parent=1 // pred_fallthru
      _
    %v34 = vld [vmem:[%s1] sm:$0xf]
    %v35 = vld [vmem:[%s1 + $0x4] sm:$0xf]
    %v36 = vld [vmem:[%s1 + $0x8] sm:$0xf]
    %v37 = vld [vmem:[%s1 + $0xc] sm:$0xf]
    %v38 = vld [vmem:[%s1 + $0x10] sm:$0xf]
    %v39 = vld [vmem:[%s1 + $0x14] sm:$0xf]
    %v40 = vld [vmem:[%s1 + $0x18] sm:$0xf]
    %v41 = vld [vmem:[%s1 + $0x1c] sm:$0xf]
    %v42 = vld [vmem:[%s1 + $0x20] sm:$0xf]
    %v43 = vld [vmem:[%s1 + $0x24] sm:$0xf]
    %v44 = vld [vmem:[%s1 + $0x28] sm:$0xf]
    %v45 = vld [vmem:[%s1 + $0x2c] sm:$0xf]
    %v46 = vld [vmem:[%s1 + $0x30] sm:$0xf]
    %v47 = vld [vmem:[%s1 + $0x34] sm:$0xf]
    %v48 = vld [vmem:[%s1 + $0x38] sm:$0xf]
    %v49 = vld [vmem:[%s1 + $0x3c] sm:$0xf]
    %v50 = vld [vmem:[%s3] sm:$0xf]
    %v51 = vld [vmem:[%s0] sm:$0xff]
    %v52 = vld [vmem:[%s0 + $0x8] sm:$0xff]
    %v53 = vld [vmem:[%s0 + $0x10] sm:$0xff]
    %v54 = vld [vmem:[%s0 + $0x18] sm:$0xff]
    %v55 = vld [vmem:[%s0 + $0x20] sm:$0xff]
    %v56 = vld [vmem:[%s0 + $0x28] sm:$0xff]
    %v57 = vld [vmem:[%s0 + $0x30] sm:$0xff]
    %v58 = vld [vmem:[%s0 + $0x38] sm:$0xff]
    %v59 = vld [vmem:[%s0 + $0x40] sm:$0xff]
    %v60 = vld [vmem:[%s0 + $0x48] sm:$0xff]
    %v61 = vld [vmem:[%s0 + $0x50] sm:$0xff]
    %v62 = vld [vmem:[%s0 + $0x58] sm:$0xff]
    %v63 = vld [vmem:[%s0 + $0x60] sm:$0xff]
    %v64 = vld [vmem:[%s0 + $0x68] sm:$0xff]
    %v65 = vld [vmem:[%s0 + $0x70] sm:$0xff]
    %v66 = vld [vmem:[%s0 + $0x78] sm:$0xff]
    %v67 = vld [vmem:[%s2] sm:$0xff]
    %v68 = vld [vmem:[%s2 + $0x8] sm:$0xff]
    %v69 = vld [vmem:[%s2 + $0x10] sm:$0xff]
    %v70 = vld [vmem:[%s2 + $0x18] sm:$0xff]
    %v71 = vld [vmem:[%s2 + $0x20] sm:$0xff]
    %v72 = vld [vmem:[%s2 + $0x28] sm:$0xff]
    %v73 = vld [vmem:[%s2 + $0x30] sm:$0xff]
    %v74 = vld [vmem:[%s2 + $0x38] sm:$0xff]
    %v75 = vld [vmem:[%s2 + $0x40] sm:$0xff]
    %v76 = vld [vmem:[%s2 + $0x48] sm:$0xff]
    %v77 = vld [vmem:[%s2 + $0x50] sm:$0xff]
    %v78 = vld [vmem:[%s2 + $0x58] sm:$0xff]
    %v79 = vld [vmem:[%s2 + $0x60] sm:$0xff]
    %v80 = vld [vmem:[%s2 + $0x68] sm:$0xff]
    %v81 = vld [vmem:[%s2 + $0x70] sm:$0xff]
    %v82 = vld [vmem:[%s2 + $0x78] sm:$0xff]
    %v83 = vld [vmem:[%s2 + $0x80] sm:$0xff]
    %v84 = vld [vmem:[%s2 + $0x88] sm:$0xff]
    %v85 = vld [vmem:[%s2 + $0x90] sm:$0xff]
    %v86 = vld [vmem:[%s2 + $0x98] sm:$0xff]
    %v87 = vld [vmem:[%s2 + $0xa0] sm:$0xff]
    %v88 = vld [vmem:[%s2 + $0xa8] sm:$0xff]
    %v89 = vld [vmem:[%s2 + $0xb0] sm:$0xff]
    %v90 = vld [vmem:[%s2 + $0xb8] sm:$0xff]
    %v91 = vld [vmem:[%s2 + $0xc0] sm:$0xff]
    %v92 = vld [vmem:[%s2 + $0xc8] sm:$0xff]
    %v93 = vld [vmem:[%s2 + $0xd0] sm:$0xff]
    %v94 = vld [vmem:[%s2 + $0xd8] sm:$0xff]
    %v95 = vld [vmem:[%s2 + $0xe0] sm:$0xff]
    %v96 = vld [vmem:[%s2 + $0xe8] sm:$0xff]
    %v97 = vld [vmem:[%s2 + $0xf0] sm:$0xff]
    %v98 = vld [vmem:[%s2 + $0xf8] sm:$0xff]
    %v115 = vunpack.c.l.b16 %v51
    %v116 = vunpack.c.h.b16 %v51
    %v117 = vunpack.c.l.b16 %v52
    %v118 = vunpack.c.h.b16 %v52
    %v119 = vunpack.c.l.b16 %v53
    %v120 = vunpack.c.h.b16 %v53
    %v121 = vunpack.c.l.b16 %v54
    %v122 = vunpack.c.h.b16 %v54
    %v123 = vunpack.c.l.b16 %v55
    %v124 = vunpack.c.h.b16 %v55
    %v125 = vunpack.c.l.b16 %v56
    %v126 = vunpack.c.h.b16 %v56
    %v127 = vunpack.c.l.b16 %v57
    %v128 = vunpack.c.h.b16 %v57
    %v129 = vunpack.c.l.b16 %v58
    %v130 = vunpack.c.h.b16 %v58
    %v131 = vunpack.c.l.b16 %v59
    %v132 = vunpack.c.h.b16 %v59
    %v133 = vunpack.c.l.b16 %v60
    %v134 = vunpack.c.h.b16 %v60
    %v135 = vunpack.c.l.b16 %v61
    %v136 = vunpack.c.h.b16 %v61
    %v137 = vunpack.c.l.b16 %v62
    %v138 = vunpack.c.h.b16 %v62
    %v139 = vunpack.c.l.b16 %v63
    %v140 = vunpack.c.h.b16 %v63
    %v141 = vunpack.c.l.b16 %v64
    %v142 = vunpack.c.h.b16 %v64
    %v143 = vunpack.c.l.b16 %v65
    %v144 = vunpack.c.h.b16 %v65
    %v145 = vunpack.c.l.b16 %v66
    %v146 = vunpack.c.h.b16 %v66
    %v147 = vpack.c.b16 %v117, %v115
    %v148 = vpack.c.b16 %v118, %v116
    %v149 = vpack.c.b16 %v121, %v119
    %v150 = vpack.c.b16 %v122, %v120
    %v151 = vpack.c.b16 %v125, %v123
    %v152 = vpack.c.b16 %v126, %v124
    %v153 = vpack.c.b16 %v129, %v127
    %v154 = vpack.c.b16 %v130, %v128
    %v155 = vpack.c.b16 %v133, %v131
    %v156 = vpack.c.b16 %v134, %v132
    %v157 = vpack.c.b16 %v137, %v135
    %v158 = vpack.c.b16 %v138, %v136
    %v159 = vpack.c.b16 %v141, %v139
    %v160 = vpack.c.b16 %v142, %v140
    %v161 = vpack.c.b16 %v145, %v143
    %v162 = vpack.c.b16 %v146, %v144
    %v211 = vunpack.c.l.b16 %v67
    %v212 = vunpack.c.h.b16 %v67
    %v213 = vunpack.c.l.b16 %v68
    %v214 = vunpack.c.h.b16 %v68
    %v215 = vunpack.c.l.b16 %v69
    %v216 = vunpack.c.h.b16 %v69
    %v217 = vunpack.c.l.b16 %v70
    %v218 = vunpack.c.h.b16 %v70
    %v219 = vunpack.c.l.b16 %v71
    %v220 = vunpack.c.h.b16 %v71
    %v221 = vunpack.c.l.b16 %v72
    %v222 = vunpack.c.h.b16 %v72
    %v223 = vunpack.c.l.b16 %v73
    %v224 = vunpack.c.h.b16 %v73
    %v225 = vunpack.c.l.b16 %v74
    %v226 = vunpack.c.h.b16 %v74
    %v227 = vunpack.c.l.b16 %v75
    %v228 = vunpack.c.h.b16 %v75
    %v229 = vunpack.c.l.b16 %v76
    %v230 = vunpack.c.h.b16 %v76
    %v231 = vunpack.c.l.b16 %v77
    %v232 = vunpack.c.h.b16 %v77
    %v233 = vunpack.c.l.b16 %v78
    %v234 = vunpack.c.h.b16 %v78
    %v235 = vunpack.c.l.b16 %v79
    %v236 = vunpack.c.h.b16 %v79
    %v237 = vunpack.c.l.b16 %v80
    %v238 = vunpack.c.h.b16 %v80
    %v239 = vunpack.c.l.b16 %v81
    %v240 = vunpack.c.h.b16 %v81
    %v241 = vunpack.c.l.b16 %v82
    %v242 = vunpack.c.h.b16 %v82
    %v243 = vunpack.c.l.b16 %v83
    %v244 = vunpack.c.h.b16 %v83
    %v245 = vunpack.c.l.b16 %v84
    %v246 = vunpack.c.h.b16 %v84
    %v247 = vunpack.c.l.b16 %v85
    %v248 = vunpack.c.h.b16 %v85
    %v249 = vunpack.c.l.b16 %v86
    %v250 = vunpack.c.h.b16 %v86
    %v251 = vunpack.c.l.b16 %v87
    %v252 = vunpack.c.h.b16 %v87
    %v253 = vunpack.c.l.b16 %v88
    %v254 = vunpack.c.h.b16 %v88
    %v255 = vunpack.c.l.b16 %v89
    %v256 = vunpack.c.h.b16 %v89
    %v257 = vunpack.c.l.b16 %v90
    %v258 = vunpack.c.h.b16 %v90
    %v259 = vunpack.c.l.b16 %v91
    %v260 = vunpack.c.h.b16 %v91
    %v261 = vunpack.c.l.b16 %v92
    %v262 = vunpack.c.h.b16 %v92
    %v263 = vunpack.c.l.b16 %v93
    %v264 = vunpack.c.h.b16 %v93
    %v265 = vunpack.c.l.b16 %v94
    %v266 = vunpack.c.h.b16 %v94
    %v267 = vunpack.c.l.b16 %v95
    %v268 = vunpack.c.h.b16 %v95
    %v269 = vunpack.c.l.b16 %v96
    %v270 = vunpack.c.h.b16 %v96
    %v271 = vunpack.c.l.b16 %v97
    %v272 = vunpack.c.h.b16 %v97
    %v273 = vunpack.c.l.b16 %v98
    %v274 = vunpack.c.h.b16 %v98
    %v275 = vpack.c.b16 %v213, %v211
    %v276 = vpack.c.b16 %v214, %v212
    %v277 = vpack.c.b16 %v217, %v215
    %v278 = vpack.c.b16 %v218, %v216
    %v279 = vpack.c.b16 %v221, %v219
    %v280 = vpack.c.b16 %v222, %v220
    %v281 = vpack.c.b16 %v225, %v223
    %v282 = vpack.c.b16 %v226, %v224
    %v283 = vpack.c.b16 %v229, %v227
    %v284 = vpack.c.b16 %v230, %v228
    %v285 = vpack.c.b16 %v233, %v231
    %v286 = vpack.c.b16 %v234, %v232
    %v287 = vpack.c.b16 %v237, %v235
    %v288 = vpack.c.b16 %v238, %v236
    %v289 = vpack.c.b16 %v241, %v239
    %v290 = vpack.c.b16 %v242, %v240
    %v291 = vpack.c.b16 %v245, %v243
    %v292 = vpack.c.b16 %v246, %v244
    %v293 = vpack.c.b16 %v249, %v247
    %v294 = vpack.c.b16 %v250, %v248
    %v295 = vpack.c.b16 %v253, %v251
    %v296 = vpack.c.b16 %v254, %v252
    %v297 = vpack.c.b16 %v257, %v255
    %v298 = vpack.c.b16 %v258, %v256
    %v299 = vpack.c.b16 %v261, %v259
    %v300 = vpack.c.b16 %v262, %v260
    %v301 = vpack.c.b16 %v265, %v263
    %v302 = vpack.c.b16 %v266, %v264
    %v303 = vpack.c.b16 %v269, %v267
    %v304 = vpack.c.b16 %v270, %v268
    %v305 = vpack.c.b16 %v273, %v271
    %v306 = vpack.c.b16 %v274, %v272
    %339 = vmatprep.subr.bf16.mxu0 %v290
    %340 = vmatpush1.bf16.msra.mxu0 %v289
    %341 = vmatprep.subr.bf16.mxu0 %v288
    %342 = vmatpush1.bf16.msra.mxu0 %v287
    %343 = vmatprep.subr.bf16.mxu0 %v286
    %344 = vmatpush1.bf16.msra.mxu0 %v285
    %345 = vmatprep.subr.bf16.mxu0 %v284
    %346 = vmatpush1.bf16.msra.mxu0 %v283
    %347 = vmatprep.subr.bf16.mxu0 %v282
    %348 = vmatpush1.bf16.msra.mxu0 %v281
    %349 = vmatprep.subr.bf16.mxu0 %v280
    %350 = vmatpush1.bf16.msra.mxu0 %v279
    %351 = vmatprep.subr.bf16.mxu0 %v278
    %352 = vmatpush1.bf16.msra.mxu0 %v277
    %353 = vmatprep.subr.bf16.mxu0 %v276
    %354 = vmatpush1.bf16.msra.mxu0 %v275
    %355 = vmatprep.subr.bf16.mxu0 %v306
    %356 = vmatpush2.bf16.msra.mxu0 %v305
    %357 = vmatprep.subr.bf16.mxu0 %v304
    %358 = vmatpush2.bf16.msra.mxu0 %v303
    %359 = vmatprep.subr.bf16.mxu0 %v302
    %360 = vmatpush2.bf16.msra.mxu0 %v301
    %361 = vmatprep.subr.bf16.mxu0 %v300
    %362 = vmatpush2.bf16.msra.mxu0 %v299
    %363 = vmatprep.subr.bf16.mxu0 %v298
    %364 = vmatpush2.bf16.msra.mxu0 %v297
    %365 = vmatprep.subr.bf16.mxu0 %v296
    %366 = vmatpush2.bf16.msra.mxu0 %v295
    %367 = vmatprep.subr.bf16.mxu0 %v294
    %368 = vmatpush2.bf16.msra.mxu0 %v293
    %369 = vmatprep.subr.bf16.mxu0 %v292
    %370 = vmatpush2.bf16.msra.mxu0 %v291
    %371 = vmatprep.mubr.bf16.mxu0 %v148
    %372 = vmatmul.mubr.bf16.gmra.mxu0 %v147
    %v373 = vpop.f32.mrf.mxu0
    %v374 = vadd.f32 0.0, %v373
    %v375 = vpop.f32.mrf.mxu0
    %v376 = vadd.f32 0.0, %v375
    %v377 = vpop.f32.mrf.mxu0
    %v378 = vadd.f32 0.0, %v377
    %v379 = vpop.f32.mrf.mxu0
    %v380 = vadd.f32 0.0, %v379
    %381 = vmatprep.mubr.bf16.mxu0 %v150
    %382 = vmatmul.mubr.bf16.gmra.mxu0 %v149
    %v383 = vpop.f32.mrf.mxu0
    %v384 = vadd.f32 0.0, %v383
    %v385 = vpop.f32.mrf.mxu0
    %v386 = vadd.f32 0.0, %v385
    %v387 = vpop.f32.mrf.mxu0
    %v388 = vadd.f32 0.0, %v387
    %v389 = vpop.f32.mrf.mxu0
    %v390 = vadd.f32 0.0, %v389
    %391 = vmatprep.mubr.bf16.mxu0 %v152
    %392 = vmatmul.mubr.bf16.gmra.mxu0 %v151
    %v393 = vpop.f32.mrf.mxu0
    %v394 = vadd.f32 0.0, %v393
    %v395 = vpop.f32.mrf.mxu0
    %v396 = vadd.f32 0.0, %v395
    %v397 = vpop.f32.mrf.mxu0
    %v398 = vadd.f32 0.0, %v397
    %v399 = vpop.f32.mrf.mxu0
    %v400 = vadd.f32 0.0, %v399
    %401 = vmatprep.mubr.bf16.mxu0 %v154
    %402 = vmatmul.mubr.bf16.gmra.mxu0 %v153
    %v403 = vpop.f32.mrf.mxu0
    %v404 = vadd.f32 0.0, %v403
    %v405 = vpop.f32.mrf.mxu0
    %v406 = vadd.f32 0.0, %v405
    %v407 = vpop.f32.mrf.mxu0
    %v408 = vadd.f32 0.0, %v407
    %v409 = vpop.f32.mrf.mxu0
    %v410 = vadd.f32 0.0, %v409
    %411 = vmatprep.mubr.bf16.mxu0 %v156
    %412 = vmatmul.mubr.bf16.gmra.mxu0 %v155
    %v413 = vpop.f32.mrf.mxu0
    %v414 = vadd.f32 0.0, %v413
    %v415 = vpop.f32.mrf.mxu0
    %v416 = vadd.f32 0.0, %v415
    %v417 = vpop.f32.mrf.mxu0
    %v418 = vadd.f32 0.0, %v417
    %v419 = vpop.f32.mrf.mxu0
    %v420 = vadd.f32 0.0, %v419
    %421 = vmatprep.mubr.bf16.mxu0 %v158
    %422 = vmatmul.mubr.bf16.gmra.mxu0 %v157
    %v423 = vpop.f32.mrf.mxu0
    %v424 = vadd.f32 0.0, %v423
    %v425 = vpop.f32.mrf.mxu0
    %v426 = vadd.f32 0.0, %v425
    %v427 = vpop.f32.mrf.mxu0
    %v428 = vadd.f32 0.0, %v427
    %v429 = vpop.f32.mrf.mxu0
    %v430 = vadd.f32 0.0, %v429
    %431 = vmatprep.mubr.bf16.mxu0 %v160
    %432 = vmatmul.mubr.bf16.gmra.mxu0 %v159
    %v433 = vpop.f32.mrf.mxu0
    %v434 = vadd.f32 0.0, %v433
    %v435 = vpop.f32.mrf.mxu0
    %v436 = vadd.f32 0.0, %v435
    %v437 = vpop.f32.mrf.mxu0
    %v438 = vadd.f32 0.0, %v437
    %v439 = vpop.f32.mrf.mxu0
    %v440 = vadd.f32 0.0, %v439
    %441 = vmatprep.mubr.bf16.mxu0 %v162
    %442 = vmatmul.mubr.bf16.gmra.mxu0 %v161
    %v443 = vpop.f32.mrf.mxu0
    %v444 = vadd.f32 0.0, %v443
    %v445 = vpop.f32.mrf.mxu0
    %v446 = vadd.f32 0.0, %v445
    %v447 = vpop.f32.mrf.mxu0
    %v448 = vadd.f32 0.0, %v447
    %v449 = vpop.f32.mrf.mxu0
    %v450 = vadd.f32 0.0, %v449
    %451 = vdwg.mxu0
    %v468 = vunpack.c.l.b16 %v34
    %v469 = vunpack.c.l.b16 %v35
    %v470 = vunpack.c.l.b16 %v36
    %v471 = vunpack.c.l.b16 %v37
    %v472 = vunpack.c.l.b16 %v38
    %v473 = vunpack.c.l.b16 %v39
    %v474 = vunpack.c.l.b16 %v40
    %v475 = vunpack.c.l.b16 %v41
    %v476 = vunpack.c.l.b16 %v42
    %v477 = vunpack.c.l.b16 %v43
    %v478 = vunpack.c.l.b16 %v44
    %v479 = vunpack.c.l.b16 %v45
    %v480 = vunpack.c.l.b16 %v46
    %v481 = vunpack.c.l.b16 %v47
    %v482 = vunpack.c.l.b16 %v48
    %v483 = vunpack.c.l.b16 %v49
    %v484 = vpack.c.b16 %v469, %v468
    %v485 = vpack.c.b16 %v471, %v470
    %v486 = vpack.c.b16 %v473, %v472
    %v487 = vpack.c.b16 %v475, %v474
    %v488 = vpack.c.b16 %v477, %v476
    %v489 = vpack.c.b16 %v479, %v478
    %v490 = vpack.c.b16 %v481, %v480
    %v491 = vpack.c.b16 %v483, %v482
    %v494 = vunpack.c.l.s4 1983009808
    %v495 = vunpack.c.0.s8 %v494
    %v496 = vlaneseq
    %v497 = vshrl.u32 %v496, 7
    %v498 = vsub.s32 %v495, %v497
    %v499 = vrot.slane %v50, %v498
    %v500 = vcombine.high %v499, %v499
    %vm501 = vcmask 23552
    %v503 = vsel %vm501, %v484, 0
    %v506 = vsel %vm501, %v485, 0
    %v509 = vsel %vm501, %v486, 0
    %v512 = vsel %vm501, %v487, 0
    %v515 = vsel %vm501, %v488, 0
    %v518 = vsel %vm501, %v489, 0
    %v521 = vsel %vm501, %v490, 0
    %v524 = vsel %vm501, %v491, 0
    %vm526 = vcmask 1040384
    %vm527 = vcmask 1041408
    %v528 = vsel %vm526, 4294967295, 65535
    %v529 = vsel %vm527, %v528, 0
    %v531 = vand.u32 %v499, %v529
    %v534 = vand.u32 %v500, %v529
    %536 = vmatprep.subr.bf16.mxu0 0
    %537 = vmatpush1.bf16.msra.mxu0 0
    %538 = vmatprep.subr.bf16.mxu0 0
    %539 = vmatpush1.bf16.msra.mxu0 0
    %540 = vmatprep.subr.bf16.mxu0 0
    %541 = vmatpush1.bf16.msra.mxu0 0
    %542 = vmatprep.subr.bf16.mxu0 0
    %543 = vmatpush1.bf16.msra.mxu0 0
    %544 = vmatprep.subr.bf16.mxu0 0
    %545 = vmatpush1.bf16.msra.mxu0 0
    %546 = vmatprep.subr.bf16.mxu0 0
    %547 = vmatpush1.bf16.msra.mxu0 0
    %548 = vmatprep.subr.bf16.mxu0 0
    %549 = vmatpush1.bf16.msra.mxu0 0
    %550 = vmatprep.subr.bf16.mxu0 %v534
    %551 = vmatpush1.bf16.msra.mxu0 %v531
    %552 = vmatprep.subr.bf16.mxu0 0
    %553 = vmatpush2.bf16.msra.mxu0 0
    %554 = vmatprep.subr.bf16.mxu0 0
    %555 = vmatpush2.bf16.msra.mxu0 0
    %556 = vmatprep.subr.bf16.mxu0 0
    %557 = vmatpush2.bf16.msra.mxu0 0
    %558 = vmatprep.subr.bf16.mxu0 0
    %559 = vmatpush2.bf16.msra.mxu0 0
    %560 = vmatprep.subr.bf16.mxu0 0
    %561 = vmatpush2.bf16.msra.mxu0 0
    %562 = vmatprep.subr.bf16.mxu0 0
    %563 = vmatpush2.bf16.msra.mxu0 0
    %564 = vmatprep.subr.bf16.mxu0 0
    %565 = vmatpush2.bf16.msra.mxu0 0
    %566 = vmatprep.subr.bf16.mxu0 0
    %567 = vmatpush2.bf16.msra.mxu0 0
    %568 = vmatprep.mubr.bf16.mxu0 0
    %569 = vmatmul.mubr.bf16.gmra.mxu0 %v503
    %v570 = vpop.f32.mrf.mxu0
    %v571 = vadd.f32 %v374, %v570
    %v572 = vpop.f32.mrf.mxu0
    %v573 = vadd.f32 %v376, %v572
    %v574 = vpop.f32.mrf.mxu0
    %v575 = vadd.f32 %v378, %v574
    %v576 = vpop.f32.mrf.mxu0
    %v577 = vadd.f32 %v380, %v576
    %578 = vmatprep.mubr.bf16.mxu0 0
    %579 = vmatmul.mubr.bf16.gmra.mxu0 %v506
    %v580 = vpop.f32.mrf.mxu0
    %v581 = vadd.f32 %v384, %v580
    %v582 = vpop.f32.mrf.mxu0
    %v583 = vadd.f32 %v386, %v582
    %v584 = vpop.f32.mrf.mxu0
    %v585 = vadd.f32 %v388, %v584
    %v586 = vpop.f32.mrf.mxu0
    %v587 = vadd.f32 %v390, %v586
    %588 = vmatprep.mubr.bf16.mxu0 0
    %589 = vmatmul.mubr.bf16.gmra.mxu0 %v509
    %v590 = vpop.f32.mrf.mxu0
    %v591 = vadd.f32 %v394, %v590
    %v592 = vpop.f32.mrf.mxu0
    %v593 = vadd.f32 %v396, %v592
    %v594 = vpop.f32.mrf.mxu0
    %v595 = vadd.f32 %v398, %v594
    %v596 = vpop.f32.mrf.mxu0
    %v597 = vadd.f32 %v400, %v596
    %598 = vmatprep.mubr.bf16.mxu0 0
    %599 = vmatmul.mubr.bf16.gmra.mxu0 %v512
    %v600 = vpop.f32.mrf.mxu0
    %v601 = vadd.f32 %v404, %v600
    %v602 = vpop.f32.mrf.mxu0
    %v603 = vadd.f32 %v406, %v602
    %v604 = vpop.f32.mrf.mxu0
    %v605 = vadd.f32 %v408, %v604
    %v606 = vpop.f32.mrf.mxu0
    %v607 = vadd.f32 %v410, %v606
    %608 = vmatprep.mubr.bf16.mxu0 0
    %609 = vmatmul.mubr.bf16.gmra.mxu0 %v515
    %v610 = vpop.f32.mrf.mxu0
    %v611 = vadd.f32 %v414, %v610
    %v612 = vpop.f32.mrf.mxu0
    %v613 = vadd.f32 %v416, %v612
    %v614 = vpop.f32.mrf.mxu0
    %v615 = vadd.f32 %v418, %v614
    %v616 = vpop.f32.mrf.mxu0
    %v617 = vadd.f32 %v420, %v616
    %618 = vmatprep.mubr.bf16.mxu0 0
    %619 = vmatmul.mubr.bf16.gmra.mxu0 %v518
    %v620 = vpop.f32.mrf.mxu0
    %v621 = vadd.f32 %v424, %v620
    %v622 = vpop.f32.mrf.mxu0
    %v623 = vadd.f32 %v426, %v622
    %v624 = vpop.f32.mrf.mxu0
    %v625 = vadd.f32 %v428, %v624
    %v626 = vpop.f32.mrf.mxu0
    %v627 = vadd.f32 %v430, %v626
    %628 = vmatprep.mubr.bf16.mxu0 0
    %629 = vmatmul.mubr.bf16.gmra.mxu0 %v521
    %v630 = vpop.f32.mrf.mxu0
    %v631 = vadd.f32 %v434, %v630
    %v632 = vpop.f32.mrf.mxu0
    %v633 = vadd.f32 %v436, %v632
    %v634 = vpop.f32.mrf.mxu0
    %v635 = vadd.f32 %v438, %v634
    %v636 = vpop.f32.mrf.mxu0
    %v637 = vadd.f32 %v440, %v636
    %638 = vmatprep.mubr.bf16.mxu0 0
    %639 = vmatmul.mubr.bf16.gmra.mxu0 %v524
    %v640 = vpop.f32.mrf.mxu0
    %v641 = vadd.f32 %v444, %v640
    %v642 = vpop.f32.mrf.mxu0
    %v643 = vadd.f32 %v446, %v642
    %v644 = vpop.f32.mrf.mxu0
    %v645 = vadd.f32 %v448, %v644
    %v646 = vpop.f32.mrf.mxu0
    %v647 = vadd.f32 %v450, %v646
    %648 = vdwg.mxu0
    %v649 = vld [vmem:[%s4] sm:$0x3]
    %v651 = vlaneseq
    %v652 = vshrl.u32 %v651, 7
    %v653 = vsub.s32 0, %v652
    %v654 = vrot.slane %v649, %v653
    %v655 = vlaneseq
    %v656 = vshrl.u32 %v655, 7
    %v657 = vsub.s32 1, %v656
    %v658 = vrot.slane %v649, %v657
    %v661 = vadd.f32 %v571, %v654
    %v662 = vadd.f32 %v573, %v658
    %v663 = vadd.f32 %v575, %v654
    %v664 = vadd.f32 %v577, %v658
    %v665 = vadd.f32 %v581, %v654
    %v666 = vadd.f32 %v583, %v658
    %v667 = vadd.f32 %v585, %v654
    %v668 = vadd.f32 %v587, %v658
    %v669 = vadd.f32 %v591, %v654
    %v670 = vadd.f32 %v593, %v658
    %v671 = vadd.f32 %v595, %v654
    %v672 = vadd.f32 %v597, %v658
    %v673 = vadd.f32 %v601, %v654
    %v674 = vadd.f32 %v603, %v658
    %v675 = vadd.f32 %v605, %v654
    %v676 = vadd.f32 %v607, %v658
    %v677 = vadd.f32 %v611, %v654
    %v678 = vadd.f32 %v613, %v658
    %v679 = vadd.f32 %v615, %v654
    %v680 = vadd.f32 %v617, %v658
    %v681 = vadd.f32 %v621, %v654
    %v682 = vadd.f32 %v623, %v658
    %v683 = vadd.f32 %v625, %v654
    %v684 = vadd.f32 %v627, %v658
    %v685 = vadd.f32 %v631, %v654
    %v686 = vadd.f32 %v633, %v658
    %v687 = vadd.f32 %v635, %v654
    %v688 = vadd.f32 %v637, %v658
    %v689 = vadd.f32 %v641, %v654
    %v690 = vadd.f32 %v643, %v658
    %v691 = vadd.f32 %v645, %v654
    %v692 = vadd.f32 %v647, %v658
    %v693 = vmax.f32 %v661, 0.0
    %v694 = vmax.f32 %v662, 0.0
    %v695 = vmax.f32 %v663, 0.0
    %v696 = vmax.f32 %v664, 0.0
    %v697 = vmax.f32 %v665, 0.0
    %v698 = vmax.f32 %v666, 0.0
    %v699 = vmax.f32 %v667, 0.0
    %v700 = vmax.f32 %v668, 0.0
    %v701 = vmax.f32 %v669, 0.0
    %v702 = vmax.f32 %v670, 0.0
    %v703 = vmax.f32 %v671, 0.0
    %v704 = vmax.f32 %v672, 0.0
    %v705 = vmax.f32 %v673, 0.0
    %v706 = vmax.f32 %v674, 0.0
    %v707 = vmax.f32 %v675, 0.0
    %v708 = vmax.f32 %v676, 0.0
    %v709 = vmax.f32 %v677, 0.0
    %v710 = vmax.f32 %v678, 0.0
    %v711 = vmax.f32 %v679, 0.0
    %v712 = vmax.f32 %v680, 0.0
    %v713 = vmax.f32 %v681, 0.0
    %v714 = vmax.f32 %v682, 0.0
    %v715 = vmax.f32 %v683, 0.0
    %v716 = vmax.f32 %v684, 0.0
    %v717 = vmax.f32 %v685, 0.0
    %v718 = vmax.f32 %v686, 0.0
    %v719 = vmax.f32 %v687, 0.0
    %v720 = vmax.f32 %v688, 0.0
    %v721 = vmax.f32 %v689, 0.0
    %v722 = vmax.f32 %v690, 0.0
    %v723 = vmax.f32 %v691, 0.0
    %v724 = vmax.f32 %v692, 0.0
    %v725 = vpack.c.bf16 %v695, %v693
    %v726 = vpack.c.bf16 %v696, %v694
    %v727 = vpack.c.bf16 %v699, %v697
    %v728 = vpack.c.bf16 %v700, %v698
    %v729 = vpack.c.bf16 %v703, %v701
    %v730 = vpack.c.bf16 %v704, %v702
    %v731 = vpack.c.bf16 %v707, %v705
    %v732 = vpack.c.bf16 %v708, %v706
    %v733 = vpack.c.bf16 %v711, %v709
    %v734 = vpack.c.bf16 %v712, %v710
    %v735 = vpack.c.bf16 %v715, %v713
    %v736 = vpack.c.bf16 %v716, %v714
    %v737 = vpack.c.bf16 %v719, %v717
    %v738 = vpack.c.bf16 %v720, %v718
    %v739 = vpack.c.bf16 %v723, %v721
    %v740 = vpack.c.bf16 %v724, %v722
    %v741 = vld [vmem:[%s5] sm:$0xff]
    %v742 = vld [vmem:[%s5 + $0x8] sm:$0xff]
    %v743 = vld [vmem:[%s5 + $0x10] sm:$0xff]
    %v744 = vld [vmem:[%s5 + $0x18] sm:$0xff]
    %v745 = vld [vmem:[%s5 + $0x20] sm:$0xff]
    %v746 = vld [vmem:[%s5 + $0x28] sm:$0xff]
    %v747 = vld [vmem:[%s5 + $0x30] sm:$0xff]
    %v748 = vld [vmem:[%s5 + $0x38] sm:$0xff]
    %v749 = vld [vmem:[%s5 + $0x40] sm:$0xff]
    %v750 = vld [vmem:[%s5 + $0x48] sm:$0xff]
    %v751 = vld [vmem:[%s5 + $0x50] sm:$0xff]
    %v752 = vld [vmem:[%s5 + $0x58] sm:$0xff]
    %v753 = vld [vmem:[%s5 + $0x60] sm:$0xff]
    %v754 = vld [vmem:[%s5 + $0x68] sm:$0xff]
    %v755 = vld [vmem:[%s5 + $0x70] sm:$0xff]
    %v756 = vld [vmem:[%s5 + $0x78] sm:$0xff]
    %v757 = vld [vmem:[%s5 + $0x80] sm:$0xff]
    %v758 = vld [vmem:[%s5 + $0x88] sm:$0xff]
    %v759 = vld [vmem:[%s5 + $0x90] sm:$0xff]
    %v760 = vld [vmem:[%s5 + $0x98] sm:$0xff]
    %v761 = vld [vmem:[%s5 + $0xa0] sm:$0xff]
    %v762 = vld [vmem:[%s5 + $0xa8] sm:$0xff]
    %v763 = vld [vmem:[%s5 + $0xb0] sm:$0xff]
    %v764 = vld [vmem:[%s5 + $0xb8] sm:$0xff]
    %v765 = vld [vmem:[%s5 + $0xc0] sm:$0xff]
    %v766 = vld [vmem:[%s5 + $0xc8] sm:$0xff]
    %v767 = vld [vmem:[%s5 + $0xd0] sm:$0xff]
    %v768 = vld [vmem:[%s5 + $0xd8] sm:$0xff]
    %v769 = vld [vmem:[%s5 + $0xe0] sm:$0xff]
    %v770 = vld [vmem:[%s5 + $0xe8] sm:$0xff]
    %v771 = vld [vmem:[%s5 + $0xf0] sm:$0xff]
    %v772 = vld [vmem:[%s5 + $0xf8] sm:$0xff]
    %v773 = vld [vmem:[%s6] sm:$0x3]
    %v775 = vlaneseq
    %v776 = vshrl.u32 %v775, 7
    %v777 = vsub.s32 0, %v776
    %v778 = vrot.slane %v773, %v777
    %v779 = vlaneseq
    %v780 = vshrl.u32 %v779, 7
    %v781 = vsub.s32 1, %v780
    %v782 = vrot.slane %v773, %v781
    %v817 = vunpack.c.l.b16 %v741
    %v818 = vunpack.c.h.b16 %v741
    %v819 = vunpack.c.l.b16 %v742
    %v820 = vunpack.c.h.b16 %v742
    %v821 = vunpack.c.l.b16 %v743
    %v822 = vunpack.c.h.b16 %v743
    %v823 = vunpack.c.l.b16 %v744
    %v824 = vunpack.c.h.b16 %v744
    %v825 = vunpack.c.l.b16 %v745
    %v826 = vunpack.c.h.b16 %v745
    %v827 = vunpack.c.l.b16 %v746
    %v828 = vunpack.c.h.b16 %v746
    %v829 = vunpack.c.l.b16 %v747
    %v830 = vunpack.c.h.b16 %v747
    %v831 = vunpack.c.l.b16 %v748
    %v832 = vunpack.c.h.b16 %v748
    %v833 = vunpack.c.l.b16 %v749
    %v834 = vunpack.c.h.b16 %v749
    %v835 = vunpack.c.l.b16 %v750
    %v836 = vunpack.c.h.b16 %v750
    %v837 = vunpack.c.l.b16 %v751
    %v838 = vunpack.c.h.b16 %v751
    %v839 = vunpack.c.l.b16 %v752
    %v840 = vunpack.c.h.b16 %v752
    %v841 = vunpack.c.l.b16 %v753
    %v842 = vunpack.c.h.b16 %v753
    %v843 = vunpack.c.l.b16 %v754
    %v844 = vunpack.c.h.b16 %v754
    %v845 = vunpack.c.l.b16 %v755
    %v846 = vunpack.c.h.b16 %v755
    %v847 = vunpack.c.l.b16 %v756
    %v848 = vunpack.c.h.b16 %v756
    %v849 = vunpack.c.l.b16 %v757
    %v850 = vunpack.c.h.b16 %v757
    %v851 = vunpack.c.l.b16 %v758
    %v852 = vunpack.c.h.b16 %v758
    %v853 = vunpack.c.l.b16 %v759
    %v854 = vunpack.c.h.b16 %v759
    %v855 = vunpack.c.l.b16 %v760
    %v856 = vunpack.c.h.b16 %v760
    %v857 = vunpack.c.l.b16 %v761
    %v858 = vunpack.c.h.b16 %v761
    %v859 = vunpack.c.l.b16 %v762
    %v860 = vunpack.c.h.b16 %v762
    %v861 = vunpack.c.l.b16 %v763
    %v862 = vunpack.c.h.b16 %v763
    %v863 = vunpack.c.l.b16 %v764
    %v864 = vunpack.c.h.b16 %v764
    %v865 = vunpack.c.l.b16 %v765
    %v866 = vunpack.c.h.b16 %v765
    %v867 = vunpack.c.l.b16 %v766
    %v868 = vunpack.c.h.b16 %v766
    %v869 = vunpack.c.l.b16 %v767
    %v870 = vunpack.c.h.b16 %v767
    %v871 = vunpack.c.l.b16 %v768
    %v872 = vunpack.c.h.b16 %v768
    %v873 = vunpack.c.l.b16 %v769
    %v874 = vunpack.c.h.b16 %v769
    %v875 = vunpack.c.l.b16 %v770
    %v876 = vunpack.c.h.b16 %v770
    %v877 = vunpack.c.l.b16 %v771
    %v878 = vunpack.c.h.b16 %v771
    %v879 = vunpack.c.l.b16 %v772
    %v880 = vunpack.c.h.b16 %v772
    %v881 = vpack.c.b16 %v819, %v817
    %v882 = vpack.c.b16 %v820, %v818
    %v883 = vpack.c.b16 %v823, %v821
    %v884 = vpack.c.b16 %v824, %v822
    %v885 = vpack.c.b16 %v827, %v825
    %v886 = vpack.c.b16 %v828, %v826
    %v887 = vpack.c.b16 %v831, %v829
    %v888 = vpack.c.b16 %v832, %v830
    %v889 = vpack.c.b16 %v835, %v833
    %v890 = vpack.c.b16 %v836, %v834
    %v891 = vpack.c.b16 %v839, %v837
    %v892 = vpack.c.b16 %v840, %v838
    %v893 = vpack.c.b16 %v843, %v841
    %v894 = vpack.c.b16 %v844, %v842
    %v895 = vpack.c.b16 %v847, %v845
    %v896 = vpack.c.b16 %v848, %v846
    %v897 = vpack.c.b16 %v851, %v849
    %v898 = vpack.c.b16 %v852, %v850
    %v899 = vpack.c.b16 %v855, %v853
    %v900 = vpack.c.b16 %v856, %v854
    %v901 = vpack.c.b16 %v859, %v857
    %v902 = vpack.c.b16 %v860, %v858
    %v903 = vpack.c.b16 %v863, %v861
    %v904 = vpack.c.b16 %v864, %v862
    %v905 = vpack.c.b16 %v867, %v865
    %v906 = vpack.c.b16 %v868, %v866
    %v907 = vpack.c.b16 %v871, %v869
    %v908 = vpack.c.b16 %v872, %v870
    %v909 = vpack.c.b16 %v875, %v873
    %v910 = vpack.c.b16 %v876, %v874
    %v911 = vpack.c.b16 %v879, %v877
    %v912 = vpack.c.b16 %v880, %v878
    %945 = vmatprep.subr.bf16.mxu0 %v896
    %946 = vmatpush1.bf16.msra.mxu0 %v895
    %947 = vmatprep.subr.bf16.mxu0 %v894
    %948 = vmatpush1.bf16.msra.mxu0 %v893
    %949 = vmatprep.subr.bf16.mxu0 %v892
    %950 = vmatpush1.bf16.msra.mxu0 %v891
    %951 = vmatprep.subr.bf16.mxu0 %v890
    %952 = vmatpush1.bf16.msra.mxu0 %v889
    %953 = vmatprep.subr.bf16.mxu0 %v888
    %954 = vmatpush1.bf16.msra.mxu0 %v887
    %955 = vmatprep.subr.bf16.mxu0 %v886
    %956 = vmatpush1.bf16.msra.mxu0 %v885
    %957 = vmatprep.subr.bf16.mxu0 %v884
    %958 = vmatpush1.bf16.msra.mxu0 %v883
    %959 = vmatprep.subr.bf16.mxu0 %v882
    %960 = vmatpush1.bf16.msra.mxu0 %v881
    %961 = vmatprep.subr.bf16.mxu0 %v912
    %962 = vmatpush2.bf16.msra.mxu0 %v911
    %963 = vmatprep.subr.bf16.mxu0 %v910
    %964 = vmatpush2.bf16.msra.mxu0 %v909
    %965 = vmatprep.subr.bf16.mxu0 %v908
    %966 = vmatpush2.bf16.msra.mxu0 %v907
    %967 = vmatprep.subr.bf16.mxu0 %v906
    %968 = vmatpush2.bf16.msra.mxu0 %v905
    %969 = vmatprep.subr.bf16.mxu0 %v904
    %970 = vmatpush2.bf16.msra.mxu0 %v903
    %971 = vmatprep.subr.bf16.mxu0 %v902
    %972 = vmatpush2.bf16.msra.mxu0 %v901
    %973 = vmatprep.subr.bf16.mxu0 %v900
    %974 = vmatpush2.bf16.msra.mxu0 %v899
    %975 = vmatprep.subr.bf16.mxu0 %v898
    %976 = vmatpush2.bf16.msra.mxu0 %v897
    %977 = vmatprep.mubr.bf16.mxu0 %v726
    %978 = vmatmul.mubr.bf16.gmra.mxu0 %v725
    %v979 = vpop.f32.mrf.mxu0
    %v980 = vadd.f32 %v778, %v979
    %v981 = vpop.f32.mrf.mxu0
    %v982 = vadd.f32 %v782, %v981
    %v983 = vpop.f32.mrf.mxu0
    %v984 = vadd.f32 %v778, %v983
    %v985 = vpop.f32.mrf.mxu0
    %v986 = vadd.f32 %v782, %v985
    %987 = vmatprep.mubr.bf16.mxu0 %v728
    %988 = vmatmul.mubr.bf16.gmra.mxu0 %v727
    %v989 = vpop.f32.mrf.mxu0
    %v990 = vadd.f32 %v778, %v989
    %v991 = vpop.f32.mrf.mxu0
    %v992 = vadd.f32 %v782, %v991
    %v993 = vpop.f32.mrf.mxu0
    %v994 = vadd.f32 %v778, %v993
    %v995 = vpop.f32.mrf.mxu0
    %v996 = vadd.f32 %v782, %v995
    %997 = vmatprep.mubr.bf16.mxu0 %v730
    %998 = vmatmul.mubr.bf16.gmra.mxu0 %v729
    %v999 = vpop.f32.mrf.mxu0
    %v1000 = vadd.f32 %v778, %v999
    %v1001 = vpop.f32.mrf.mxu0
    %v1002 = vadd.f32 %v782, %v1001
    %v1003 = vpop.f32.mrf.mxu0
    %v1004 = vadd.f32 %v778, %v1003
    %v1005 = vpop.f32.mrf.mxu0
    %v1006 = vadd.f32 %v782, %v1005
    %1007 = vmatprep.mubr.bf16.mxu0 %v732
    %1008 = vmatmul.mubr.bf16.gmra.mxu0 %v731
    %v1009 = vpop.f32.mrf.mxu0
    %v1010 = vadd.f32 %v778, %v1009
    %v1011 = vpop.f32.mrf.mxu0
    %v1012 = vadd.f32 %v782, %v1011
    %v1013 = vpop.f32.mrf.mxu0
    %v1014 = vadd.f32 %v778, %v1013
    %v1015 = vpop.f32.mrf.mxu0
    %v1016 = vadd.f32 %v782, %v1015
    %1017 = vmatprep.mubr.bf16.mxu0 %v734
    %1018 = vmatmul.mubr.bf16.gmra.mxu0 %v733
    %v1019 = vpop.f32.mrf.mxu0
    %v1020 = vadd.f32 %v778, %v1019
    %v1021 = vpop.f32.mrf.mxu0
    %v1022 = vadd.f32 %v782, %v1021
    %v1023 = vpop.f32.mrf.mxu0
    %v1024 = vadd.f32 %v778, %v1023
    %v1025 = vpop.f32.mrf.mxu0
    %v1026 = vadd.f32 %v782, %v1025
    %1027 = vmatprep.mubr.bf16.mxu0 %v736
    %1028 = vmatmul.mubr.bf16.gmra.mxu0 %v735
    %v1029 = vpop.f32.mrf.mxu0
    %v1030 = vadd.f32 %v778, %v1029
    %v1031 = vpop.f32.mrf.mxu0
    %v1032 = vadd.f32 %v782, %v1031
    %v1033 = vpop.f32.mrf.mxu0
    %v1034 = vadd.f32 %v778, %v1033
    %v1035 = vpop.f32.mrf.mxu0
    %v1036 = vadd.f32 %v782, %v1035
    %1037 = vmatprep.mubr.bf16.mxu0 %v738
    %1038 = vmatmul.mubr.bf16.gmra.mxu0 %v737
    %v1039 = vpop.f32.mrf.mxu0
    %v1040 = vadd.f32 %v778, %v1039
    %v1041 = vpop.f32.mrf.mxu0
    %v1042 = vadd.f32 %v782, %v1041
    %v1043 = vpop.f32.mrf.mxu0
    %v1044 = vadd.f32 %v778, %v1043
    %v1045 = vpop.f32.mrf.mxu0
    %v1046 = vadd.f32 %v782, %v1045
    %1047 = vmatprep.mubr.bf16.mxu0 %v740
    %1048 = vmatmul.mubr.bf16.gmra.mxu0 %v739
    %v1049 = vpop.f32.mrf.mxu0
    %v1050 = vadd.f32 %v778, %v1049
    %v1051 = vpop.f32.mrf.mxu0
    %v1052 = vadd.f32 %v782, %v1051
    %v1053 = vpop.f32.mrf.mxu0
    %v1054 = vadd.f32 %v778, %v1053
    %v1055 = vpop.f32.mrf.mxu0
    %v1056 = vadd.f32 %v782, %v1055
    %1057 = vdwg.mxu0
    %v1058 = vmax.f32 %v980, 0.0
    %v1059 = vmax.f32 %v982, 0.0
    %v1060 = vmax.f32 %v984, 0.0
    %v1061 = vmax.f32 %v986, 0.0
    %v1062 = vmax.f32 %v990, 0.0
    %v1063 = vmax.f32 %v992, 0.0
    %v1064 = vmax.f32 %v994, 0.0
    %v1065 = vmax.f32 %v996, 0.0
    %v1066 = vmax.f32 %v1000, 0.0
    %v1067 = vmax.f32 %v1002, 0.0
    %v1068 = vmax.f32 %v1004, 0.0
    %v1069 = vmax.f32 %v1006, 0.0
    %v1070 = vmax.f32 %v1010, 0.0
    %v1071 = vmax.f32 %v1012, 0.0
    %v1072 = vmax.f32 %v1014, 0.0
    %v1073 = vmax.f32 %v1016, 0.0
    %v1074 = vmax.f32 %v1020, 0.0
    %v1075 = vmax.f32 %v1022, 0.0
    %v1076 = vmax.f32 %v1024, 0.0
    %v1077 = vmax.f32 %v1026, 0.0
    %v1078 = vmax.f32 %v1030, 0.0
    %v1079 = vmax.f32 %v1032, 0.0
    %v1080 = vmax.f32 %v1034, 0.0
    %v1081 = vmax.f32 %v1036, 0.0
    %v1082 = vmax.f32 %v1040, 0.0
    %v1083 = vmax.f32 %v1042, 0.0
    %v1084 = vmax.f32 %v1044, 0.0
    %v1085 = vmax.f32 %v1046, 0.0
    %v1086 = vmax.f32 %v1050, 0.0
    %v1087 = vmax.f32 %v1052, 0.0
    %v1088 = vmax.f32 %v1054, 0.0
    %v1089 = vmax.f32 %v1056, 0.0
    %v1090 = vpack.c.bf16 %v1060, %v1058
    %v1091 = vpack.c.bf16 %v1061, %v1059
    %v1092 = vpack.c.bf16 %v1064, %v1062
    %v1093 = vpack.c.bf16 %v1065, %v1063
    %v1094 = vpack.c.bf16 %v1068, %v1066
    %v1095 = vpack.c.bf16 %v1069, %v1067
    %v1096 = vpack.c.bf16 %v1072, %v1070
    %v1097 = vpack.c.bf16 %v1073, %v1071
    %v1098 = vpack.c.bf16 %v1076, %v1074
    %v1099 = vpack.c.bf16 %v1077, %v1075
    %v1100 = vpack.c.bf16 %v1080, %v1078
    %v1101 = vpack.c.bf16 %v1081, %v1079
    %v1102 = vpack.c.bf16 %v1084, %v1082
    %v1103 = vpack.c.bf16 %v1085, %v1083
    %v1104 = vpack.c.bf16 %v1088, %v1086
    %v1105 = vpack.c.bf16 %v1089, %v1087
    %v1106 = vld [vmem:[%s7] sm:$0xff]
    %v1107 = vld [vmem:[%s7 + $0x8] sm:$0xff]
    %v1108 = vld [vmem:[%s7 + $0x10] sm:$0xff]
    %v1109 = vld [vmem:[%s7 + $0x18] sm:$0xff]
    %v1110 = vld [vmem:[%s7 + $0x20] sm:$0xff]
    %v1111 = vld [vmem:[%s7 + $0x28] sm:$0xff]
    %v1112 = vld [vmem:[%s7 + $0x30] sm:$0xff]
    %v1113 = vld [vmem:[%s7 + $0x38] sm:$0xff]
    %v1114 = vld [vmem:[%s7 + $0x40] sm:$0xff]
    %v1115 = vld [vmem:[%s7 + $0x48] sm:$0xff]
    %v1116 = vld [vmem:[%s7 + $0x50] sm:$0xff]
    %v1117 = vld [vmem:[%s7 + $0x58] sm:$0xff]
    %v1118 = vld [vmem:[%s7 + $0x60] sm:$0xff]
    %v1119 = vld [vmem:[%s7 + $0x68] sm:$0xff]
    %v1120 = vld [vmem:[%s7 + $0x70] sm:$0xff]
    %v1121 = vld [vmem:[%s7 + $0x78] sm:$0xff]
    %v1122 = vld [vmem:[%s7 + $0x80] sm:$0xff]
    %v1123 = vld [vmem:[%s7 + $0x88] sm:$0xff]
    %v1124 = vld [vmem:[%s7 + $0x90] sm:$0xff]
    %v1125 = vld [vmem:[%s7 + $0x98] sm:$0xff]
    %v1126 = vld [vmem:[%s7 + $0xa0] sm:$0xff]
    %v1127 = vld [vmem:[%s7 + $0xa8] sm:$0xff]
    %v1128 = vld [vmem:[%s7 + $0xb0] sm:$0xff]
    %v1129 = vld [vmem:[%s7 + $0xb8] sm:$0xff]
    %v1130 = vld [vmem:[%s7 + $0xc0] sm:$0xff]
    %v1131 = vld [vmem:[%s7 + $0xc8] sm:$0xff]
    %v1132 = vld [vmem:[%s7 + $0xd0] sm:$0xff]
    %v1133 = vld [vmem:[%s7 + $0xd8] sm:$0xff]
    %v1134 = vld [vmem:[%s7 + $0xe0] sm:$0xff]
    %v1135 = vld [vmem:[%s7 + $0xe8] sm:$0xff]
    %v1136 = vld [vmem:[%s7 + $0xf0] sm:$0xff]
    %v1137 = vld [vmem:[%s7 + $0xf8] sm:$0xff]
    %v1138 = vld [vmem:[%s7 + $0x100] sm:$0xff]
    %v1139 = vld [vmem:[%s7 + $0x108] sm:$0xff]
    %v1140 = vld [vmem:[%s7 + $0x110] sm:$0xff]
    %v1141 = vld [vmem:[%s7 + $0x118] sm:$0xff]
    %v1142 = vld [vmem:[%s7 + $0x120] sm:$0xff]
    %v1143 = vld [vmem:[%s7 + $0x128] sm:$0xff]
    %v1144 = vld [vmem:[%s7 + $0x130] sm:$0xff]
    %v1145 = vld [vmem:[%s7 + $0x138] sm:$0xff]
    %v1146 = vld [vmem:[%s7 + $0x140] sm:$0xff]
    %v1147 = vld [vmem:[%s7 + $0x148] sm:$0xff]
    %v1148 = vld [vmem:[%s7 + $0x150] sm:$0xff]
    %v1149 = vld [vmem:[%s7 + $0x158] sm:$0xff]
    %v1150 = vld [vmem:[%s7 + $0x160] sm:$0xff]
    %v1151 = vld [vmem:[%s7 + $0x168] sm:$0xff]
    %v1152 = vld [vmem:[%s7 + $0x170] sm:$0xff]
    %v1153 = vld [vmem:[%s7 + $0x178] sm:$0xff]
    %v1154 = vld [vmem:[%s7 + $0x180] sm:$0xff]
    %v1155 = vld [vmem:[%s7 + $0x188] sm:$0xff]
    %v1156 = vld [vmem:[%s7 + $0x190] sm:$0xff]
    %v1157 = vld [vmem:[%s7 + $0x198] sm:$0xff]
    %v1158 = vld [vmem:[%s7 + $0x1a0] sm:$0xff]
    %v1159 = vld [vmem:[%s7 + $0x1a8] sm:$0xff]
    %v1160 = vld [vmem:[%s7 + $0x1b0] sm:$0xff]
    %v1161 = vld [vmem:[%s7 + $0x1b8] sm:$0xff]
    %v1162 = vld [vmem:[%s7 + $0x1c0] sm:$0xff]
    %v1163 = vld [vmem:[%s7 + $0x1c8] sm:$0xff]
    %v1164 = vld [vmem:[%s7 + $0x1d0] sm:$0xff]
    %v1165 = vld [vmem:[%s7 + $0x1d8] sm:$0xff]
    %v1166 = vld [vmem:[%s7 + $0x1e0] sm:$0xff]
    %v1167 = vld [vmem:[%s7 + $0x1e8] sm:$0xff]
    %v1168 = vld [vmem:[%s7 + $0x1f0] sm:$0xff]
    %v1169 = vld [vmem:[%s7 + $0x1f8] sm:$0xff]
    %v1234 = vunpack.c.l.b16 %v1106
    %v1235 = vunpack.c.h.b16 %v1106
    %v1236 = vunpack.c.l.b16 %v1107
    %v1237 = vunpack.c.h.b16 %v1107
    %v1238 = vunpack.c.l.b16 %v1108
    %v1239 = vunpack.c.h.b16 %v1108
    %v1240 = vunpack.c.l.b16 %v1109
    %v1241 = vunpack.c.h.b16 %v1109
    %v1242 = vunpack.c.l.b16 %v1110
    %v1243 = vunpack.c.h.b16 %v1110
    %v1244 = vunpack.c.l.b16 %v1111
    %v1245 = vunpack.c.h.b16 %v1111
    %v1246 = vunpack.c.l.b16 %v1112
    %v1247 = vunpack.c.h.b16 %v1112
    %v1248 = vunpack.c.l.b16 %v1113
    %v1249 = vunpack.c.h.b16 %v1113
    %v1250 = vunpack.c.l.b16 %v1114
    %v1251 = vunpack.c.h.b16 %v1114
    %v1252 = vunpack.c.l.b16 %v1115
    %v1253 = vunpack.c.h.b16 %v1115
    %v1254 = vunpack.c.l.b16 %v1116
    %v1255 = vunpack.c.h.b16 %v1116
    %v1256 = vunpack.c.l.b16 %v1117
    %v1257 = vunpack.c.h.b16 %v1117
    %v1258 = vunpack.c.l.b16 %v1118
    %v1259 = vunpack.c.h.b16 %v1118
    %v1260 = vunpack.c.l.b16 %v1119
    %v1261 = vunpack.c.h.b16 %v1119
    %v1262 = vunpack.c.l.b16 %v1120
    %v1263 = vunpack.c.h.b16 %v1120
    %v1264 = vunpack.c.l.b16 %v1121
    %v1265 = vunpack.c.h.b16 %v1121
    %v1266 = vunpack.c.l.b16 %v1122
    %v1267 = vunpack.c.h.b16 %v1122
    %v1268 = vunpack.c.l.b16 %v1123
    %v1269 = vunpack.c.h.b16 %v1123
    %v1270 = vunpack.c.l.b16 %v1124
    %v1271 = vunpack.c.h.b16 %v1124
    %v1272 = vunpack.c.l.b16 %v1125
    %v1273 = vunpack.c.h.b16 %v1125
    %v1274 = vunpack.c.l.b16 %v1126
    %v1275 = vunpack.c.h.b16 %v1126
    %v1276 = vunpack.c.l.b16 %v1127
    %v1277 = vunpack.c.h.b16 %v1127
    %v1278 = vunpack.c.l.b16 %v1128
    %v1279 = vunpack.c.h.b16 %v1128
    %v1280 = vunpack.c.l.b16 %v1129
    %v1281 = vunpack.c.h.b16 %v1129
    %v1282 = vunpack.c.l.b16 %v1130
    %v1283 = vunpack.c.h.b16 %v1130
    %v1284 = vunpack.c.l.b16 %v1131
    %v1285 = vunpack.c.h.b16 %v1131
    %v1286 = vunpack.c.l.b16 %v1132
    %v1287 = vunpack.c.h.b16 %v1132
    %v1288 = vunpack.c.l.b16 %v1133
    %v1289 = vunpack.c.h.b16 %v1133
    %v1290 = vunpack.c.l.b16 %v1134
    %v1291 = vunpack.c.h.b16 %v1134
    %v1292 = vunpack.c.l.b16 %v1135
    %v1293 = vunpack.c.h.b16 %v1135
    %v1294 = vunpack.c.l.b16 %v1136
    %v1295 = vunpack.c.h.b16 %v1136
    %v1296 = vunpack.c.l.b16 %v1137
    %v1297 = vunpack.c.h.b16 %v1137
    %v1298 = vunpack.c.l.b16 %v1138
    %v1299 = vunpack.c.h.b16 %v1138
    %v1300 = vunpack.c.l.b16 %v1139
    %v1301 = vunpack.c.h.b16 %v1139
    %v1302 = vunpack.c.l.b16 %v1140
    %v1303 = vunpack.c.h.b16 %v1140
    %v1304 = vunpack.c.l.b16 %v1141
    %v1305 = vunpack.c.h.b16 %v1141
    %v1306 = vunpack.c.l.b16 %v1142
    %v1307 = vunpack.c.h.b16 %v1142
    %v1308 = vunpack.c.l.b16 %v1143
    %v1309 = vunpack.c.h.b16 %v1143
    %v1310 = vunpack.c.l.b16 %v1144
    %v1311 = vunpack.c.h.b16 %v1144
    %v1312 = vunpack.c.l.b16 %v1145
    %v1313 = vunpack.c.h.b16 %v1145
    %v1314 = vunpack.c.l.b16 %v1146
    %v1315 = vunpack.c.h.b16 %v1146
    %v1316 = vunpack.c.l.b16 %v1147
    %v1317 = vunpack.c.h.b16 %v1147
    %v1318 = vunpack.c.l.b16 %v1148
    %v1319 = vunpack.c.h.b16 %v1148
    %v1320 = vunpack.c.l.b16 %v1149
    %v1321 = vunpack.c.h.b16 %v1149
    %v1322 = vunpack.c.l.b16 %v1150
    %v1323 = vunpack.c.h.b16 %v1150
    %v1324 = vunpack.c.l.b16 %v1151
    %v1325 = vunpack.c.h.b16 %v1151
    %v1326 = vunpack.c.l.b16 %v1152
    %v1327 = vunpack.c.h.b16 %v1152
    %v1328 = vunpack.c.l.b16 %v1153
    %v1329 = vunpack.c.h.b16 %v1153
    %v1330 = vunpack.c.l.b16 %v1154
    %v1331 = vunpack.c.h.b16 %v1154
    %v1332 = vunpack.c.l.b16 %v1155
    %v1333 = vunpack.c.h.b16 %v1155
    %v1334 = vunpack.c.l.b16 %v1156
    %v1335 = vunpack.c.h.b16 %v1156
    %v1336 = vunpack.c.l.b16 %v1157
    %v1337 = vunpack.c.h.b16 %v1157
    %v1338 = vunpack.c.l.b16 %v1158
    %v1339 = vunpack.c.h.b16 %v1158
    %v1340 = vunpack.c.l.b16 %v1159
    %v1341 = vunpack.c.h.b16 %v1159
    %v1342 = vunpack.c.l.b16 %v1160
    %v1343 = vunpack.c.h.b16 %v1160
    %v1344 = vunpack.c.l.b16 %v1161
    %v1345 = vunpack.c.h.b16 %v1161
    %v1346 = vunpack.c.l.b16 %v1162
    %v1347 = vunpack.c.h.b16 %v1162
    %v1348 = vunpack.c.l.b16 %v1163
    %v1349 = vunpack.c.h.b16 %v1163
    %v1350 = vunpack.c.l.b16 %v1164
    %v1351 = vunpack.c.h.b16 %v1164
    %v1352 = vunpack.c.l.b16 %v1165
    %v1353 = vunpack.c.h.b16 %v1165
    %v1354 = vunpack.c.l.b16 %v1166
    %v1355 = vunpack.c.h.b16 %v1166
    %v1356 = vunpack.c.l.b16 %v1167
    %v1357 = vunpack.c.h.b16 %v1167
    %v1358 = vunpack.c.l.b16 %v1168
    %v1359 = vunpack.c.h.b16 %v1168
    %v1360 = vunpack.c.l.b16 %v1169
    %v1361 = vunpack.c.h.b16 %v1169
    %v1362 = vpack.c.b16 %v1238, %v1234
    %v1363 = vpack.c.b16 %v1239, %v1235
    %v1364 = vpack.c.b16 %v1240, %v1236
    %v1365 = vpack.c.b16 %v1241, %v1237
    %v1366 = vpack.c.b16 %v1246, %v1242
    %v1367 = vpack.c.b16 %v1247, %v1243
    %v1368 = vpack.c.b16 %v1248, %v1244
    %v1369 = vpack.c.b16 %v1249, %v1245
    %v1370 = vpack.c.b16 %v1254, %v1250
    %v1371 = vpack.c.b16 %v1255, %v1251
    %v1372 = vpack.c.b16 %v1256, %v1252
    %v1373 = vpack.c.b16 %v1257, %v1253
    %v1374 = vpack.c.b16 %v1262, %v1258
    %v1375 = vpack.c.b16 %v1263, %v1259
    %v1376 = vpack.c.b16 %v1264, %v1260
    %v1377 = vpack.c.b16 %v1265, %v1261
    %v1378 = vpack.c.b16 %v1270, %v1266
    %v1379 = vpack.c.b16 %v1271, %v1267
    %v1380 = vpack.c.b16 %v1272, %v1268
    %v1381 = vpack.c.b16 %v1273, %v1269
    %v1382 = vpack.c.b16 %v1278, %v1274
    %v1383 = vpack.c.b16 %v1279, %v1275
    %v1384 = vpack.c.b16 %v1280, %v1276
    %v1385 = vpack.c.b16 %v1281, %v1277
    %v1386 = vpack.c.b16 %v1286, %v1282
    %v1387 = vpack.c.b16 %v1287, %v1283
    %v1388 = vpack.c.b16 %v1288, %v1284
    %v1389 = vpack.c.b16 %v1289, %v1285
    %v1390 = vpack.c.b16 %v1294, %v1290
    %v1391 = vpack.c.b16 %v1295, %v1291
    %v1392 = vpack.c.b16 %v1296, %v1292
    %v1393 = vpack.c.b16 %v1297, %v1293
    %v1394 = vpack.c.b16 %v1302, %v1298
    %v1395 = vpack.c.b16 %v1303, %v1299
    %v1396 = vpack.c.b16 %v1304, %v1300
    %v1397 = vpack.c.b16 %v1305, %v1301
    %v1398 = vpack.c.b16 %v1310, %v1306
    %v1399 = vpack.c.b16 %v1311, %v1307
    %v1400 = vpack.c.b16 %v1312, %v1308
    %v1401 = vpack.c.b16 %v1313, %v1309
    %v1402 = vpack.c.b16 %v1318, %v1314
    %v1403 = vpack.c.b16 %v1319, %v1315
    %v1404 = vpack.c.b16 %v1320, %v1316
    %v1405 = vpack.c.b16 %v1321, %v1317
    %v1406 = vpack.c.b16 %v1326, %v1322
    %v1407 = vpack.c.b16 %v1327, %v1323
    %v1408 = vpack.c.b16 %v1328, %v1324
    %v1409 = vpack.c.b16 %v1329, %v1325
    %v1410 = vpack.c.b16 %v1334, %v1330
    %v1411 = vpack.c.b16 %v1335, %v1331
    %v1412 = vpack.c.b16 %v1336, %v1332
    %v1413 = vpack.c.b16 %v1337, %v1333
    %v1414 = vpack.c.b16 %v1342, %v1338
    %v1415 = vpack.c.b16 %v1343, %v1339
    %v1416 = vpack.c.b16 %v1344, %v1340
    %v1417 = vpack.c.b16 %v1345, %v1341
    %v1418 = vpack.c.b16 %v1350, %v1346
    %v1419 = vpack.c.b16 %v1351, %v1347
    %v1420 = vpack.c.b16 %v1352, %v1348
    %v1421 = vpack.c.b16 %v1353, %v1349
    %v1422 = vpack.c.b16 %v1358, %v1354
    %v1423 = vpack.c.b16 %v1359, %v1355
    %v1424 = vpack.c.b16 %v1360, %v1356
    %v1425 = vpack.c.b16 %v1361, %v1357
    %1490 = vmatprep.subr.bf16.mxu0 %v1391
    %1491 = vmatpush1.bf16.msra.mxu0 %v1390
    %1492 = vmatprep.subr.bf16.mxu0 %v1387
    %1493 = vmatpush1.bf16.msra.mxu0 %v1386
    %1494 = vmatprep.subr.bf16.mxu0 %v1383
    %1495 = vmatpush1.bf16.msra.mxu0 %v1382
    %1496 = vmatprep.subr.bf16.mxu0 %v1379
    %1497 = vmatpush1.bf16.msra.mxu0 %v1378
    %1498 = vmatprep.subr.bf16.mxu0 %v1375
    %1499 = vmatpush1.bf16.msra.mxu0 %v1374
    %1500 = vmatprep.subr.bf16.mxu0 %v1371
    %1501 = vmatpush1.bf16.msra.mxu0 %v1370
    %1502 = vmatprep.subr.bf16.mxu0 %v1367
    %1503 = vmatpush1.bf16.msra.mxu0 %v1366
    %1504 = vmatprep.subr.bf16.mxu0 %v1363
    %1505 = vmatpush1.bf16.msra.mxu0 %v1362
    %1506 = vmatprep.subr.bf16.mxu0 %v1423
    %1507 = vmatpush2.bf16.msra.mxu0 %v1422
    %1508 = vmatprep.subr.bf16.mxu0 %v1419
    %1509 = vmatpush2.bf16.msra.mxu0 %v1418
    %1510 = vmatprep.subr.bf16.mxu0 %v1415
    %1511 = vmatpush2.bf16.msra.mxu0 %v1414
    %1512 = vmatprep.subr.bf16.mxu0 %v1411
    %1513 = vmatpush2.bf16.msra.mxu0 %v1410
    %1514 = vmatprep.subr.bf16.mxu0 %v1407
    %1515 = vmatpush2.bf16.msra.mxu0 %v1406
    %1516 = vmatprep.subr.bf16.mxu0 %v1403
    %1517 = vmatpush2.bf16.msra.mxu0 %v1402
    %1518 = vmatprep.subr.bf16.mxu0 %v1399
    %1519 = vmatpush2.bf16.msra.mxu0 %v1398
    %1520 = vmatprep.subr.bf16.mxu0 %v1395
    %1521 = vmatpush2.bf16.msra.mxu0 %v1394
    %1522 = vmatprep.mubr.bf16.mxu0 %v1091
    %1523 = vmatmul.mubr.bf16.gmra.mxu0 %v1090
    %v1524 = vpop.f32.mrf.mxu0
    %v1525 = vadd.f32 0.0, %v1524
    %v1526 = vpop.f32.mrf.mxu0
    %v1527 = vadd.f32 0.0, %v1526
    %v1528 = vpop.f32.mrf.mxu0
    %v1529 = vadd.f32 0.0, %v1528
    %v1530 = vpop.f32.mrf.mxu0
    %v1531 = vadd.f32 0.0, %v1530
    %1532 = vmatprep.mubr.bf16.mxu0 %v1093
    %1533 = vmatmul.mubr.bf16.gmra.mxu0 %v1092
    %v1534 = vpop.f32.mrf.mxu0
    %v1535 = vadd.f32 0.0, %v1534
    %v1536 = vpop.f32.mrf.mxu0
    %v1537 = vadd.f32 0.0, %v1536
    %v1538 = vpop.f32.mrf.mxu0
    %v1539 = vadd.f32 0.0, %v1538
    %v1540 = vpop.f32.mrf.mxu0
    %v1541 = vadd.f32 0.0, %v1540
    %1542 = vmatprep.mubr.bf16.mxu0 %v1095
    %1543 = vmatmul.mubr.bf16.gmra.mxu0 %v1094
    %v1544 = vpop.f32.mrf.mxu0
    %v1545 = vadd.f32 0.0, %v1544
    %v1546 = vpop.f32.mrf.mxu0
    %v1547 = vadd.f32 0.0, %v1546
    %v1548 = vpop.f32.mrf.mxu0
    %v1549 = vadd.f32 0.0, %v1548
    %v1550 = vpop.f32.mrf.mxu0
    %v1551 = vadd.f32 0.0, %v1550
    %1552 = vmatprep.mubr.bf16.mxu0 %v1097
    %1553 = vmatmul.mubr.bf16.gmra.mxu0 %v1096
    %v1554 = vpop.f32.mrf.mxu0
    %v1555 = vadd.f32 0.0, %v1554
    %v1556 = vpop.f32.mrf.mxu0
    %v1557 = vadd.f32 0.0, %v1556
    %v1558 = vpop.f32.mrf.mxu0
    %v1559 = vadd.f32 0.0, %v1558
    %v1560 = vpop.f32.mrf.mxu0
    %v1561 = vadd.f32 0.0, %v1560
    %1562 = vmatprep.mubr.bf16.mxu0 %v1099
    %1563 = vmatmul.mubr.bf16.gmra.mxu0 %v1098
    %v1564 = vpop.f32.mrf.mxu0
    %v1565 = vadd.f32 0.0, %v1564
    %v1566 = vpop.f32.mrf.mxu0
    %v1567 = vadd.f32 0.0, %v1566
    %v1568 = vpop.f32.mrf.mxu0
    %v1569 = vadd.f32 0.0, %v1568
    %v1570 = vpop.f32.mrf.mxu0
    %v1571 = vadd.f32 0.0, %v1570
    %1572 = vmatprep.mubr.bf16.mxu0 %v1101
    %1573 = vmatmul.mubr.bf16.gmra.mxu0 %v1100
    %v1574 = vpop.f32.mrf.mxu0
    %v1575 = vadd.f32 0.0, %v1574
    %v1576 = vpop.f32.mrf.mxu0
    %v1577 = vadd.f32 0.0, %v1576
    %v1578 = vpop.f32.mrf.mxu0
    %v1579 = vadd.f32 0.0, %v1578
    %v1580 = vpop.f32.mrf.mxu0
    %v1581 = vadd.f32 0.0, %v1580
    %1582 = vmatprep.mubr.bf16.mxu0 %v1103
    %1583 = vmatmul.mubr.bf16.gmra.mxu0 %v1102
    %v1584 = vpop.f32.mrf.mxu0
    %v1585 = vadd.f32 0.0, %v1584
    %v1586 = vpop.f32.mrf.mxu0
    %v1587 = vadd.f32 0.0, %v1586
    %v1588 = vpop.f32.mrf.mxu0
    %v1589 = vadd.f32 0.0, %v1588
    %v1590 = vpop.f32.mrf.mxu0
    %v1591 = vadd.f32 0.0, %v1590
    %1592 = vmatprep.mubr.bf16.mxu0 %v1105
    %1593 = vmatmul.mubr.bf16.gmra.mxu0 %v1104
    %v1594 = vpop.f32.mrf.mxu0
    %v1595 = vadd.f32 0.0, %v1594
    %v1596 = vpop.f32.mrf.mxu0
    %v1597 = vadd.f32 0.0, %v1596
    %v1598 = vpop.f32.mrf.mxu0
    %v1599 = vadd.f32 0.0, %v1598
    %v1600 = vpop.f32.mrf.mxu0
    %v1601 = vadd.f32 0.0, %v1600
    %1602 = vdwg.mxu0
    %1603 = vmatprep.subr.bf16.mxu0 %v1393
    %1604 = vmatpush1.bf16.msra.mxu0 %v1392
    %1605 = vmatprep.subr.bf16.mxu0 %v1389
    %1606 = vmatpush1.bf16.msra.mxu0 %v1388
    %1607 = vmatprep.subr.bf16.mxu0 %v1385
    %1608 = vmatpush1.bf16.msra.mxu0 %v1384
    %1609 = vmatprep.subr.bf16.mxu0 %v1381
    %1610 = vmatpush1.bf16.msra.mxu0 %v1380
    %1611 = vmatprep.subr.bf16.mxu0 %v1377
    %1612 = vmatpush1.bf16.msra.mxu0 %v1376
    %1613 = vmatprep.subr.bf16.mxu0 %v1373
    %1614 = vmatpush1.bf16.msra.mxu0 %v1372
    %1615 = vmatprep.subr.bf16.mxu0 %v1369
    %1616 = vmatpush1.bf16.msra.mxu0 %v1368
    %1617 = vmatprep.subr.bf16.mxu0 %v1365
    %1618 = vmatpush1.bf16.msra.mxu0 %v1364
    %1619 = vmatprep.subr.bf16.mxu0 %v1425
    %1620 = vmatpush2.bf16.msra.mxu0 %v1424
    %1621 = vmatprep.subr.bf16.mxu0 %v1421
    %1622 = vmatpush2.bf16.msra.mxu0 %v1420
    %1623 = vmatprep.subr.bf16.mxu0 %v1417
    %1624 = vmatpush2.bf16.msra.mxu0 %v1416
    %1625 = vmatprep.subr.bf16.mxu0 %v1413
    %1626 = vmatpush2.bf16.msra.mxu0 %v1412
    %1627 = vmatprep.subr.bf16.mxu0 %v1409
    %1628 = vmatpush2.bf16.msra.mxu0 %v1408
    %1629 = vmatprep.subr.bf16.mxu0 %v1405
    %1630 = vmatpush2.bf16.msra.mxu0 %v1404
    %1631 = vmatprep.subr.bf16.mxu0 %v1401
    %1632 = vmatpush2.bf16.msra.mxu0 %v1400
    %1633 = vmatprep.subr.bf16.mxu0 %v1397
    %1634 = vmatpush2.bf16.msra.mxu0 %v1396
    %1635 = vmatprep.mubr.bf16.mxu0 %v1091
    %1636 = vmatmul.mubr.bf16.gmra.mxu0 %v1090
    %v1637 = vpop.f32.mrf.mxu0
    %v1638 = vadd.f32 0.0, %v1637
    %v1639 = vpop.f32.mrf.mxu0
    %v1640 = vadd.f32 0.0, %v1639
    %v1641 = vpop.f32.mrf.mxu0
    %v1642 = vadd.f32 0.0, %v1641
    %v1643 = vpop.f32.mrf.mxu0
    %v1644 = vadd.f32 0.0, %v1643
    %1645 = vmatprep.mubr.bf16.mxu0 %v1093
    %1646 = vmatmul.mubr.bf16.gmra.mxu0 %v1092
    %v1647 = vpop.f32.mrf.mxu0
    %v1648 = vadd.f32 0.0, %v1647
    %v1649 = vpop.f32.mrf.mxu0
    %v1650 = vadd.f32 0.0, %v1649
    %v1651 = vpop.f32.mrf.mxu0
    %v1652 = vadd.f32 0.0, %v1651
    %v1653 = vpop.f32.mrf.mxu0
    %v1654 = vadd.f32 0.0, %v1653
    %1655 = vmatprep.mubr.bf16.mxu0 %v1095
    %1656 = vmatmul.mubr.bf16.gmra.mxu0 %v1094
    %v1657 = vpop.f32.mrf.mxu0
    %v1658 = vadd.f32 0.0, %v1657
    %v1659 = vpop.f32.mrf.mxu0
    %v1660 = vadd.f32 0.0, %v1659
    %v1661 = vpop.f32.mrf.mxu0
    %v1662 = vadd.f32 0.0, %v1661
    %v1663 = vpop.f32.mrf.mxu0
    %v1664 = vadd.f32 0.0, %v1663
    %1665 = vmatprep.mubr.bf16.mxu0 %v1097
    %1666 = vmatmul.mubr.bf16.gmra.mxu0 %v1096
    %v1667 = vpop.f32.mrf.mxu0
    %v1668 = vadd.f32 0.0, %v1667
    %v1669 = vpop.f32.mrf.mxu0
    %v1670 = vadd.f32 0.0, %v1669
    %v1671 = vpop.f32.mrf.mxu0
    %v1672 = vadd.f32 0.0, %v1671
    %v1673 = vpop.f32.mrf.mxu0
    %v1674 = vadd.f32 0.0, %v1673
    %1675 = vmatprep.mubr.bf16.mxu0 %v1099
    %1676 = vmatmul.mubr.bf16.gmra.mxu0 %v1098
    %v1677 = vpop.f32.mrf.mxu0
    %v1678 = vadd.f32 0.0, %v1677
    %v1679 = vpop.f32.mrf.mxu0
    %v1680 = vadd.f32 0.0, %v1679
    %v1681 = vpop.f32.mrf.mxu0
    %v1682 = vadd.f32 0.0, %v1681
    %v1683 = vpop.f32.mrf.mxu0
    %v1684 = vadd.f32 0.0, %v1683
    %1685 = vmatprep.mubr.bf16.mxu0 %v1101
    %1686 = vmatmul.mubr.bf16.gmra.mxu0 %v1100
    %v1687 = vpop.f32.mrf.mxu0
    %v1688 = vadd.f32 0.0, %v1687
    %v1689 = vpop.f32.mrf.mxu0
    %v1690 = vadd.f32 0.0, %v1689
    %v1691 = vpop.f32.mrf.mxu0
    %v1692 = vadd.f32 0.0, %v1691
    %v1693 = vpop.f32.mrf.mxu0
    %v1694 = vadd.f32 0.0, %v1693
    %1695 = vmatprep.mubr.bf16.mxu0 %v1103
    %1696 = vmatmul.mubr.bf16.gmra.mxu0 %v1102
    %v1697 = vpop.f32.mrf.mxu0
    %v1698 = vadd.f32 0.0, %v1697
    %v1699 = vpop.f32.mrf.mxu0
    %v1700 = vadd.f32 0.0, %v1699
    %v1701 = vpop.f32.mrf.mxu0
    %v1702 = vadd.f32 0.0, %v1701
    %v1703 = vpop.f32.mrf.mxu0
    %v1704 = vadd.f32 0.0, %v1703
    %1705 = vmatprep.mubr.bf16.mxu0 %v1105
    %1706 = vmatmul.mubr.bf16.gmra.mxu0 %v1104
    %v1707 = vpop.f32.mrf.mxu0
    %v1708 = vadd.f32 0.0, %v1707
    %v1709 = vpop.f32.mrf.mxu0
    %v1710 = vadd.f32 0.0, %v1709
    %v1711 = vpop.f32.mrf.mxu0
    %v1712 = vadd.f32 0.0, %v1711
    %v1713 = vpop.f32.mrf.mxu0
    %v1714 = vadd.f32 0.0, %v1713
    %1715 = vdwg.mxu0
    %v1716 = vrot.slane %v1525, 4
    %v1717 = vmax.f32 %v1525, %v1716
    %v1718 = vrot.slane %v1717, 2
    %v1719 = vmax.f32 %v1717, %v1718
    %v1720 = vrot.slane %v1719, 1
    %v1721 = vmax.f32 %v1719, %v1720
    %v1722 = vrot.slane %v1527, 4
    %v1723 = vmax.f32 %v1527, %v1722
    %v1724 = vrot.slane %v1723, 2
    %v1725 = vmax.f32 %v1723, %v1724
    %v1726 = vrot.slane %v1725, 1
    %v1727 = vmax.f32 %v1725, %v1726
    %v1728 = vrot.slane %v1638, 4
    %v1729 = vmax.f32 %v1638, %v1728
    %v1730 = vrot.slane %v1729, 2
    %v1731 = vmax.f32 %v1729, %v1730
    %v1732 = vrot.slane %v1731, 1
    %v1733 = vmax.f32 %v1731, %v1732
    %v1734 = vrot.slane %v1640, 4
    %v1735 = vmax.f32 %v1640, %v1734
    %v1736 = vrot.slane %v1735, 2
    %v1737 = vmax.f32 %v1735, %v1736
    %v1738 = vrot.slane %v1737, 1
    %v1739 = vmax.f32 %v1737, %v1738
    %v1740 = vrot.slane %v1529, 4
    %v1741 = vmax.f32 %v1529, %v1740
    %v1742 = vrot.slane %v1741, 2
    %v1743 = vmax.f32 %v1741, %v1742
    %v1744 = vrot.slane %v1743, 1
    %v1745 = vmax.f32 %v1743, %v1744
    %v1746 = vrot.slane %v1531, 4
    %v1747 = vmax.f32 %v1531, %v1746
    %v1748 = vrot.slane %v1747, 2
    %v1749 = vmax.f32 %v1747, %v1748
    %v1750 = vrot.slane %v1749, 1
    %v1751 = vmax.f32 %v1749, %v1750
    %v1752 = vrot.slane %v1642, 4
    %v1753 = vmax.f32 %v1642, %v1752
    %v1754 = vrot.slane %v1753, 2
    %v1755 = vmax.f32 %v1753, %v1754
    %v1756 = vrot.slane %v1755, 1
    %v1757 = vmax.f32 %v1755, %v1756
    %v1758 = vrot.slane %v1644, 4
    %v1759 = vmax.f32 %v1644, %v1758
    %v1760 = vrot.slane %v1759, 2
    %v1761 = vmax.f32 %v1759, %v1760
    %v1762 = vrot.slane %v1761, 1
    %v1763 = vmax.f32 %v1761, %v1762
    %v1764 = vrot.slane %v1535, 4
    %v1765 = vmax.f32 %v1535, %v1764
    %v1766 = vrot.slane %v1765, 2
    %v1767 = vmax.f32 %v1765, %v1766
    %v1768 = vrot.slane %v1767, 1
    %v1769 = vmax.f32 %v1767, %v1768
    %v1770 = vrot.slane %v1537, 4
    %v1771 = vmax.f32 %v1537, %v1770
    %v1772 = vrot.slane %v1771, 2
    %v1773 = vmax.f32 %v1771, %v1772
    %v1774 = vrot.slane %v1773, 1
    %v1775 = vmax.f32 %v1773, %v1774
    %v1776 = vrot.slane %v1648, 4
    %v1777 = vmax.f32 %v1648, %v1776
    %v1778 = vrot.slane %v1777, 2
    %v1779 = vmax.f32 %v1777, %v1778
    %v1780 = vrot.slane %v1779, 1
    %v1781 = vmax.f32 %v1779, %v1780
    %v1782 = vrot.slane %v1650, 4
    %v1783 = vmax.f32 %v1650, %v1782
    %v1784 = vrot.slane %v1783, 2
    %v1785 = vmax.f32 %v1783, %v1784
    %v1786 = vrot.slane %v1785, 1
    %v1787 = vmax.f32 %v1785, %v1786
    %v1788 = vrot.slane %v1539, 4
    %v1789 = vmax.f32 %v1539, %v1788
    %v1790 = vrot.slane %v1789, 2
    %v1791 = vmax.f32 %v1789, %v1790
    %v1792 = vrot.slane %v1791, 1
    %v1793 = vmax.f32 %v1791, %v1792
    %v1794 = vrot.slane %v1541, 4
    %v1795 = vmax.f32 %v1541, %v1794
    %v1796 = vrot.slane %v1795, 2
    %v1797 = vmax.f32 %v1795, %v1796
    %v1798 = vrot.slane %v1797, 1
    %v1799 = vmax.f32 %v1797, %v1798
    %v1800 = vrot.slane %v1652, 4
    %v1801 = vmax.f32 %v1652, %v1800
    %v1802 = vrot.slane %v1801, 2
    %v1803 = vmax.f32 %v1801, %v1802
    %v1804 = vrot.slane %v1803, 1
    %v1805 = vmax.f32 %v1803, %v1804
    %v1806 = vrot.slane %v1654, 4
    %v1807 = vmax.f32 %v1654, %v1806
    %v1808 = vrot.slane %v1807, 2
    %v1809 = vmax.f32 %v1807, %v1808
    %v1810 = vrot.slane %v1809, 1
    %v1811 = vmax.f32 %v1809, %v1810
    %v1812 = vrot.slane %v1545, 4
    %v1813 = vmax.f32 %v1545, %v1812
    %v1814 = vrot.slane %v1813, 2
    %v1815 = vmax.f32 %v1813, %v1814
    %v1816 = vrot.slane %v1815, 1
    %v1817 = vmax.f32 %v1815, %v1816
    %v1818 = vrot.slane %v1547, 4
    %v1819 = vmax.f32 %v1547, %v1818
    %v1820 = vrot.slane %v1819, 2
    %v1821 = vmax.f32 %v1819, %v1820
    %v1822 = vrot.slane %v1821, 1
    %v1823 = vmax.f32 %v1821, %v1822
    %v1824 = vrot.slane %v1658, 4
    %v1825 = vmax.f32 %v1658, %v1824
    %v1826 = vrot.slane %v1825, 2
    %v1827 = vmax.f32 %v1825, %v1826
    %v1828 = vrot.slane %v1827, 1
    %v1829 = vmax.f32 %v1827, %v1828
    %v1830 = vrot.slane %v1660, 4
    %v1831 = vmax.f32 %v1660, %v1830
    %v1832 = vrot.slane %v1831, 2
    %v1833 = vmax.f32 %v1831, %v1832
    %v1834 = vrot.slane %v1833, 1
    %v1835 = vmax.f32 %v1833, %v1834
    %v1836 = vrot.slane %v1549, 4
    %v1837 = vmax.f32 %v1549, %v1836
    %v1838 = vrot.slane %v1837, 2
    %v1839 = vmax.f32 %v1837, %v1838
    %v1840 = vrot.slane %v1839, 1
    %v1841 = vmax.f32 %v1839, %v1840
    %v1842 = vrot.slane %v1551, 4
    %v1843 = vmax.f32 %v1551, %v1842
    %v1844 = vrot.slane %v1843, 2
    %v1845 = vmax.f32 %v1843, %v1844
    %v1846 = vrot.slane %v1845, 1
    %v1847 = vmax.f32 %v1845, %v1846
    %v1848 = vrot.slane %v1662, 4
    %v1849 = vmax.f32 %v1662, %v1848
    %v1850 = vrot.slane %v1849, 2
    %v1851 = vmax.f32 %v1849, %v1850
    %v1852 = vrot.slane %v1851, 1
    %v1853 = vmax.f32 %v1851, %v1852
    %v1854 = vrot.slane %v1664, 4
    %v1855 = vmax.f32 %v1664, %v1854
    %v1856 = vrot.slane %v1855, 2
    %v1857 = vmax.f32 %v1855, %v1856
    %v1858 = vrot.slane %v1857, 1
    %v1859 = vmax.f32 %v1857, %v1858
    %v1860 = vrot.slane %v1555, 4
    %v1861 = vmax.f32 %v1555, %v1860
    %v1862 = vrot.slane %v1861, 2
    %v1863 = vmax.f32 %v1861, %v1862
    %v1864 = vrot.slane %v1863, 1
    %v1865 = vmax.f32 %v1863, %v1864
    %v1866 = vrot.slane %v1557, 4
    %v1867 = vmax.f32 %v1557, %v1866
    %v1868 = vrot.slane %v1867, 2
    %v1869 = vmax.f32 %v1867, %v1868
    %v1870 = vrot.slane %v1869, 1
    %v1871 = vmax.f32 %v1869, %v1870
    %v1872 = vrot.slane %v1668, 4
    %v1873 = vmax.f32 %v1668, %v1872
    %v1874 = vrot.slane %v1873, 2
    %v1875 = vmax.f32 %v1873, %v1874
    %v1876 = vrot.slane %v1875, 1
    %v1877 = vmax.f32 %v1875, %v1876
    %v1878 = vrot.slane %v1670, 4
    %v1879 = vmax.f32 %v1670, %v1878
    %v1880 = vrot.slane %v1879, 2
    %v1881 = vmax.f32 %v1879, %v1880
    %v1882 = vrot.slane %v1881, 1
    %v1883 = vmax.f32 %v1881, %v1882
    %v1884 = vrot.slane %v1559, 4
    %v1885 = vmax.f32 %v1559, %v1884
    %v1886 = vrot.slane %v1885, 2
    %v1887 = vmax.f32 %v1885, %v1886
    %v1888 = vrot.slane %v1887, 1
    %v1889 = vmax.f32 %v1887, %v1888
    %v1890 = vrot.slane %v1561, 4
    %v1891 = vmax.f32 %v1561, %v1890
    %v1892 = vrot.slane %v1891, 2
    %v1893 = vmax.f32 %v1891, %v1892
    %v1894 = vrot.slane %v1893, 1
    %v1895 = vmax.f32 %v1893, %v1894
    %v1896 = vrot.slane %v1672, 4
    %v1897 = vmax.f32 %v1672, %v1896
    %v1898 = vrot.slane %v1897, 2
    %v1899 = vmax.f32 %v1897, %v1898
    %v1900 = vrot.slane %v1899, 1
    %v1901 = vmax.f32 %v1899, %v1900
    %v1902 = vrot.slane %v1674, 4
    %v1903 = vmax.f32 %v1674, %v1902
    %v1904 = vrot.slane %v1903, 2
    %v1905 = vmax.f32 %v1903, %v1904
    %v1906 = vrot.slane %v1905, 1
    %v1907 = vmax.f32 %v1905, %v1906
    %v1908 = vrot.slane %v1565, 4
    %v1909 = vmax.f32 %v1565, %v1908
    %v1910 = vrot.slane %v1909, 2
    %v1911 = vmax.f32 %v1909, %v1910
    %v1912 = vrot.slane %v1911, 1
    %v1913 = vmax.f32 %v1911, %v1912
    %v1914 = vrot.slane %v1567, 4
    %v1915 = vmax.f32 %v1567, %v1914
    %v1916 = vrot.slane %v1915, 2
    %v1917 = vmax.f32 %v1915, %v1916
    %v1918 = vrot.slane %v1917, 1
    %v1919 = vmax.f32 %v1917, %v1918
    %v1920 = vrot.slane %v1678, 4
    %v1921 = vmax.f32 %v1678, %v1920
    %v1922 = vrot.slane %v1921, 2
    %v1923 = vmax.f32 %v1921, %v1922
    %v1924 = vrot.slane %v1923, 1
    %v1925 = vmax.f32 %v1923, %v1924
    %v1926 = vrot.slane %v1680, 4
    %v1927 = vmax.f32 %v1680, %v1926
    %v1928 = vrot.slane %v1927, 2
    %v1929 = vmax.f32 %v1927, %v1928
    %v1930 = vrot.slane %v1929, 1
    %v1931 = vmax.f32 %v1929, %v1930
    %v1932 = vrot.slane %v1569, 4
    %v1933 = vmax.f32 %v1569, %v1932
    %v1934 = vrot.slane %v1933, 2
    %v1935 = vmax.f32 %v1933, %v1934
    %v1936 = vrot.slane %v1935, 1
    %v1937 = vmax.f32 %v1935, %v1936
    %v1938 = vrot.slane %v1571, 4
    %v1939 = vmax.f32 %v1571, %v1938
    %v1940 = vrot.slane %v1939, 2
    %v1941 = vmax.f32 %v1939, %v1940
    %v1942 = vrot.slane %v1941, 1
    %v1943 = vmax.f32 %v1941, %v1942
    %v1944 = vrot.slane %v1682, 4
    %v1945 = vmax.f32 %v1682, %v1944
    %v1946 = vrot.slane %v1945, 2
    %v1947 = vmax.f32 %v1945, %v1946
    %v1948 = vrot.slane %v1947, 1
    %v1949 = vmax.f32 %v1947, %v1948
    %v1950 = vrot.slane %v1684, 4
    %v1951 = vmax.f32 %v1684, %v1950
    %v1952 = vrot.slane %v1951, 2
    %v1953 = vmax.f32 %v1951, %v1952
    %v1954 = vrot.slane %v1953, 1
    %v1955 = vmax.f32 %v1953, %v1954
    %v1956 = vrot.slane %v1575, 4
    %v1957 = vmax.f32 %v1575, %v1956
    %v1958 = vrot.slane %v1957, 2
    %v1959 = vmax.f32 %v1957, %v1958
    %v1960 = vrot.slane %v1959, 1
    %v1961 = vmax.f32 %v1959, %v1960
    %v1962 = vrot.slane %v1577, 4
    %v1963 = vmax.f32 %v1577, %v1962
    %v1964 = vrot.slane %v1963, 2
    %v1965 = vmax.f32 %v1963, %v1964
    %v1966 = vrot.slane %v1965, 1
    %v1967 = vmax.f32 %v1965, %v1966
    %v1968 = vrot.slane %v1688, 4
    %v1969 = vmax.f32 %v1688, %v1968
    %v1970 = vrot.slane %v1969, 2
    %v1971 = vmax.f32 %v1969, %v1970
    %v1972 = vrot.slane %v1971, 1
    %v1973 = vmax.f32 %v1971, %v1972
    %v1974 = vrot.slane %v1690, 4
    %v1975 = vmax.f32 %v1690, %v1974
    %v1976 = vrot.slane %v1975, 2
    %v1977 = vmax.f32 %v1975, %v1976
    %v1978 = vrot.slane %v1977, 1
    %v1979 = vmax.f32 %v1977, %v1978
    %v1980 = vrot.slane %v1579, 4
    %v1981 = vmax.f32 %v1579, %v1980
    %v1982 = vrot.slane %v1981, 2
    %v1983 = vmax.f32 %v1981, %v1982
    %v1984 = vrot.slane %v1983, 1
    %v1985 = vmax.f32 %v1983, %v1984
    %v1986 = vrot.slane %v1581, 4
    %v1987 = vmax.f32 %v1581, %v1986
    %v1988 = vrot.slane %v1987, 2
    %v1989 = vmax.f32 %v1987, %v1988
    %v1990 = vrot.slane %v1989, 1
    %v1991 = vmax.f32 %v1989, %v1990
    %v1992 = vrot.slane %v1692, 4
    %v1993 = vmax.f32 %v1692, %v1992
    %v1994 = vrot.slane %v1993, 2
    %v1995 = vmax.f32 %v1993, %v1994
    %v1996 = vrot.slane %v1995, 1
    %v1997 = vmax.f32 %v1995, %v1996
    %v1998 = vrot.slane %v1694, 4
    %v1999 = vmax.f32 %v1694, %v1998
    %v2000 = vrot.slane %v1999, 2
    %v2001 = vmax.f32 %v1999, %v2000
    %v2002 = vrot.slane %v2001, 1
    %v2003 = vmax.f32 %v2001, %v2002
    %v2004 = vrot.slane %v1585, 4
    %v2005 = vmax.f32 %v1585, %v2004
    %v2006 = vrot.slane %v2005, 2
    %v2007 = vmax.f32 %v2005, %v2006
    %v2008 = vrot.slane %v2007, 1
    %v2009 = vmax.f32 %v2007, %v2008
    %v2010 = vrot.slane %v1587, 4
    %v2011 = vmax.f32 %v1587, %v2010
    %v2012 = vrot.slane %v2011, 2
    %v2013 = vmax.f32 %v2011, %v2012
    %v2014 = vrot.slane %v2013, 1
    %v2015 = vmax.f32 %v2013, %v2014
    %v2016 = vrot.slane %v1698, 4
    %v2017 = vmax.f32 %v1698, %v2016
    %v2018 = vrot.slane %v2017, 2
    %v2019 = vmax.f32 %v2017, %v2018
    %v2020 = vrot.slane %v2019, 1
    %v2021 = vmax.f32 %v2019, %v2020
    %v2022 = vrot.slane %v1700, 4
    %v2023 = vmax.f32 %v1700, %v2022
    %v2024 = vrot.slane %v2023, 2
    %v2025 = vmax.f32 %v2023, %v2024
    %v2026 = vrot.slane %v2025, 1
    %v2027 = vmax.f32 %v2025, %v2026
    %v2028 = vrot.slane %v1589, 4
    %v2029 = vmax.f32 %v1589, %v2028
    %v2030 = vrot.slane %v2029, 2
    %v2031 = vmax.f32 %v2029, %v2030
    %v2032 = vrot.slane %v2031, 1
    %v2033 = vmax.f32 %v2031, %v2032
    %v2034 = vrot.slane %v1591, 4
    %v2035 = vmax.f32 %v1591, %v2034
    %v2036 = vrot.slane %v2035, 2
    %v2037 = vmax.f32 %v2035, %v2036
    %v2038 = vrot.slane %v2037, 1
    %v2039 = vmax.f32 %v2037, %v2038
    %v2040 = vrot.slane %v1702, 4
    %v2041 = vmax.f32 %v1702, %v2040
    %v2042 = vrot.slane %v2041, 2
    %v2043 = vmax.f32 %v2041, %v2042
    %v2044 = vrot.slane %v2043, 1
    %v2045 = vmax.f32 %v2043, %v2044
    %v2046 = vrot.slane %v1704, 4
    %v2047 = vmax.f32 %v1704, %v2046
    %v2048 = vrot.slane %v2047, 2
    %v2049 = vmax.f32 %v2047, %v2048
    %v2050 = vrot.slane %v2049, 1
    %v2051 = vmax.f32 %v2049, %v2050
    %v2052 = vrot.slane %v1595, 4
    %v2053 = vmax.f32 %v1595, %v2052
    %v2054 = vrot.slane %v2053, 2
    %v2055 = vmax.f32 %v2053, %v2054
    %v2056 = vrot.slane %v2055, 1
    %v2057 = vmax.f32 %v2055, %v2056
    %v2058 = vrot.slane %v1597, 4
    %v2059 = vmax.f32 %v1597, %v2058
    %v2060 = vrot.slane %v2059, 2
    %v2061 = vmax.f32 %v2059, %v2060
    %v2062 = vrot.slane %v2061, 1
    %v2063 = vmax.f32 %v2061, %v2062
    %v2064 = vrot.slane %v1708, 4
    %v2065 = vmax.f32 %v1708, %v2064
    %v2066 = vrot.slane %v2065, 2
    %v2067 = vmax.f32 %v2065, %v2066
    %v2068 = vrot.slane %v2067, 1
    %v2069 = vmax.f32 %v2067, %v2068
    %v2070 = vrot.slane %v1710, 4
    %v2071 = vmax.f32 %v1710, %v2070
    %v2072 = vrot.slane %v2071, 2
    %v2073 = vmax.f32 %v2071, %v2072
    %v2074 = vrot.slane %v2073, 1
    %v2075 = vmax.f32 %v2073, %v2074
    %v2076 = vrot.slane %v1599, 4
    %v2077 = vmax.f32 %v1599, %v2076
    %v2078 = vrot.slane %v2077, 2
    %v2079 = vmax.f32 %v2077, %v2078
    %v2080 = vrot.slane %v2079, 1
    %v2081 = vmax.f32 %v2079, %v2080
    %v2082 = vrot.slane %v1601, 4
    %v2083 = vmax.f32 %v1601, %v2082
    %v2084 = vrot.slane %v2083, 2
    %v2085 = vmax.f32 %v2083, %v2084
    %v2086 = vrot.slane %v2085, 1
    %v2087 = vmax.f32 %v2085, %v2086
    %v2088 = vrot.slane %v1712, 4
    %v2089 = vmax.f32 %v1712, %v2088
    %v2090 = vrot.slane %v2089, 2
    %v2091 = vmax.f32 %v2089, %v2090
    %v2092 = vrot.slane %v2091, 1
    %v2093 = vmax.f32 %v2091, %v2092
    %v2094 = vrot.slane %v1714, 4
    %v2095 = vmax.f32 %v1714, %v2094
    %v2096 = vrot.slane %v2095, 2
    %v2097 = vmax.f32 %v2095, %v2096
    %v2098 = vrot.slane %v2097, 1
    %v2099 = vmax.f32 %v2097, %v2098
    %p2100 = scmp.eq.s32.totalorder 0, 0
    // Predicated region
    $region38: #{pointnet2_based_forward.5} parent=1 // pred_check
      %p2101 = pneg %p2100
    $region39: #{pointnet2_based_forward.5} parent=1 // pred_check_branch
      %2103 = sbr.rel (%p2101) target = $region41
    $region40: #{pointnet2_based_forward.5} parent=1 // pred_region
      %vm2168 = vcmask 1041409
      %v2169 = vsel %vm2168, %v1745, %v1721
      %vm2170 = vcmask 1042434
      %v2171 = vsel %vm2170, %v1769, %v2169
      %vm2172 = vcmask 1043459
      %v2173 = vsel %vm2172, %v1793, %v2171
      %vm2174 = vcmask 1044484
      %v2175 = vsel %vm2174, %v1817, %v2173
      %vm2176 = vcmask 1045509
      %v2177 = vsel %vm2176, %v1841, %v2175
      %vm2178 = vcmask 1046534
      %v2179 = vsel %vm2178, %v1865, %v2177
      %vm2180 = vcmask 1047559
      %v2181 = vsel %vm2180, %v1889, %v2179
      %v2182 = vsel %vm2168, %v1751, %v1727
      %v2183 = vsel %vm2170, %v1775, %v2182
      %v2184 = vsel %vm2172, %v1799, %v2183
      %v2185 = vsel %vm2174, %v1823, %v2184
      %v2186 = vsel %vm2176, %v1847, %v2185
      %v2187 = vsel %vm2178, %v1871, %v2186
      %v2188 = vsel %vm2180, %v1895, %v2187
      %v2189 = vsel %vm2168, %v1757, %v1733
      %v2190 = vsel %vm2170, %v1781, %v2189
      %v2191 = vsel %vm2172, %v1805, %v2190
      %v2192 = vsel %vm2174, %v1829, %v2191
      %v2193 = vsel %vm2176, %v1853, %v2192
      %v2194 = vsel %vm2178, %v1877, %v2193
      %v2195 = vsel %vm2180, %v1901, %v2194
      %v2196 = vsel %vm2168, %v1763, %v1739
      %v2197 = vsel %vm2170, %v1787, %v2196
      %v2198 = vsel %vm2172, %v1811, %v2197
      %v2199 = vsel %vm2174, %v1835, %v2198
      %v2200 = vsel %vm2176, %v1859, %v2199
      %v2201 = vsel %vm2178, %v1883, %v2200
      %v2202 = vsel %vm2180, %v1907, %v2201
      %v2203 = vsel %vm2168, %v1937, %v1913
      %v2204 = vsel %vm2170, %v1961, %v2203
      %v2205 = vsel %vm2172, %v1985, %v2204
      %v2206 = vsel %vm2174, %v2009, %v2205
      %v2207 = vsel %vm2176, %v2033, %v2206
      %v2208 = vsel %vm2178, %v2057, %v2207
      %v2209 = vsel %vm2180, %v2081, %v2208
      %v2210 = vsel %vm2168, %v1943, %v1919
      %v2211 = vsel %vm2170, %v1967, %v2210
      %v2212 = vsel %vm2172, %v1991, %v2211
      %v2213 = vsel %vm2174, %v2015, %v2212
      %v2214 = vsel %vm2176, %v2039, %v2213
      %v2215 = vsel %vm2178, %v2063, %v2214
      %v2216 = vsel %vm2180, %v2087, %v2215
      %v2217 = vsel %vm2168, %v1949, %v1925
      %v2218 = vsel %vm2170, %v1973, %v2217
      %v2219 = vsel %vm2172, %v1997, %v2218
      %v2220 = vsel %vm2174, %v2021, %v2219
      %v2221 = vsel %vm2176, %v2045, %v2220
      %v2222 = vsel %vm2178, %v2069, %v2221
      %v2223 = vsel %vm2180, %v2093, %v2222
      %v2224 = vsel %vm2168, %v1955, %v1931
      %v2225 = vsel %vm2170, %v1979, %v2224
      %v2226 = vsel %vm2172, %v2003, %v2225
      %v2227 = vsel %vm2174, %v2027, %v2226
      %v2228 = vsel %vm2176, %v2051, %v2227
      %v2229 = vsel %vm2178, %v2075, %v2228
      %v2230 = vsel %vm2180, %v2099, %v2229
      %2239 = vst [vmem:[#allocation2] sm:$0xff] %v2181
      %2240 = vst [vmem:[#allocation2 + $0x8] sm:$0xff] %v2188
      %2241 = vst [vmem:[#allocation2 + $0x10] sm:$0xff] %v2195
      %2242 = vst [vmem:[#allocation2 + $0x18] sm:$0xff] %v2202
      %2243 = vst [vmem:[#allocation2 + $0x20] sm:$0xff] %v2209
      %2244 = vst [vmem:[#allocation2 + $0x28] sm:$0xff] %v2216
      %2245 = vst [vmem:[#allocation2 + $0x30] sm:$0xff] %v2223
      %2246 = vst [vmem:[#allocation2 + $0x38] sm:$0xff] %v2230
    $region41: #{pointnet2_based_forward.5} parent=1 // pred_fallthru
      _
    %p2247 = scmp.gt.s32.totalorder 0, 0
    // Predicated region
    $region42: #{pointnet2_based_forward.5} parent=1 // pred_check
      %p2248 = pneg %p2247
    $region43: #{pointnet2_based_forward.5} parent=1 // pred_check_branch
      %2250 = sbr.rel (%p2248) target = $region45
    $region44: #{pointnet2_based_forward.5} parent=1 // pred_region
      %v2251 = vld [vmem:[#allocation2] sm:$0xff]
      %v2252 = vld [vmem:[#allocation2 + $0x8] sm:$0xff]
      %v2253 = vld [vmem:[#allocation2 + $0x10] sm:$0xff]
      %v2254 = vld [vmem:[#allocation2 + $0x18] sm:$0xff]
      %v2255 = vld [vmem:[#allocation2 + $0x20] sm:$0xff]
      %v2256 = vld [vmem:[#allocation2 + $0x28] sm:$0xff]
      %v2257 = vld [vmem:[#allocation2 + $0x30] sm:$0xff]
      %v2258 = vld [vmem:[#allocation2 + $0x38] sm:$0xff]
      %vm2323 = vcmask 1041409
      %v2324 = vsel %vm2323, %v1745, %v1721
      %vm2325 = vcmask 1042434
      %v2326 = vsel %vm2325, %v1769, %v2324
      %vm2327 = vcmask 1043459
      %v2328 = vsel %vm2327, %v1793, %v2326
      %vm2329 = vcmask 1044484
      %v2330 = vsel %vm2329, %v1817, %v2328
      %vm2331 = vcmask 1045509
      %v2332 = vsel %vm2331, %v1841, %v2330
      %vm2333 = vcmask 1046534
      %v2334 = vsel %vm2333, %v1865, %v2332
      %vm2335 = vcmask 1047559
      %v2336 = vsel %vm2335, %v1889, %v2334
      %v2337 = vsel %vm2323, %v1751, %v1727
      %v2338 = vsel %vm2325, %v1775, %v2337
      %v2339 = vsel %vm2327, %v1799, %v2338
      %v2340 = vsel %vm2329, %v1823, %v2339
      %v2341 = vsel %vm2331, %v1847, %v2340
      %v2342 = vsel %vm2333, %v1871, %v2341
      %v2343 = vsel %vm2335, %v1895, %v2342
      %v2344 = vsel %vm2323, %v1757, %v1733
      %v2345 = vsel %vm2325, %v1781, %v2344
      %v2346 = vsel %vm2327, %v1805, %v2345
      %v2347 = vsel %vm2329, %v1829, %v2346
      %v2348 = vsel %vm2331, %v1853, %v2347
      %v2349 = vsel %vm2333, %v1877, %v2348
      %v2350 = vsel %vm2335, %v1901, %v2349
      %v2351 = vsel %vm2323, %v1763, %v1739
      %v2352 = vsel %vm2325, %v1787, %v2351
      %v2353 = vsel %vm2327, %v1811, %v2352
      %v2354 = vsel %vm2329, %v1835, %v2353
      %v2355 = vsel %vm2331, %v1859, %v2354
      %v2356 = vsel %vm2333, %v1883, %v2355
      %v2357 = vsel %vm2335, %v1907, %v2356
      %v2358 = vsel %vm2323, %v1937, %v1913
      %v2359 = vsel %vm2325, %v1961, %v2358
      %v2360 = vsel %vm2327, %v1985, %v2359
      %v2361 = vsel %vm2329, %v2009, %v2360
      %v2362 = vsel %vm2331, %v2033, %v2361
      %v2363 = vsel %vm2333, %v2057, %v2362
      %v2364 = vsel %vm2335, %v2081, %v2363
      %v2365 = vsel %vm2323, %v1943, %v1919
      %v2366 = vsel %vm2325, %v1967, %v2365
      %v2367 = vsel %vm2327, %v1991, %v2366
      %v2368 = vsel %vm2329, %v2015, %v2367
      %v2369 = vsel %vm2331, %v2039, %v2368
      %v2370 = vsel %vm2333, %v2063, %v2369
      %v2371 = vsel %vm2335, %v2087, %v2370
      %v2372 = vsel %vm2323, %v1949, %v1925
      %v2373 = vsel %vm2325, %v1973, %v2372
      %v2374 = vsel %vm2327, %v1997, %v2373
      %v2375 = vsel %vm2329, %v2021, %v2374
      %v2376 = vsel %vm2331, %v2045, %v2375
      %v2377 = vsel %vm2333, %v2069, %v2376
      %v2378 = vsel %vm2335, %v2093, %v2377
      %v2379 = vsel %vm2323, %v1955, %v1931
      %v2380 = vsel %vm2325, %v1979, %v2379
      %v2381 = vsel %vm2327, %v2003, %v2380
      %v2382 = vsel %vm2329, %v2027, %v2381
      %v2383 = vsel %vm2331, %v2051, %v2382
      %v2384 = vsel %vm2333, %v2075, %v2383
      %v2385 = vsel %vm2335, %v2099, %v2384
      %v2394 = vmax.f32 %v2251, %v2336
      %v2395 = vmax.f32 %v2252, %v2343
      %v2396 = vmax.f32 %v2253, %v2350
      %v2397 = vmax.f32 %v2254, %v2357
      %v2398 = vmax.f32 %v2255, %v2364
      %v2399 = vmax.f32 %v2256, %v2371
      %v2400 = vmax.f32 %v2257, %v2378
      %v2401 = vmax.f32 %v2258, %v2385
      %2402 = vst [vmem:[#allocation2] sm:$0xff] %v2394
      %2403 = vst [vmem:[#allocation2 + $0x8] sm:$0xff] %v2395
      %2404 = vst [vmem:[#allocation2 + $0x10] sm:$0xff] %v2396
      %2405 = vst [vmem:[#allocation2 + $0x18] sm:$0xff] %v2397
      %2406 = vst [vmem:[#allocation2 + $0x20] sm:$0xff] %v2398
      %2407 = vst [vmem:[#allocation2 + $0x28] sm:$0xff] %v2399
      %2408 = vst [vmem:[#allocation2 + $0x30] sm:$0xff] %v2400
      %2409 = vst [vmem:[#allocation2 + $0x38] sm:$0xff] %v2401
    $region45: #{pointnet2_based_forward.5} parent=1 // pred_fallthru
      _
    // Predicated region
    $region46: #{pointnet2_based_forward.5} parent=1 // pred_check
      %p2410 = pneg %p2100
    $region47: #{pointnet2_based_forward.5} parent=1 // pred_check_branch
      %2412 = sbr.rel (%p2410) target = $region49
    $region48: #{pointnet2_based_forward.5} parent=1 // pred_region
      %v2413 = vld [vmem:[#allocation2] sm:$0xff]
      %v2414 = vld [vmem:[#allocation2 + $0x8] sm:$0xff]
      %v2415 = vld [vmem:[#allocation2 + $0x10] sm:$0xff]
      %v2416 = vld [vmem:[#allocation2 + $0x18] sm:$0xff]
      %v2417 = vld [vmem:[#allocation2 + $0x20] sm:$0xff]
      %v2418 = vld [vmem:[#allocation2 + $0x28] sm:$0xff]
      %v2419 = vld [vmem:[#allocation2 + $0x30] sm:$0xff]
      %v2420 = vld [vmem:[#allocation2 + $0x38] sm:$0xff]
      %v2421 = vld [vmem:[%s8] sm:$0xf]
      %v2423 = vlaneseq
      %v2424 = vshrl.u32 %v2423, 7
      %v2425 = vsub.s32 0, %v2424
      %v2426 = vrot.slane %v2421, %v2425
      %v2427 = vlaneseq
      %v2428 = vshrl.u32 %v2427, 7
      %v2429 = vsub.s32 1, %v2428
      %v2430 = vrot.slane %v2421, %v2429
      %v2431 = vlaneseq
      %v2432 = vshrl.u32 %v2431, 7
      %v2433 = vsub.s32 2, %v2432
      %v2434 = vrot.slane %v2421, %v2433
      %v2435 = vlaneseq
      %v2436 = vshrl.u32 %v2435, 7
      %v2437 = vsub.s32 3, %v2436
      %v2438 = vrot.slane %v2421, %v2437
      %v2443 = vadd.f32 %v2413, %v2426
      %v2444 = vadd.f32 %v2414, %v2430
      %v2445 = vadd.f32 %v2415, %v2434
      %v2446 = vadd.f32 %v2416, %v2438
      %v2447 = vadd.f32 %v2417, %v2426
      %v2448 = vadd.f32 %v2418, %v2430
      %v2449 = vadd.f32 %v2419, %v2434
      %v2450 = vadd.f32 %v2420, %v2438
      %v2451 = vmax.f32 %v2443, 0.0
      %v2452 = vmax.f32 %v2444, 0.0
      %v2453 = vmax.f32 %v2445, 0.0
      %v2454 = vmax.f32 %v2446, 0.0
      %v2455 = vmax.f32 %v2447, 0.0
      %v2456 = vmax.f32 %v2448, 0.0
      %v2457 = vmax.f32 %v2449, 0.0
      %v2458 = vmax.f32 %v2450, 0.0
      %2459 = vst [vmem:[#allocation3] sm:$0xff] %v2451
      %2460 = vst [vmem:[#allocation3 + $0x8] sm:$0xff] %v2452
      %2461 = vst [vmem:[#allocation3 + $0x10] sm:$0xff] %v2453
      %2462 = vst [vmem:[#allocation3 + $0x18] sm:$0xff] %v2454
      %2463 = vst [vmem:[#allocation3 + $0x20] sm:$0xff] %v2455
      %2464 = vst [vmem:[#allocation3 + $0x28] sm:$0xff] %v2456
      %2465 = vst [vmem:[#allocation3 + $0x30] sm:$0xff] %v2457
      %2466 = vst [vmem:[#allocation3 + $0x38] sm:$0xff] %v2458
    $region49: #{pointnet2_based_forward.5} parent=1 // pred_fallthru
      _
    // Predicated region
    $region50: #{pointnet2_based_forward.5} parent=1 // pred_check
      _
    $region51: #{pointnet2_based_forward.5} parent=1 // pred_check_branch
      %2468 = sbr.rel (0) target = $region53
    $region52: #{pointnet2_based_forward.5} parent=1 // pred_region
      %s2470 = ssub.s32 1024, 1024
      %2471 = vsyncadd [#allocation4], %s2470
      %s2472 = sshll.u32 [#allocation3], 4
      %s2473 = int_to_ptr.vmem [resolvable:$true] %s2472
      %2478 = dma.vmem_to_hbm [thread:$0]  %s2473, 1024, %s9, [#allocation4], 512, 512, 32
    $region53: #{pointnet2_based_forward.5} parent=1 // pred_fallthru
      _
    // Predicated region
    $region54: #{pointnet2_based_forward.5} parent=1 // pred_check
      _
    $region55: #{pointnet2_based_forward.5} parent=1 // pred_check_branch
      %2480 = sbr.rel (0) target = $region57
    $region56: #{pointnet2_based_forward.5} parent=1 // pred_region
      %2481 = dma.done [#allocation4], 1024
    $region57: #{pointnet2_based_forward.5} parent=1 // pred_fallthru
      _
    %2482 = vsyncpa [#allocation4], 1

</llo_original>
